<compile_context>
chip_gen: v5e
topology: v5e:2x2
jax: 0.10.0
libtpu: 0.0.40
codegen_flags: <defaults>
</compile_context>

<pallas_src>
import functools

import numpy as np
import jax
import jax.numpy as jnp
from jax import lax
from jax.experimental import pallas as pl
from jax.experimental.pallas import tpu as pltpu

F32 = jnp.float32
BF16 = jnp.bfloat16
ACT_DTYPE = jnp.bfloat16          # storage dtype of intra-stage activations
CPAD = 128                        # all channel dims padded to one lane tile
XYZ_PAD = 8                       # xyz coords padded to 8 lanes for the MXU mix
FUSED_MAX = 2048                  # rows handled by the single-tile fused path
TILE_M = 2048                     # rows per grid step on the tiled fallback
POOL_TILE_R = 512                 # groups per grid step in the pooling kernel
BN_EPS = 1e-5
VMEM_LIMIT = 32 * 1024 * 1024     # within scoped-VMEM defaults on v5e/v6e/v7x


def _cparams(parallel):
    return pltpu.CompilerParams(
        dimension_semantics=(("parallel",) if parallel else ("arbitrary",)),
        vmem_limit_bytes=VMEM_LIMIT)


def _const_spec(shape):
    zeros = (0,) * len(shape)
    return pl.BlockSpec(shape, lambda i: zeros)


# ----------------------------- in-kernel helpers -----------------------------

def _bn_from_moments(y_sum, y_sq, gamma, beta, inv_m, eps):
    # y_sum / y_sq: (1, C) per-channel sum and sum-of-squares over the batch.
    mean = y_sum * inv_m
    var = jnp.maximum(y_sq * inv_m - mean * mean, 0.0)      # clamp cancellation
    scale = gamma * lax.rsqrt(var + eps)                    # EUP rsqrt
    shift = beta - mean * scale
    return scale, shift


def _tile_sums(y):
    return jnp.concatenate([jnp.sum(y, axis=0, keepdims=True),
                            jnp.sum(y * y, axis=0, keepdims=True)], axis=0)


def _accum_stats(s_ref, y, tile_m, m_real, masked):
    # Accumulate per-channel sum / sum-of-squares across row tiles; only the
    # last (ragged) tile pays the row mask.
    @pl.when(pl.program_id(0) == 0)
    def _():
        s_ref[...] = jnp.zeros_like(s_ref)
    if masked:
        last = pl.num_programs(0) - 1

        @pl.when(pl.program_id(0) != last)
        def _():
            s_ref[...] += _tile_sums(y)

        @pl.when(pl.program_id(0) == last)
        def _():
            rows = pl.program_id(0) * tile_m + lax.broadcasted_iota(
                jnp.int32, (tile_m, 1), 0)
            ym = jnp.where(rows < m_real, y, 0.0)
            s_ref[...] += _tile_sums(ym)
    else:
        s_ref[...] += _tile_sums(y)


# --------------------------- fused single-tile kernels ---------------------------

def _raw_fused_kernel(x_ref, w_ref, gb_ref, o_ref, *, inv_m, eps):
    # 1x1 conv + training-mode BN (batch stats in-register) + ReLU, one pass.
    y = jnp.dot(x_ref[...].astype(BF16), w_ref[...], preferred_element_type=F32)
    s = jnp.sum(y, axis=0, keepdims=True)
    sq = jnp.sum(y * y, axis=0, keepdims=True)
    scale, shift = _bn_from_moments(s, sq, gb_ref[0:1, :], gb_ref[1:2, :], inv_m, eps)
    o_ref[...] = jnp.maximum(y * scale + shift, 0.0).astype(o_ref.dtype)


def _lin1_pose_fused_kernel(knn_ref, lc_ref, xyz_ref, wk_ref, wl_ref, gb_ref,
                            pecs_ref, pecp_ref, o_ref, *, inv_m, eps):
    # linear1 (split knn/lc weights) + BN + ReLU + PosE_Geo, one pass.
    y = (jnp.dot(knn_ref[...].astype(BF16), wk_ref[...], preferred_element_type=F32)
         + jnp.dot(lc_ref[...].astype(BF16), wl_ref[...], preferred_element_type=F32))
    s = jnp.sum(y, axis=0, keepdims=True)
    sq = jnp.sum(y * y, axis=0, keepdims=True)
    scale, shift = _bn_from_moments(s, sq, gb_ref[0:1, :], gb_ref[1:2, :], inv_m, eps)
    h = jnp.maximum(y * scale + shift, 0.0)
    div = jnp.dot(xyz_ref[...], pecs_ref[...], preferred_element_type=F32)
    pe = jnp.sin(div + pecp_ref[...])                        # sin(x+pi/2)==cos(x)
    o_ref[...] = ((h + pe) * pe).astype(o_ref.dtype)


def _lin2_fused_kernel(x_ref, wa_ref, gba_ref, wb_ref, gbb_ref, o_ref, *, inv_m, eps):
    # Fully fused Linear2 block: conv1 -> bn1 -> relu -> conv2 -> bn2 -> +x -> relu.
    x = x_ref[...]
    y1 = jnp.dot(x.astype(BF16), wa_ref[...], preferred_element_type=F32)
    s1 = jnp.sum(y1, axis=0, keepdims=True)
    q1 = jnp.sum(y1 * y1, axis=0, keepdims=True)
    sc1, sh1 = _bn_from_moments(s1, q1, gba_ref[0:1, :], gba_ref[1:2, :], inv_m, eps)
    h = jnp.maximum(y1 * sc1 + sh1, 0.0).astype(BF16)
    y2 = jnp.dot(h, wb_ref[...], preferred_element_type=F32)
    s2 = jnp.sum(y2, axis=0, keepdims=True)
    q2 = jnp.sum(y2 * y2, axis=0, keepdims=True)
    sc2, sh2 = _bn_from_moments(s2, q2, gbb_ref[0:1, :], gbb_ref[1:2, :], inv_m, eps)
    o_ref[...] = jnp.maximum(y2 * sc2 + sh2 + x.astype(F32), 0.0).astype(o_ref.dtype)


def _pool_kernel(x_ref, o_ref):
    # x: (tile_r, K, C); Pooling = max over K + mean over K.
    x = x_ref[...].astype(F32)
    o_ref[...] = (jnp.max(x, axis=1) + jnp.mean(x, axis=1)).astype(o_ref.dtype)


# --------------------------- tiled (large-M) fallback kernels ---------------------------

def _mm_stats_kernel(x_ref, w_ref, s_ref, *, tile_m, m_real, masked):
    y = jnp.dot(x_ref[...].astype(BF16), w_ref[...], preferred_element_type=F32)
    _accum_stats(s_ref, y, tile_m, m_real, masked)


def _conv_bn_relu_kernel(x_ref, w_ref, gb_ref, s_ref, o_ref, *, inv_m, eps):
    y = jnp.dot(x_ref[...].astype(BF16), w_ref[...], preferred_element_type=F32)
    scale, shift = _bn_from_moments(s_ref[0:1, :], s_ref[1:2, :],
                                    gb_ref[0:1, :], gb_ref[1:2, :], inv_m, eps)
    o_ref[...] = jnp.maximum(y * scale + shift, 0.0).astype(o_ref.dtype)


def _lin1_stats_kernel(knn_ref, lc_ref, wk_ref, wl_ref, s_ref,
                       *, tile_m, m_real, masked):
    y = (jnp.dot(knn_ref[...].astype(BF16), wk_ref[...], preferred_element_type=F32)
         + jnp.dot(lc_ref[...].astype(BF16), wl_ref[...], preferred_element_type=F32))
    _accum_stats(s_ref, y, tile_m, m_real, masked)


def _lin1_pose_apply_kernel(knn_ref, lc_ref, xyz_ref, wk_ref, wl_ref, gb_ref,
                            s_ref, pecs_ref, pecp_ref, o_ref, *, inv_m, eps):
    y = (jnp.dot(knn_ref[...].astype(BF16), wk_ref[...], preferred_element_type=F32)
         + jnp.dot(lc_ref[...].astype(BF16), wl_ref[...], preferred_element_type=F32))
    scale, shift = _bn_from_moments(s_ref[0:1, :], s_ref[1:2, :],
                                    gb_ref[0:1, :], gb_ref[1:2, :], inv_m, eps)
    h = jnp.maximum(y * scale + shift, 0.0)
    div = jnp.dot(xyz_ref[...], pecs_ref[...], preferred_element_type=F32)
    pe = jnp.sin(div + pecp_ref[...])
    o_ref[...] = ((h + pe) * pe).astype(o_ref.dtype)


def _lin2_stats2_kernel(x_ref, wa_ref, gba_ref, sa_ref, wb_ref, s_ref,
                        *, tile_m, m_real, inv_m, eps, masked):
    y1 = jnp.dot(x_ref[...].astype(BF16), wa_ref[...], preferred_element_type=F32)
    sc, sh = _bn_from_moments(sa_ref[0:1, :], sa_ref[1:2, :],
                              gba_ref[0:1, :], gba_ref[1:2, :], inv_m, eps)
    h = jnp.maximum(y1 * sc + sh, 0.0).astype(BF16)
    y2 = jnp.dot(h, wb_ref[...], preferred_element_type=F32)
    _accum_stats(s_ref, y2, tile_m, m_real, masked)


def _lin2_apply_kernel(x_ref, wa_ref, gba_ref, sa_ref, wb_ref, gbb_ref, sb_ref,
                       o_ref, *, inv_m, eps):
    x = x_ref[...]
    y1 = jnp.dot(x.astype(BF16), wa_ref[...], preferred_element_type=F32)
    sc1, sh1 = _bn_from_moments(sa_ref[0:1, :], sa_ref[1:2, :],
                                gba_ref[0:1, :], gba_ref[1:2, :], inv_m, eps)
    h = jnp.maximum(y1 * sc1 + sh1, 0.0).astype(BF16)
    y2 = jnp.dot(h, wb_ref[...], preferred_element_type=F32)
    sc2, sh2 = _bn_from_moments(sb_ref[0:1, :], sb_ref[1:2, :],
                                gbb_ref[0:1, :], gbb_ref[1:2, :], inv_m, eps)
    o_ref[...] = jnp.maximum(y2 * sc2 + sh2 + x.astype(F32), 0.0).astype(o_ref.dtype)


# ----------------------------- kernel wrappers -----------------------------

def conv_bn_relu_op(x, w, gb, out_dtype):
    m, cin = x.shape
    c = w.shape[1]
    if m <= FUSED_MAX:
        kern = functools.partial(_raw_fused_kernel, inv_m=1.0 / m, eps=BN_EPS)
        args = (x, w, gb)
        return pl.pallas_call(
            kern, grid=(1,),
            in_specs=[_const_spec(a.shape) for a in args],
            out_specs=_const_spec((m, c)),
            out_shape=jax.ShapeDtypeStruct((m, c), out_dtype),
            compiler_params=_cparams(True))(*args)
    grid_n, tm = pl.cdiv(m, TILE_M), TILE_M
    masked = (m % tm != 0)
    stats = pl.pallas_call(
        functools.partial(_mm_stats_kernel, tile_m=tm, m_real=m, masked=masked),
        grid=(grid_n,),
        in_specs=[pl.BlockSpec((tm, cin), lambda i: (i, 0)), _const_spec(w.shape)],
        out_specs=_const_spec((2, c)),
        out_shape=jax.ShapeDtypeStruct((2, c), F32),
        compiler_params=_cparams(False))(x, w)
    return pl.pallas_call(
        functools.partial(_conv_bn_relu_kernel, inv_m=1.0 / m, eps=BN_EPS),
        grid=(grid_n,),
        in_specs=[pl.BlockSpec((tm, cin), lambda i: (i, 0)), _const_spec(w.shape),
                  _const_spec(gb.shape), _const_spec(stats.shape)],
        out_specs=pl.BlockSpec((tm, c), lambda i: (i, 0)),
        out_shape=jax.ShapeDtypeStruct((m, c), out_dtype),
        compiler_params=_cparams(True))(x, w, gb, stats)


def lin1_pose_op(knn, lcx, xyz8, wk, wl, gb, pecs, pecp, out_dtype):
    m, c = knn.shape
    if m <= FUSED_MAX:
        kern = functools.partial(_lin1_pose_fused_kernel, inv_m=1.0 / m, eps=BN_EPS)
        args = (knn, lcx, xyz8, wk, wl, gb, pecs, pecp)
        return pl.pallas_call(
            kern, grid=(1,),
            in_specs=[_const_spec(a.shape) for a in args],
            out_specs=_const_spec((m, CPAD)),
            out_shape=jax.ShapeDtypeStruct((m, CPAD), out_dtype),
            compiler_params=_cparams(True))(*args)
    grid_n, tm = pl.cdiv(m, TILE_M), TILE_M
    masked = (m % tm != 0)
    row = pl.BlockSpec((tm, c), lambda i: (i, 0))
    stats = pl.pallas_call(
        functools.partial(_lin1_stats_kernel, tile_m=tm, m_real=m, masked=masked),
        grid=(grid_n,),
        in_specs=[row, row, _const_spec(wk.shape), _const_spec(wl.shape)],
        out_specs=_const_spec((2, CPAD)),
        out_shape=jax.ShapeDtypeStruct((2, CPAD), F32),
        compiler_params=_cparams(False))(knn, lcx, wk, wl)
    return pl.pallas_call(
        functools.partial(_lin1_pose_apply_kernel, inv_m=1.0 / m, eps=BN_EPS),
        grid=(grid_n,),
        in_specs=[row, row, pl.BlockSpec((tm, XYZ_PAD), lambda i: (i, 0)),
                  _const_spec(wk.shape), _const_spec(wl.shape),
                  _const_spec(gb.shape), _const_spec(stats.shape),
                  _const_spec(pecs.shape), _const_spec(pecp.shape)],
        out_specs=pl.BlockSpec((tm, CPAD), lambda i: (i, 0)),
        out_shape=jax.ShapeDtypeStruct((m, CPAD), out_dtype),
        compiler_params=_cparams(True))(knn, lcx, xyz8, wk, wl, gb, stats, pecs, pecp)


def lin2_block_op(x, wa, gba, wb, gbb, out_dtype):
    m = x.shape[0]
    if m <= FUSED_MAX:
        kern = functools.partial(_lin2_fused_kernel, inv_m=1.0 / m, eps=BN_EPS)
        args = (x, wa, gba, wb, gbb)
        return pl.pallas_call(
            kern, grid=(1,),
            in_specs=[_const_spec(a.shape) for a in args],
            out_specs=_const_spec((m, CPAD)),
            out_shape=jax.ShapeDtypeStruct((m, CPAD), out_dtype),
            compiler_params=_cparams(True))(*args)
    grid_n, tm = pl.cdiv(m, TILE_M), TILE_M
    masked = (m % tm != 0)
    row = pl.BlockSpec((tm, CPAD), lambda i: (i, 0))
    sa = pl.pallas_call(
        functools.partial(_mm_stats_kernel, tile_m=tm, m_real=m, masked=masked),
        grid=(grid_n,),
        in_specs=[row, _const_spec(wa.shape)],
        out_specs=_const_spec((2, CPAD)),
        out_shape=jax.ShapeDtypeStruct((2, CPAD), F32),
        compiler_params=_cparams(False))(x, wa)
    sb = pl.pallas_call(
        functools.partial(_lin2_stats2_kernel, tile_m=tm, m_real=m,
                          inv_m=1.0 / m, eps=BN_EPS, masked=masked),
        grid=(grid_n,),
        in_specs=[row, _const_spec(wa.shape), _const_spec(gba.shape),
                  _const_spec(sa.shape), _const_spec(wb.shape)],
        out_specs=_const_spec((2, CPAD)),
        out_shape=jax.ShapeDtypeStruct((2, CPAD), F32),
        compiler_params=_cparams(False))(x, wa, gba, sa, wb)
    return pl.pallas_call(
        functools.partial(_lin2_apply_kernel, inv_m=1.0 / m, eps=BN_EPS),
        grid=(grid_n,),
        in_specs=[row, _const_spec(wa.shape), _const_spec(gba.shape),
                  _const_spec(sa.shape), _const_spec(wb.shape),
                  _const_spec(gbb.shape), _const_spec(sb.shape)],
        out_specs=pl.BlockSpec((tm, CPAD), lambda i: (i, 0)),
        out_shape=jax.ShapeDtypeStruct((m, CPAD), out_dtype),
        compiler_params=_cparams(True))(x, wa, gba, sa, wb, gbb, sb)


def pooling(x3, out_dtype=F32):
    # x3: (R, K, C); max + mean over the K axis, reduced in-kernel.
    r, k, c = x3.shape
    if r <= POOL_TILE_R:
        grid_n, tr = 1, r
    else:
        grid_n, tr = pl.cdiv(r, POOL_TILE_R), POOL_TILE_R
    return pl.pallas_call(
        _pool_kernel,
        grid=(grid_n,),
        in_specs=[pl.BlockSpec((tr, k, c), lambda i: (i, 0, 0))],
        out_specs=pl.BlockSpec((tr, c), lambda i: (i, 0)),
        out_shape=jax.ShapeDtypeStruct((r, c), out_dtype),
        compiler_params=_cparams(True))(x3)


# ----------------------------- plain-JAX glue -----------------------------

def index_points(points, idx):
    return jax.vmap(lambda p, i: p[i])(points, idx)


def furthest_point_sample(xyz, npoint):
    B, N, _ = xyz.shape
    idxs0 = jnp.zeros((B, npoint), jnp.int32)
    dists0 = jnp.full((B, N), 1e10, F32)
    last0 = jnp.zeros((B,), jnp.int32)

    def body(i, state):
        dists, last, idxs = state
        last_pt = jax.vmap(lambda p, j: p[j])(xyz, last)[:, None, :]   # (B,1,3)
        d = jnp.sum((xyz - last_pt) ** 2, axis=-1)                     # (B,N)
        dists = jnp.minimum(dists, d)
        nxt = jnp.argmax(dists, axis=-1).astype(jnp.int32)
        idxs = lax.dynamic_update_slice_in_dim(idxs, nxt[:, None], i, axis=1)
        return dists, nxt, idxs

    _, _, idxs = lax.fori_loop(1, npoint, body, (dists0, last0, idxs0))
    return idxs


def knn_point(k, xyz, new_xyz):
    d = jnp.sum((new_xyz[:, :, None, :] - xyz[:, None, :, :]) ** 2, axis=-1)
    _, idx = lax.top_k(-d, k)
    return idx


# ----------------------------- parameters -----------------------------

def _rup8(n):
    return max(8, ((n + 7) // 8) * 8)


def _pad2(x, rows, cols):
    return jnp.zeros((rows, cols), x.dtype).at[:x.shape[0], :x.shape[1]].set(x)


def _gamma_beta(c_real):
    # BN affine params: gamma=1 on real lanes (0 on padded lanes so padded
    # channels stay exactly zero through BN), beta=0.
    return jnp.zeros((2, CPAD), F32).at[0, :c_real].set(1.0)


def _make_pose_const(out_dim, alpha, beta):
    # PosE_Geo layout: channel c = d*(2*feat_dim) + j; j<feat_dim -> sin, else cos.
    assert out_dim % 6 == 0, "PosE_Geo requires out_dim % 6 == 0"
    feat_dim = out_dim // 6
    scales = np.zeros((XYZ_PAD, CPAD), np.float32)
    phase = np.zeros((1, CPAD), np.float32)
    for c in range(out_dim):
        d = c // (2 * feat_dim)
        j = c % (2 * feat_dim)
        freq = j % feat_dim
        scales[d, c] = beta / (alpha ** (freq / feat_dim))
        phase[0, c] = 0.0 if j < feat_dim else np.pi / 2.0   # sin(x+pi/2)==cos(x)
    return jnp.asarray(scales), jnp.asarray(phase)


def init_encp_params(key, cfg):
    # NOTE: pre-BN conv biases are omitted - training-mode BN cancels them
    # exactly, so the forward output is identical to the PyTorch reference.
    num_stages = cfg["num_stages"]
    keys = jax.random.split(key, 1 + num_stages)
    cin, embed = cfg["in_channels"], cfg["embed_dim"]
    b0 = 1.0 / np.sqrt(cin)
    w_raw = jax.random.uniform(keys[0], (cin, embed), F32, -b0, b0)
    params = dict(raw=dict(w=_pad2(w_raw, _rup8(cin), CPAD).astype(BF16),
                           gb=_gamma_beta(embed)))
    out_dim = embed
    stages = []
    for i in range(num_stages):
        prev = out_dim
        out_dim = out_dim * cfg["dim_expansion"][i]
        cat = 2 * prev                                   # linear1 fan-in
        skeys = jax.random.split(keys[1 + i], 1 + 2 * cfg["LGA_block"][i])
        b1 = 1.0 / np.sqrt(cat)
        w1 = jax.random.uniform(skeys[0], (cat, out_dim), F32, -b1, b1)
        wk = _pad2(w1[:prev], CPAD, CPAD).astype(BF16)   # knn-feature half
        wl = _pad2(w1[prev:], CPAD, CPAD).astype(BF16)   # lc-feature half
        pecs, pecp = _make_pose_const(out_dim, cfg["alpha"], cfg["beta"])
        half = out_dim // 2
        blocks = []
        for j in range(cfg["LGA_block"][i]):
            ba, bb = 1.0 / np.sqrt(out_dim), 1.0 / np.sqrt(half)
            wa = jax.random.uniform(skeys[1 + 2 * j], (out_dim, half), F32, -ba, ba)
            wb = jax.random.uniform(skeys[2 + 2 * j], (half, out_dim), F32, -bb, bb)
            blocks.append(dict(wa=_pad2(wa, CPAD, CPAD).astype(BF16),
                               gba=_gamma_beta(half),
                               wb=_pad2(wb, CPAD, CPAD).astype(BF16),
                               gbb=_gamma_beta(out_dim)))
        stages.append(dict(wk=wk, wl=wl, gb1=_gamma_beta(out_dim),
                           pecs=pecs, pecp=pecp, blocks=blocks))
    params["stages"] = stages
    return params


# ----------------------------- EncP forward -----------------------------

def encp_forward(params, xyz, x_ncw, cfg):
    B, Cin, N = x_ncw.shape
    K = cfg["k_neighbors"]

    # raw_point_embed: Conv1d(1x1, bias=False) + BN1d + ReLU (one fused pass)
    raw = params["raw"]
    x_rows = jnp.transpose(x_ncw, (0, 2, 1)).reshape(B * N, Cin)
    x_rows = jnp.pad(x_rows, ((0, 0), (0, raw["w"].shape[0] - Cin)))
    feat = conv_bn_relu_op(x_rows, raw["w"], raw["gb"], out_dtype=ACT_DTYPE)
    x_feat = feat.reshape(B, N, CPAD)                        # lane-dense 128 slab

    out_dim = cfg["embed_dim"]
    group_num = cfg["input_points"]
    for i in range(cfg["num_stages"]):
        out_dim = out_dim * cfg["dim_expansion"][i]
        group_num = group_num // 2
        G = group_num
        sp = params["stages"][i]

        # FPS + kNN grouping (plain-JAX glue)
        fps_idx = furthest_point_sample(xyz, G)
        lc_xyz = index_points(xyz, fps_idx)                  # (B, G, 3)
        lc_x = index_points(x_feat, fps_idx)                 # (B, G, 128)
        knn_idx = knn_point(K, xyz, lc_xyz)                  # (B, G, K)
        knn_xyz = index_points(xyz, knn_idx)                 # (B, G, K, 3)
        knn_x = index_points(x_feat, knn_idx)                # (B, G, K, 128)

        # LGA 'mn40' normalization
        diff = knn_xyz - lc_xyz[:, :, None, :]
        std = jnp.std(diff, ddof=1)                          # torch.std (unbiased)
        M = B * G * K
        xyz8 = jnp.pad((diff / (std + 1e-5)).reshape(M, 3),
                       ((0, 0), (0, XYZ_PAD - 3)))

        knn_flat = knn_x.reshape(M, CPAD).astype(ACT_DTYPE)
        lc_rep = jnp.broadcast_to(lc_x[:, :, None, :],
                                  knn_x.shape).reshape(M, CPAD).astype(ACT_DTYPE)

        # linear1 (conv + BN + ReLU) fused with PosE_Geo
        xm = lin1_pose_op(knn_flat, lc_rep, xyz8, sp["wk"], sp["wl"], sp["gb1"],
                          sp["pecs"], sp["pecp"], out_dtype=ACT_DTYPE)  # (M,128)

        # Linear2 residual blocks (one fused kernel each on the fast path)
        for blk in sp["blocks"]:
            xm = lin2_block_op(xm, blk["wa"], blk["gba"], blk["wb"], blk["gbb"],
                               out_dtype=ACT_DTYPE)

        # Pooling: max + mean over the K neighbors
        pooled = pooling(xm.reshape(B * G, K, CPAD), out_dtype=F32)     # (B*G,128)
        x_feat = pooled.reshape(B, G, CPAD)
        xyz = lc_xyz

    # prompt: max + mean over the remaining G groups
    prompt_full = pooling(x_feat, out_dtype=F32)             # (B, 128)
    x_out = x_feat[..., :out_dim].astype(F32)                # slice lanes once, at the end
    prompt = prompt_full[:, None, :out_dim]
    # torch returns (x.permute(0,2,1), prompt, xyz); x_out is already (B, G, C)
    return x_out, prompt, xyz


# ----------------------------- main -----------------------------

if __name__ == "__main__":
    cfg = dict(in_channels=3, input_points=16, num_stages=2, embed_dim=24,
               k_neighbors=4, alpha=1000.0, beta=100.0,
               LGA_block=[1, 1], dim_expansion=[2, 2], type="mn40")

    key = jax.random.PRNGKey(0)
    kp, kxyz = jax.random.split(key)
    params = init_encp_params(kp, cfg)

    B, N = 2, cfg["input_points"]
    xyz = jax.random.normal(kxyz, (B, N, 3), F32)            # (B, N, 3)
    x = jnp.transpose(xyz, (0, 2, 1))                        # (B, 3, N) NCW feats

    fwd = jax.jit(functools.partial(encp_forward, cfg=cfg))
    x_out, prompt, xyz_out = fwd(params, xyz, x)
    jax.block_until_ready((x_out, prompt, xyz_out))

    assert x_out.shape == (B, 4, 96), x_out.shape
    assert prompt.shape == (B, 1, 96), prompt.shape
    assert xyz_out.shape == (B, 4, 3), xyz_out.shape
    assert bool(jnp.all(jnp.isfinite(x_out))) and bool(jnp.all(jnp.isfinite(prompt)))
    print("KERNEL_OK")
</pallas_src>

<mosaic_0001>
module attributes {stable_mosaic.version = 11 : i64} {
  func.func @_raw_fused_kernel(%arg0: i32, %arg1: memref<32x8xf32, #tpu.memory_space<vmem>>, %arg2: memref<8x128xbf16, #tpu.memory_space<vmem>>, %arg3: memref<2x128xf32, #tpu.memory_space<vmem>>, %arg4: memref<32x128xbf16, #tpu.memory_space<vmem>>) attributes {dimension_semantics = [#tpu.dimension_semantics<parallel>], iteration_bounds = array<i64: 1>, scalar_prefetch = 0 : i64, scratch_operands = 0 : i64, tpu.core_type = #tpu.core_type<tc>, window_params = [{pipeline_mode = #tpu.pipeline_mode<synchronous>, transform_indices = @transform_0, window_bounds = array<i64: 32, 8>}, {pipeline_mode = #tpu.pipeline_mode<synchronous>, transform_indices = @transform_1, window_bounds = array<i64: 8, 128>}, {pipeline_mode = #tpu.pipeline_mode<synchronous>, transform_indices = @transform_2, window_bounds = array<i64: 2, 128>}, {pipeline_mode = #tpu.pipeline_mode<synchronous>, transform_indices = @transform_3, window_bounds = array<i64: 32, 128>}]} {
    %c0 = arith.constant 0 : index
    %c0_0 = arith.constant 0 : index
    %0 = vector.load %arg1[%c0, %c0_0] : memref<32x8xf32, #tpu.memory_space<vmem>>, vector<32x8xf32>
    %1 = arith.truncf %0 : vector<32x8xf32> to vector<32x8xbf16>
    %c0_1 = arith.constant 0 : index
    %c0_2 = arith.constant 0 : index
    %2 = vector.load %arg2[%c0_1, %c0_2] : memref<8x128xbf16, #tpu.memory_space<vmem>>, vector<8x128xbf16>
    %cst = arith.constant dense<0.000000e+00> : vector<32x128xf32>
    %3 = tpu.matmul %1, %2, %cst {dimension_numbers = #tpu.dot_dimension_numbers<[1], [0], [0], [1], [0, 0, 1, 1], [], []>} : vector<32x8xbf16>, vector<8x128xbf16>, vector<32x128xf32> -> vector<32x128xf32>
    %cst_3 = arith.constant dense<0.000000e+00> : vector<128xf32>
    %4 = vector.multi_reduction <add>, %3, %cst_3 [0] : vector<32x128xf32> to vector<128xf32>
    %5 = vector.shape_cast %4 : vector<128xf32> to vector<1x128xf32>
    %6 = arith.mulf %3, %3 : vector<32x128xf32>
    %cst_4 = arith.constant dense<0.000000e+00> : vector<128xf32>
    %7 = vector.multi_reduction <add>, %6, %cst_4 [0] : vector<32x128xf32> to vector<128xf32>
    %8 = vector.shape_cast %7 : vector<128xf32> to vector<1x128xf32>
    %c0_5 = arith.constant 0 : index
    %c0_6 = arith.constant 0 : index
    %9 = vector.load %arg3[%c0_5, %c0_6] : memref<2x128xf32, #tpu.memory_space<vmem>>, vector<1x128xf32>
    %c1 = arith.constant 1 : index
    %c0_7 = arith.constant 0 : index
    %10 = vector.load %arg3[%c1, %c0_7] : memref<2x128xf32, #tpu.memory_space<vmem>>, vector<1x128xf32>
    %cst_8 = arith.constant 3.125000e-02 : f32
    %11 = vector.broadcast %cst_8 : f32 to vector<1x128xf32>
    %12 = arith.mulf %5, %11 : vector<1x128xf32>
    %cst_9 = arith.constant 3.125000e-02 : f32
    %13 = vector.broadcast %cst_9 : f32 to vector<1x128xf32>
    %14 = arith.mulf %8, %13 : vector<1x128xf32>
    %15 = arith.mulf %12, %12 : vector<1x128xf32>
    %16 = arith.subf %14, %15 : vector<1x128xf32>
    %cst_10 = arith.constant 0.000000e+00 : f32
    %17 = vector.broadcast %cst_10 : f32 to vector<1x128xf32>
    %18 = arith.maximumf %16, %17 : vector<1x128xf32>
    %cst_11 = arith.constant 9.99999974E-6 : f32
    %19 = vector.broadcast %cst_11 : f32 to vector<1x128xf32>
    %20 = arith.addf %18, %19 : vector<1x128xf32>
    %21 = math.rsqrt %20 : vector<1x128xf32>
    %22 = arith.mulf %9, %21 : vector<1x128xf32>
    %23 = arith.mulf %12, %22 : vector<1x128xf32>
    %24 = arith.subf %10, %23 : vector<1x128xf32>
    %25 = vector.broadcast %22 : vector<1x128xf32> to vector<32x128xf32>
    %26 = arith.mulf %3, %25 : vector<32x128xf32>
    %27 = vector.broadcast %24 : vector<1x128xf32> to vector<32x128xf32>
    %28 = arith.addf %26, %27 : vector<32x128xf32>
    %cst_12 = arith.constant 0.000000e+00 : f32
    %29 = vector.broadcast %cst_12 : f32 to vector<32x128xf32>
    %30 = arith.maximumf %28, %29 : vector<32x128xf32>
    %31 = arith.truncf %30 : vector<32x128xf32> to vector<32x128xbf16>
    %c0_13 = arith.constant 0 : index
    %c0_14 = arith.constant 0 : index
    %32 = vector.load %arg4[%c0_13, %c0_14] : memref<32x128xbf16, #tpu.memory_space<vmem>>, vector<32x128xbf16>
    tpu.vector_store %arg4[%c0_13, %c0_14], %31 {strides = array<i32>} : memref<32x128xbf16, #tpu.memory_space<vmem>>, vector<32x128xbf16>,
    return
  }
  func.func @transform_0(%arg0: i32) -> (i32, i32) {
    %c0_i32 = arith.constant 0 : i32
    %c0_i32_0 = arith.constant 0 : i32
    %c0_i32_1 = arith.constant 0 : i32
    return %c0_i32, %c0_i32_0 : i32, i32
  }
  func.func @transform_1(%arg0: i32) -> (i32, i32) {
    %c0_i32 = arith.constant 0 : i32
    %c0_i32_0 = arith.constant 0 : i32
    %c0_i32_1 = arith.constant 0 : i32
    return %c0_i32, %c0_i32_0 : i32, i32
  }
  func.func @transform_2(%arg0: i32) -> (i32, i32) {
    %c0_i32 = arith.constant 0 : i32
    %c0_i32_0 = arith.constant 0 : i32
    %c0_i32_1 = arith.constant 0 : i32
    return %c0_i32, %c0_i32_0 : i32, i32
  }
  func.func @transform_3(%arg0: i32) -> (i32, i32) {
    %c0_i32 = arith.constant 0 : i32
    %c0_i32_0 = arith.constant 0 : i32
    %c0_i32_1 = arith.constant 0 : i32
    return %c0_i32, %c0_i32_0 : i32, i32
  }
}

module attributes {stable_mosaic.version = 11 : i64} {
  func.func @_lin1_pose_fused_kernel(%arg0: i32, %arg1: memref<64x128xbf16, #tpu.memory_space<vmem>>, %arg2: memref<64x128xbf16, #tpu.memory_space<vmem>>, %arg3: memref<64x8xf32, #tpu.memory_space<vmem>>, %arg4: memref<128x128xbf16, #tpu.memory_space<vmem>>, %arg5: memref<128x128xbf16, #tpu.memory_space<vmem>>, %arg6: memref<2x128xf32, #tpu.memory_space<vmem>>, %arg7: memref<8x128xf32, #tpu.memory_space<vmem>>, %arg8: memref<1x128xf32, #tpu.memory_space<vmem>>, %arg9: memref<64x128xbf16, #tpu.memory_space<vmem>>) attributes {dimension_semantics = [#tpu.dimension_semantics<parallel>], iteration_bounds = array<i64: 1>, scalar_prefetch = 0 : i64, scratch_operands = 0 : i64, tpu.core_type = #tpu.core_type<tc>, window_params = [{pipeline_mode = #tpu.pipeline_mode<synchronous>, transform_indices = @transform_0, window_bounds = array<i64: 64, 128>}, {pipeline_mode = #tpu.pipeline_mode<synchronous>, transform_indices = @transform_1, window_bounds = array<i64: 64, 128>}, {pipeline_mode = #tpu.pipeline_mode<synchronous>, transform_indices = @transform_2, window_bounds = array<i64: 64, 8>}, {pipeline_mode = #tpu.pipeline_mode<synchronous>, transform_indices = @transform_3, window_bounds = array<i64: 128, 128>}, {pipeline_mode = #tpu.pipeline_mode<synchronous>, transform_indices = @transform_4, window_bounds = array<i64: 128, 128>}, {pipeline_mode = #tpu.pipeline_mode<synchronous>, transform_indices = @transform_5, window_bounds = array<i64: 2, 128>}, {pipeline_mode = #tpu.pipeline_mode<synchronous>, transform_indices = @transform_6, window_bounds = array<i64: 8, 128>}, {pipeline_mode = #tpu.pipeline_mode<synchronous>, transform_indices = @transform_7, window_bounds = array<i64: 1, 128>}, {pipeline_mode = #tpu.pipeline_mode<synchronous>, transform_indices = @transform_8, window_bounds = array<i64: 64, 128>}]} {
    %c0 = arith.constant 0 : index
    %c0_0 = arith.constant 0 : index
    %0 = vector.load %arg1[%c0, %c0_0] : memref<64x128xbf16, #tpu.memory_space<vmem>>, vector<64x128xbf16>
    %c0_1 = arith.constant 0 : index
    %c0_2 = arith.constant 0 : index
    %1 = vector.load %arg4[%c0_1, %c0_2] : memref<128x128xbf16, #tpu.memory_space<vmem>>, vector<128x128xbf16>
    %cst = arith.constant dense<0.000000e+00> : vector<64x128xf32>
    %2 = tpu.matmul %0, %1, %cst {dimension_numbers = #tpu.dot_dimension_numbers<[1], [0], [0], [1], [0, 0, 1, 1], [], []>} : vector<64x128xbf16>, vector<128x128xbf16>, vector<64x128xf32> -> vector<64x128xf32>
    %c0_3 = arith.constant 0 : index
    %c0_4 = arith.constant 0 : index
    %3 = vector.load %arg2[%c0_3, %c0_4] : memref<64x128xbf16, #tpu.memory_space<vmem>>, vector<64x128xbf16>
    %c0_5 = arith.constant 0 : index
    %c0_6 = arith.constant 0 : index
    %4 = vector.load %arg5[%c0_5, %c0_6] : memref<128x128xbf16, #tpu.memory_space<vmem>>, vector<128x128xbf16>
    %cst_7 = arith.constant dense<0.000000e+00> : vector<64x128xf32>
    %5 = tpu.matmul %3, %4, %cst_7 {dimension_numbers = #tpu.dot_dimension_numbers<[1], [0], [0], [1], [0, 0, 1, 1], [], []>} : vector<64x128xbf16>, vector<128x128xbf16>, vector<64x128xf32> -> vector<64x128xf32>
    %6 = arith.addf %2, %5 : vector<64x128xf32>
    %cst_8 = arith.constant dense<0.000000e+00> : vector<128xf32>
    %7 = vector.multi_reduction <add>, %6, %cst_8 [0] : vector<64x128xf32> to vector<128xf32>
    %8 = vector.shape_cast %7 : vector<128xf32> to vector<1x128xf32>
    %9 = arith.mulf %6, %6 : vector<64x128xf32>
    %cst_9 = arith.constant dense<0.000000e+00> : vector<128xf32>
    %10 = vector.multi_reduction <add>, %9, %cst_9 [0] : vector<64x128xf32> to vector<128xf32>
    %11 = vector.shape_cast %10 : vector<128xf32> to vector<1x128xf32>
    %c0_10 = arith.constant 0 : index
    %c0_11 = arith.constant 0 : index
    %12 = vector.load %arg6[%c0_10, %c0_11] : memref<2x128xf32, #tpu.memory_space<vmem>>, vector<1x128xf32>
    %c1 = arith.constant 1 : index
    %c0_12 = arith.constant 0 : index
    %13 = vector.load %arg6[%c1, %c0_12] : memref<2x128xf32, #tpu.memory_space<vmem>>, vector<1x128xf32>
    %cst_13 = arith.constant 1.562500e-02 : f32
    %14 = vector.broadcast %cst_13 : f32 to vector<1x128xf32>
    %15 = arith.mulf %8, %14 : vector<1x128xf32>
    %cst_14 = arith.constant 1.562500e-02 : f32
    %16 = vector.broadcast %cst_14 : f32 to vector<1x128xf32>
    %17 = arith.mulf %11, %16 : vector<1x128xf32>
    %18 = arith.mulf %15, %15 : vector<1x128xf32>
    %19 = arith.subf %17, %18 : vector<1x128xf32>
    %cst_15 = arith.constant 0.000000e+00 : f32
    %20 = vector.broadcast %cst_15 : f32 to vector<1x128xf32>
    %21 = arith.maximumf %19, %20 : vector<1x128xf32>
    %cst_16 = arith.constant 9.99999974E-6 : f32
    %22 = vector.broadcast %cst_16 : f32 to vector<1x128xf32>
    %23 = arith.addf %21, %22 : vector<1x128xf32>
    %24 = math.rsqrt %23 : vector<1x128xf32>
    %25 = arith.mulf %12, %24 : vector<1x128xf32>
    %26 = arith.mulf %15, %25 : vector<1x128xf32>
    %27 = arith.subf %13, %26 : vector<1x128xf32>
    %28 = vector.broadcast %25 : vector<1x128xf32> to vector<64x128xf32>
    %29 = arith.mulf %6, %28 : vector<64x128xf32>
    %30 = vector.broadcast %27 : vector<1x128xf32> to vector<64x128xf32>
    %31 = arith.addf %29, %30 : vector<64x128xf32>
    %cst_17 = arith.constant 0.000000e+00 : f32
    %32 = vector.broadcast %cst_17 : f32 to vector<64x128xf32>
    %33 = arith.maximumf %31, %32 : vector<64x128xf32>
    %c0_18 = arith.constant 0 : index
    %c0_19 = arith.constant 0 : index
    %34 = vector.load %arg3[%c0_18, %c0_19] : memref<64x8xf32, #tpu.memory_space<vmem>>, vector<64x8xf32>
    %c0_20 = arith.constant 0 : index
    %c0_21 = arith.constant 0 : index
    %35 = vector.load %arg7[%c0_20, %c0_21] : memref<8x128xf32, #tpu.memory_space<vmem>>, vector<8x128xf32>
    %cst_22 = arith.constant dense<0.000000e+00> : vector<64x128xf32>
    %36 = tpu.matmul %34, %35, %cst_22 {dimension_numbers = #tpu.dot_dimension_numbers<[1], [0], [0], [1], [0, 0, 1, 1], [], []>} : vector<64x8xf32>, vector<8x128xf32>, vector<64x128xf32> -> vector<64x128xf32>
    %c0_23 = arith.constant 0 : index
    %c0_24 = arith.constant 0 : index
    %37 = vector.load %arg8[%c0_23, %c0_24] : memref<1x128xf32, #tpu.memory_space<vmem>>, vector<1x128xf32>
    %38 = vector.broadcast %37 : vector<1x128xf32> to vector<64x128xf32>
    %39 = arith.addf %36, %38 : vector<64x128xf32>
    %40 = math.sin %39 : vector<64x128xf32>
    %41 = arith.addf %33, %40 : vector<64x128xf32>
    %42 = arith.mulf %41, %40 : vector<64x128xf32>
    %43 = arith.truncf %42 : vector<64x128xf32> to vector<64x128xbf16>
    %c0_25 = arith.constant 0 : index
    %c0_26 = arith.constant 0 : index
    %44 = vector.load %arg9[%c0_25, %c0_26] : memref<64x128xbf16, #tpu.memory_space<vmem>>, vector<64x128xbf16>
    tpu.vector_store %arg9[%c0_25, %c0_26], %43 {strides = array<i32>} : memref<64x128xbf16, #tpu.memory_space<vmem>>, vector<64x128xbf16>,
    return
  }
  func.func @transform_0(%arg0: i32) -> (i32, i32) {
    %c0_i32 = arith.constant 0 : i32
    %c0_i32_0 = arith.constant 0 : i32
    %c0_i32_1 = arith.constant 0 : i32
    return %c0_i32, %c0_i32_0 : i32, i32
  }
  func.func @transform_1(%arg0: i32) -> (i32, i32) {
    %c0_i32 = arith.constant 0 : i32
    %c0_i32_0 = arith.constant 0 : i32
    %c0_i32_1 = arith.constant 0 : i32
    return %c0_i32, %c0_i32_0 : i32, i32
  }
  func.func @transform_2(%arg0: i32) -> (i32, i32) {
    %c0_i32 = arith.constant 0 : i32
    %c0_i32_0 = arith.constant 0 : i32
    %c0_i32_1 = arith.constant 0 : i32
    return %c0_i32, %c0_i32_0 : i32, i32
  }
  func.func @transform_3(%arg0: i32) -> (i32, i32) {
    %c0_i32 = arith.constant 0 : i32
    %c0_i32_0 = arith.constant 0 : i32
    %c0_i32_1 = arith.constant 0 : i32
    return %c0_i32, %c0_i32_0 : i32, i32
  }
  func.func @transform_4(%arg0: i32) -> (i32, i32) {
    %c0_i32 = arith.constant 0 : i32
    %c0_i32_0 = arith.constant 0 : i32
    %c0_i32_1 = arith.constant 0 : i32
    return %c0_i32, %c0_i32_0 : i32, i32
  }
  func.func @transform_5(%arg0: i32) -> (i32, i32) {
    %c0_i32 = arith.constant 0 : i32
    %c0_i32_0 = arith.constant 0 : i32
    %c0_i32_1 = arith.constant 0 : i32
    return %c0_i32, %c0_i32_0 : i32, i32
  }
  func.func @transform_6(%arg0: i32) -> (i32, i32) {
    %c0_i32 = arith.constant 0 : i32
    %c0_i32_0 = arith.constant 0 : i32
    %c0_i32_1 = arith.constant 0 : i32
    return %c0_i32, %c0_i32_0 : i32, i32
  }
  func.func @transform_7(%arg0: i32) -> (i32, i32) {
    %c0_i32 = arith.constant 0 : i32
    %c0_i32_0 = arith.constant 0 : i32
    %c0_i32_1 = arith.constant 0 : i32
    return %c0_i32, %c0_i32_0 : i32, i32
  }
  func.func @transform_8(%arg0: i32) -> (i32, i32) {
    %c0_i32 = arith.constant 0 : i32
    %c0_i32_0 = arith.constant 0 : i32
    %c0_i32_1 = arith.constant 0 : i32
    return %c0_i32, %c0_i32_0 : i32, i32
  }
}

module attributes {stable_mosaic.version = 11 : i64} {
  func.func @_lin2_fused_kernel(%arg0: i32, %arg1: memref<64x128xbf16, #tpu.memory_space<vmem>>, %arg2: memref<128x128xbf16, #tpu.memory_space<vmem>>, %arg3: memref<2x128xf32, #tpu.memory_space<vmem>>, %arg4: memref<128x128xbf16, #tpu.memory_space<vmem>>, %arg5: memref<2x128xf32, #tpu.memory_space<vmem>>, %arg6: memref<64x128xbf16, #tpu.memory_space<vmem>>) attributes {dimension_semantics = [#tpu.dimension_semantics<parallel>], iteration_bounds = array<i64: 1>, scalar_prefetch = 0 : i64, scratch_operands = 0 : i64, tpu.core_type = #tpu.core_type<tc>, window_params = [{pipeline_mode = #tpu.pipeline_mode<synchronous>, transform_indices = @transform_0, window_bounds = array<i64: 64, 128>}, {pipeline_mode = #tpu.pipeline_mode<synchronous>, transform_indices = @transform_1, window_bounds = array<i64: 128, 128>}, {pipeline_mode = #tpu.pipeline_mode<synchronous>, transform_indices = @transform_2, window_bounds = array<i64: 2, 128>}, {pipeline_mode = #tpu.pipeline_mode<synchronous>, transform_indices = @transform_3, window_bounds = array<i64: 128, 128>}, {pipeline_mode = #tpu.pipeline_mode<synchronous>, transform_indices = @transform_4, window_bounds = array<i64: 2, 128>}, {pipeline_mode = #tpu.pipeline_mode<synchronous>, transform_indices = @transform_5, window_bounds = array<i64: 64, 128>}]} {
    %c0 = arith.constant 0 : index
    %c0_0 = arith.constant 0 : index
    %0 = vector.load %arg1[%c0, %c0_0] : memref<64x128xbf16, #tpu.memory_space<vmem>>, vector<64x128xbf16>
    %c0_1 = arith.constant 0 : index
    %c0_2 = arith.constant 0 : index
    %1 = vector.load %arg2[%c0_1, %c0_2] : memref<128x128xbf16, #tpu.memory_space<vmem>>, vector<128x128xbf16>
    %cst = arith.constant dense<0.000000e+00> : vector<64x128xf32>
    %2 = tpu.matmul %0, %1, %cst {dimension_numbers = #tpu.dot_dimension_numbers<[1], [0], [0], [1], [0, 0, 1, 1], [], []>} : vector<64x128xbf16>, vector<128x128xbf16>, vector<64x128xf32> -> vector<64x128xf32>
    %cst_3 = arith.constant dense<0.000000e+00> : vector<128xf32>
    %3 = vector.multi_reduction <add>, %2, %cst_3 [0] : vector<64x128xf32> to vector<128xf32>
    %4 = vector.shape_cast %3 : vector<128xf32> to vector<1x128xf32>
    %5 = arith.mulf %2, %2 : vector<64x128xf32>
    %cst_4 = arith.constant dense<0.000000e+00> : vector<128xf32>
    %6 = vector.multi_reduction <add>, %5, %cst_4 [0] : vector<64x128xf32> to vector<128xf32>
    %7 = vector.shape_cast %6 : vector<128xf32> to vector<1x128xf32>
    %c0_5 = arith.constant 0 : index
    %c0_6 = arith.constant 0 : index
    %8 = vector.load %arg3[%c0_5, %c0_6] : memref<2x128xf32, #tpu.memory_space<vmem>>, vector<1x128xf32>
    %c1 = arith.constant 1 : index
    %c0_7 = arith.constant 0 : index
    %9 = vector.load %arg3[%c1, %c0_7] : memref<2x128xf32, #tpu.memory_space<vmem>>, vector<1x128xf32>
    %cst_8 = arith.constant 1.562500e-02 : f32
    %10 = vector.broadcast %cst_8 : f32 to vector<1x128xf32>
    %11 = arith.mulf %4, %10 : vector<1x128xf32>
    %cst_9 = arith.constant 1.562500e-02 : f32
    %12 = vector.broadcast %cst_9 : f32 to vector<1x128xf32>
    %13 = arith.mulf %7, %12 : vector<1x128xf32>
    %14 = arith.mulf %11, %11 : vector<1x128xf32>
    %15 = arith.subf %13, %14 : vector<1x128xf32>
    %cst_10 = arith.constant 0.000000e+00 : f32
    %16 = vector.broadcast %cst_10 : f32 to vector<1x128xf32>
    %17 = arith.maximumf %15, %16 : vector<1x128xf32>
    %cst_11 = arith.constant 9.99999974E-6 : f32
    %18 = vector.broadcast %cst_11 : f32 to vector<1x128xf32>
    %19 = arith.addf %17, %18 : vector<1x128xf32>
    %20 = math.rsqrt %19 : vector<1x128xf32>
    %21 = arith.mulf %8, %20 : vector<1x128xf32>
    %22 = arith.mulf %11, %21 : vector<1x128xf32>
    %23 = arith.subf %9, %22 : vector<1x128xf32>
    %24 = vector.broadcast %21 : vector<1x128xf32> to vector<64x128xf32>
    %25 = arith.mulf %2, %24 : vector<64x128xf32>
    %26 = vector.broadcast %23 : vector<1x128xf32> to vector<64x128xf32>
    %27 = arith.addf %25, %26 : vector<64x128xf32>
    %cst_12 = arith.constant 0.000000e+00 : f32
    %28 = vector.broadcast %cst_12 : f32 to vector<64x128xf32>
    %29 = arith.maximumf %27, %28 : vector<64x128xf32>
    %30 = arith.truncf %29 : vector<64x128xf32> to vector<64x128xbf16>
    %c0_13 = arith.constant 0 : index
    %c0_14 = arith.constant 0 : index
    %31 = vector.load %arg4[%c0_13, %c0_14] : memref<128x128xbf16, #tpu.memory_space<vmem>>, vector<128x128xbf16>
    %cst_15 = arith.constant dense<0.000000e+00> : vector<64x128xf32>
    %32 = tpu.matmul %30, %31, %cst_15 {dimension_numbers = #tpu.dot_dimension_numbers<[1], [0], [0], [1], [0, 0, 1, 1], [], []>} : vector<64x128xbf16>, vector<128x128xbf16>, vector<64x128xf32> -> vector<64x128xf32>
    %cst_16 = arith.constant dense<0.000000e+00> : vector<128xf32>
    %33 = vector.multi_reduction <add>, %32, %cst_16 [0] : vector<64x128xf32> to vector<128xf32>
    %34 = vector.shape_cast %33 : vector<128xf32> to vector<1x128xf32>
    %35 = arith.mulf %32, %32 : vector<64x128xf32>
    %cst_17 = arith.constant dense<0.000000e+00> : vector<128xf32>
    %36 = vector.multi_reduction <add>, %35, %cst_17 [0] : vector<64x128xf32> to vector<128xf32>
    %37 = vector.shape_cast %36 : vector<128xf32> to vector<1x128xf32>
    %c0_18 = arith.constant 0 : index
    %c0_19 = arith.constant 0 : index
    %38 = vector.load %arg5[%c0_18, %c0_19] : memref<2x128xf32, #tpu.memory_space<vmem>>, vector<1x128xf32>
    %c1_20 = arith.constant 1 : index
    %c0_21 = arith.constant 0 : index
    %39 = vector.load %arg5[%c1_20, %c0_21] : memref<2x128xf32, #tpu.memory_space<vmem>>, vector<1x128xf32>
    %cst_22 = arith.constant 1.562500e-02 : f32
    %40 = vector.broadcast %cst_22 : f32 to vector<1x128xf32>
    %41 = arith.mulf %34, %40 : vector<1x128xf32>
    %cst_23 = arith.constant 1.562500e-02 : f32
    %42 = vector.broadcast %cst_23 : f32 to vector<1x128xf32>
    %43 = arith.mulf %37, %42 : vector<1x128xf32>
    %44 = arith.mulf %41, %41 : vector<1x128xf32>
    %45 = arith.subf %43, %44 : vector<1x128xf32>
    %cst_24 = arith.constant 0.000000e+00 : f32
    %46 = vector.broadcast %cst_24 : f32 to vector<1x128xf32>
    %47 = arith.maximumf %45, %46 : vector<1x128xf32>
    %cst_25 = arith.constant 9.99999974E-6 : f32
    %48 = vector.broadcast %cst_25 : f32 to vector<1x128xf32>
    %49 = arith.addf %47, %48 : vector<1x128xf32>
    %50 = math.rsqrt %49 : vector<1x128xf32>
    %51 = arith.mulf %38, %50 : vector<1x128xf32>
    %52 = arith.mulf %41, %51 : vector<1x128xf32>
    %53 = arith.subf %39, %52 : vector<1x128xf32>
    %54 = vector.broadcast %51 : vector<1x128xf32> to vector<64x128xf32>
    %55 = arith.mulf %32, %54 : vector<64x128xf32>
    %56 = vector.broadcast %53 : vector<1x128xf32> to vector<64x128xf32>
    %57 = arith.addf %55, %56 : vector<64x128xf32>
    %58 = arith.extf %0 : vector<64x128xbf16> to vector<64x128xf32>
    %59 = arith.addf %57, %58 : vector<64x128xf32>
    %cst_26 = arith.constant 0.000000e+00 : f32
    %60 = vector.broadcast %cst_26 : f32 to vector<64x128xf32>
    %61 = arith.maximumf %59, %60 : vector<64x128xf32>
    %62 = arith.truncf %61 : vector<64x128xf32> to vector<64x128xbf16>
    %c0_27 = arith.constant 0 : index
    %c0_28 = arith.constant 0 : index
    %63 = vector.load %arg6[%c0_27, %c0_28] : memref<64x128xbf16, #tpu.memory_space<vmem>>, vector<64x128xbf16>
    tpu.vector_store %arg6[%c0_27, %c0_28], %62 {strides = array<i32>} : memref<64x128xbf16, #tpu.memory_space<vmem>>, vector<64x128xbf16>,
    return
  }
  func.func @transform_0(%arg0: i32) -> (i32, i32) {
    %c0_i32 = arith.constant 0 : i32
    %c0_i32_0 = arith.constant 0 : i32
    %c0_i32_1 = arith.constant 0 : i32
    return %c0_i32, %c0_i32_0 : i32, i32
  }
  func.func @transform_1(%arg0: i32) -> (i32, i32) {
    %c0_i32 = arith.constant 0 : i32
    %c0_i32_0 = arith.constant 0 : i32
    %c0_i32_1 = arith.constant 0 : i32
    return %c0_i32, %c0_i32_0 : i32, i32
  }
  func.func @transform_2(%arg0: i32) -> (i32, i32) {
    %c0_i32 = arith.constant 0 : i32
    %c0_i32_0 = arith.constant 0 : i32
    %c0_i32_1 = arith.constant 0 : i32
    return %c0_i32, %c0_i32_0 : i32, i32
  }
  func.func @transform_3(%arg0: i32) -> (i32, i32) {
    %c0_i32 = arith.constant 0 : i32
    %c0_i32_0 = arith.constant 0 : i32
    %c0_i32_1 = arith.constant 0 : i32
    return %c0_i32, %c0_i32_0 : i32, i32
  }
  func.func @transform_4(%arg0: i32) -> (i32, i32) {
    %c0_i32 = arith.constant 0 : i32
    %c0_i32_0 = arith.constant 0 : i32
    %c0_i32_1 = arith.constant 0 : i32
    return %c0_i32, %c0_i32_0 : i32, i32
  }
  func.func @transform_5(%arg0: i32) -> (i32, i32) {
    %c0_i32 = arith.constant 0 : i32
    %c0_i32_0 = arith.constant 0 : i32
    %c0_i32_1 = arith.constant 0 : i32
    return %c0_i32, %c0_i32_0 : i32, i32
  }
}

module attributes {stable_mosaic.version = 11 : i64} {
  func.func @_pool_kernel(%arg0: i32, %arg1: memref<16x4x128xbf16, #tpu.memory_space<vmem>>, %arg2: memref<16x128xf32, #tpu.memory_space<vmem>>) attributes {dimension_semantics = [#tpu.dimension_semantics<parallel>], iteration_bounds = array<i64: 1>, scalar_prefetch = 0 : i64, scratch_operands = 0 : i64, tpu.core_type = #tpu.core_type<tc>, window_params = [{transform_indices = @transform_0, window_bounds = array<i64: 16, 4, 128>}, {transform_indices = @transform_1, window_bounds = array<i64: 16, 128>}]} {
    %c0 = arith.constant 0 : index
    %c0_0 = arith.constant 0 : index
    %c0_1 = arith.constant 0 : index
    %0 = vector.load %arg1[%c0, %c0_0, %c0_1] : memref<16x4x128xbf16, #tpu.memory_space<vmem>>, vector<16x4x128xbf16>
    %1 = arith.extf %0 : vector<16x4x128xbf16> to vector<16x4x128xf32>
    %cst = arith.constant dense<0xFF800000> : vector<16x128xf32>
    %2 = vector.multi_reduction <maximumf>, %1, %cst [1] : vector<16x4x128xf32> to vector<16x128xf32>
    %cst_2 = arith.constant dense<0.000000e+00> : vector<16x128xf32>
    %3 = vector.multi_reduction <add>, %1, %cst_2 [1] : vector<16x4x128xf32> to vector<16x128xf32>
    %cst_3 = arith.constant 4.000000e+00 : f32
    %4 = vector.broadcast %cst_3 : f32 to vector<16x128xf32>
    %5 = arith.divf %3, %4 : vector<16x128xf32>
    %6 = arith.addf %2, %5 : vector<16x128xf32>
    %c0_4 = arith.constant 0 : index
    %c0_5 = arith.constant 0 : index
    %7 = vector.load %arg2[%c0_4, %c0_5] : memref<16x128xf32, #tpu.memory_space<vmem>>, vector<16x128xf32>
    tpu.vector_store %arg2[%c0_4, %c0_5], %6 {strides = array<i32>} : memref<16x128xf32, #tpu.memory_space<vmem>>, vector<16x128xf32>,
    return
  }
  func.func @transform_0(%arg0: i32) -> (i32, i32, i32) {
    %c0_i32 = arith.constant 0 : i32
    %c0_i32_0 = arith.constant 0 : i32
    %c0_i32_1 = arith.constant 0 : i32
    return %arg0, %c0_i32, %c0_i32_0 : i32, i32, i32
  }
  func.func @transform_1(%arg0: i32) -> (i32, i32) {
    %c0_i32 = arith.constant 0 : i32
    %c0_i32_0 = arith.constant 0 : i32
    return %arg0, %c0_i32 : i32, i32
  }
}

module attributes {stable_mosaic.version = 11 : i64} {
  func.func @_lin1_pose_fused_kernel(%arg0: i32, %arg1: memref<32x128xbf16, #tpu.memory_space<vmem>>, %arg2: memref<32x128xbf16, #tpu.memory_space<vmem>>, %arg3: memref<32x8xf32, #tpu.memory_space<vmem>>, %arg4: memref<128x128xbf16, #tpu.memory_space<vmem>>, %arg5: memref<128x128xbf16, #tpu.memory_space<vmem>>, %arg6: memref<2x128xf32, #tpu.memory_space<vmem>>, %arg7: memref<8x128xf32, #tpu.memory_space<vmem>>, %arg8: memref<1x128xf32, #tpu.memory_space<vmem>>, %arg9: memref<32x128xbf16, #tpu.memory_space<vmem>>) attributes {dimension_semantics = [#tpu.dimension_semantics<parallel>], iteration_bounds = array<i64: 1>, scalar_prefetch = 0 : i64, scratch_operands = 0 : i64, tpu.core_type = #tpu.core_type<tc>, window_params = [{pipeline_mode = #tpu.pipeline_mode<synchronous>, transform_indices = @transform_0, window_bounds = array<i64: 32, 128>}, {pipeline_mode = #tpu.pipeline_mode<synchronous>, transform_indices = @transform_1, window_bounds = array<i64: 32, 128>}, {pipeline_mode = #tpu.pipeline_mode<synchronous>, transform_indices = @transform_2, window_bounds = array<i64: 32, 8>}, {pipeline_mode = #tpu.pipeline_mode<synchronous>, transform_indices = @transform_3, window_bounds = array<i64: 128, 128>}, {pipeline_mode = #tpu.pipeline_mode<synchronous>, transform_indices = @transform_4, window_bounds = array<i64: 128, 128>}, {pipeline_mode = #tpu.pipeline_mode<synchronous>, transform_indices = @transform_5, window_bounds = array<i64: 2, 128>}, {pipeline_mode = #tpu.pipeline_mode<synchronous>, transform_indices = @transform_6, window_bounds = array<i64: 8, 128>}, {pipeline_mode = #tpu.pipeline_mode<synchronous>, transform_indices = @transform_7, window_bounds = array<i64: 1, 128>}, {pipeline_mode = #tpu.pipeline_mode<synchronous>, transform_indices = @transform_8, window_bounds = array<i64: 32, 128>}]} {
    %c0 = arith.constant 0 : index
    %c0_0 = arith.constant 0 : index
    %0 = vector.load %arg1[%c0, %c0_0] : memref<32x128xbf16, #tpu.memory_space<vmem>>, vector<32x128xbf16>
    %c0_1 = arith.constant 0 : index
    %c0_2 = arith.constant 0 : index
    %1 = vector.load %arg4[%c0_1, %c0_2] : memref<128x128xbf16, #tpu.memory_space<vmem>>, vector<128x128xbf16>
    %cst = arith.constant dense<0.000000e+00> : vector<32x128xf32>
    %2 = tpu.matmul %0, %1, %cst {dimension_numbers = #tpu.dot_dimension_numbers<[1], [0], [0], [1], [0, 0, 1, 1], [], []>} : vector<32x128xbf16>, vector<128x128xbf16>, vector<32x128xf32> -> vector<32x128xf32>
    %c0_3 = arith.constant 0 : index
    %c0_4 = arith.constant 0 : index
    %3 = vector.load %arg2[%c0_3, %c0_4] : memref<32x128xbf16, #tpu.memory_space<vmem>>, vector<32x128xbf16>
    %c0_5 = arith.constant 0 : index
    %c0_6 = arith.constant 0 : index
    %4 = vector.load %arg5[%c0_5, %c0_6] : memref<128x128xbf16, #tpu.memory_space<vmem>>, vector<128x128xbf16>
    %cst_7 = arith.constant dense<0.000000e+00> : vector<32x128xf32>
    %5 = tpu.matmul %3, %4, %cst_7 {dimension_numbers = #tpu.dot_dimension_numbers<[1], [0], [0], [1], [0, 0, 1, 1], [], []>} : vector<32x128xbf16>, vector<128x128xbf16>, vector<32x128xf32> -> vector<32x128xf32>
    %6 = arith.addf %2, %5 : vector<32x128xf32>
    %cst_8 = arith.constant dense<0.000000e+00> : vector<128xf32>
    %7 = vector.multi_reduction <add>, %6, %cst_8 [0] : vector<32x128xf32> to vector<128xf32>
    %8 = vector.shape_cast %7 : vector<128xf32> to vector<1x128xf32>
    %9 = arith.mulf %6, %6 : vector<32x128xf32>
    %cst_9 = arith.constant dense<0.000000e+00> : vector<128xf32>
    %10 = vector.multi_reduction <add>, %9, %cst_9 [0] : vector<32x128xf32> to vector<128xf32>
    %11 = vector.shape_cast %10 : vector<128xf32> to vector<1x128xf32>
    %c0_10 = arith.constant 0 : index
    %c0_11 = arith.constant 0 : index
    %12 = vector.load %arg6[%c0_10, %c0_11] : memref<2x128xf32, #tpu.memory_space<vmem>>, vector<1x128xf32>
    %c1 = arith.constant 1 : index
    %c0_12 = arith.constant 0 : index
    %13 = vector.load %arg6[%c1, %c0_12] : memref<2x128xf32, #tpu.memory_space<vmem>>, vector<1x128xf32>
    %cst_13 = arith.constant 3.125000e-02 : f32
    %14 = vector.broadcast %cst_13 : f32 to vector<1x128xf32>
    %15 = arith.mulf %8, %14 : vector<1x128xf32>
    %cst_14 = arith.constant 3.125000e-02 : f32
    %16 = vector.broadcast %cst_14 : f32 to vector<1x128xf32>
    %17 = arith.mulf %11, %16 : vector<1x128xf32>
    %18 = arith.mulf %15, %15 : vector<1x128xf32>
    %19 = arith.subf %17, %18 : vector<1x128xf32>
    %cst_15 = arith.constant 0.000000e+00 : f32
    %20 = vector.broadcast %cst_15 : f32 to vector<1x128xf32>
    %21 = arith.maximumf %19, %20 : vector<1x128xf32>
    %cst_16 = arith.constant 9.99999974E-6 : f32
    %22 = vector.broadcast %cst_16 : f32 to vector<1x128xf32>
    %23 = arith.addf %21, %22 : vector<1x128xf32>
    %24 = math.rsqrt %23 : vector<1x128xf32>
    %25 = arith.mulf %12, %24 : vector<1x128xf32>
    %26 = arith.mulf %15, %25 : vector<1x128xf32>
    %27 = arith.subf %13, %26 : vector<1x128xf32>
    %28 = vector.broadcast %25 : vector<1x128xf32> to vector<32x128xf32>
    %29 = arith.mulf %6, %28 : vector<32x128xf32>
    %30 = vector.broadcast %27 : vector<1x128xf32> to vector<32x128xf32>
    %31 = arith.addf %29, %30 : vector<32x128xf32>
    %cst_17 = arith.constant 0.000000e+00 : f32
    %32 = vector.broadcast %cst_17 : f32 to vector<32x128xf32>
    %33 = arith.maximumf %31, %32 : vector<32x128xf32>
    %c0_18 = arith.constant 0 : index
    %c0_19 = arith.constant 0 : index
    %34 = vector.load %arg3[%c0_18, %c0_19] : memref<32x8xf32, #tpu.memory_space<vmem>>, vector<32x8xf32>
    %c0_20 = arith.constant 0 : index
    %c0_21 = arith.constant 0 : index
    %35 = vector.load %arg7[%c0_20, %c0_21] : memref<8x128xf32, #tpu.memory_space<vmem>>, vector<8x128xf32>
    %cst_22 = arith.constant dense<0.000000e+00> : vector<32x128xf32>
    %36 = tpu.matmul %34, %35, %cst_22 {dimension_numbers = #tpu.dot_dimension_numbers<[1], [0], [0], [1], [0, 0, 1, 1], [], []>} : vector<32x8xf32>, vector<8x128xf32>, vector<32x128xf32> -> vector<32x128xf32>
    %c0_23 = arith.constant 0 : index
    %c0_24 = arith.constant 0 : index
    %37 = vector.load %arg8[%c0_23, %c0_24] : memref<1x128xf32, #tpu.memory_space<vmem>>, vector<1x128xf32>
    %38 = vector.broadcast %37 : vector<1x128xf32> to vector<32x128xf32>
    %39 = arith.addf %36, %38 : vector<32x128xf32>
    %40 = math.sin %39 : vector<32x128xf32>
    %41 = arith.addf %33, %40 : vector<32x128xf32>
    %42 = arith.mulf %41, %40 : vector<32x128xf32>
    %43 = arith.truncf %42 : vector<32x128xf32> to vector<32x128xbf16>
    %c0_25 = arith.constant 0 : index
    %c0_26 = arith.constant 0 : index
    %44 = vector.load %arg9[%c0_25, %c0_26] : memref<32x128xbf16, #tpu.memory_space<vmem>>, vector<32x128xbf16>
    tpu.vector_store %arg9[%c0_25, %c0_26], %43 {strides = array<i32>} : memref<32x128xbf16, #tpu.memory_space<vmem>>, vector<32x128xbf16>,
    return
  }
  func.func @transform_0(%arg0: i32) -> (i32, i32) {
    %c0_i32 = arith.constant 0 : i32
    %c0_i32_0 = arith.constant 0 : i32
    %c0_i32_1 = arith.constant 0 : i32
    return %c0_i32, %c0_i32_0 : i32, i32
  }
  func.func @transform_1(%arg0: i32) -> (i32, i32) {
    %c0_i32 = arith.constant 0 : i32
    %c0_i32_0 = arith.constant 0 : i32
    %c0_i32_1 = arith.constant 0 : i32
    return %c0_i32, %c0_i32_0 : i32, i32
  }
  func.func @transform_2(%arg0: i32) -> (i32, i32) {
    %c0_i32 = arith.constant 0 : i32
    %c0_i32_0 = arith.constant 0 : i32
    %c0_i32_1 = arith.constant 0 : i32
    return %c0_i32, %c0_i32_0 : i32, i32
  }
  func.func @transform_3(%arg0: i32) -> (i32, i32) {
    %c0_i32 = arith.constant 0 : i32
    %c0_i32_0 = arith.constant 0 : i32
    %c0_i32_1 = arith.constant 0 : i32
    return %c0_i32, %c0_i32_0 : i32, i32
  }
  func.func @transform_4(%arg0: i32) -> (i32, i32) {
    %c0_i32 = arith.constant 0 : i32
    %c0_i32_0 = arith.constant 0 : i32
    %c0_i32_1 = arith.constant 0 : i32
    return %c0_i32, %c0_i32_0 : i32, i32
  }
  func.func @transform_5(%arg0: i32) -> (i32, i32) {
    %c0_i32 = arith.constant 0 : i32
    %c0_i32_0 = arith.constant 0 : i32
    %c0_i32_1 = arith.constant 0 : i32
    return %c0_i32, %c0_i32_0 : i32, i32
  }
  func.func @transform_6(%arg0: i32) -> (i32, i32) {
    %c0_i32 = arith.constant 0 : i32
    %c0_i32_0 = arith.constant 0 : i32
    %c0_i32_1 = arith.constant 0 : i32
    return %c0_i32, %c0_i32_0 : i32, i32
  }
  func.func @transform_7(%arg0: i32) -> (i32, i32) {
    %c0_i32 = arith.constant 0 : i32
    %c0_i32_0 = arith.constant 0 : i32
    %c0_i32_1 = arith.constant 0 : i32
    return %c0_i32, %c0_i32_0 : i32, i32
  }
  func.func @transform_8(%arg0: i32) -> (i32, i32) {
    %c0_i32 = arith.constant 0 : i32
    %c0_i32_0 = arith.constant 0 : i32
    %c0_i32_1 = arith.constant 0 : i32
    return %c0_i32, %c0_i32_0 : i32, i32
  }
}

module attributes {stable_mosaic.version = 11 : i64} {
  func.func @_lin2_fused_kernel(%arg0: i32, %arg1: memref<32x128xbf16, #tpu.memory_space<vmem>>, %arg2: memref<128x128xbf16, #tpu.memory_space<vmem>>, %arg3: memref<2x128xf32, #tpu.memory_space<vmem>>, %arg4: memref<128x128xbf16, #tpu.memory_space<vmem>>, %arg5: memref<2x128xf32, #tpu.memory_space<vmem>>, %arg6: memref<32x128xbf16, #tpu.memory_space<vmem>>) attributes {dimension_semantics = [#tpu.dimension_semantics<parallel>], iteration_bounds = array<i64: 1>, scalar_prefetch = 0 : i64, scratch_operands = 0 : i64, tpu.core_type = #tpu.core_type<tc>, window_params = [{pipeline_mode = #tpu.pipeline_mode<synchronous>, transform_indices = @transform_0, window_bounds = array<i64: 32, 128>}, {pipeline_mode = #tpu.pipeline_mode<synchronous>, transform_indices = @transform_1, window_bounds = array<i64: 128, 128>}, {pipeline_mode = #tpu.pipeline_mode<synchronous>, transform_indices = @transform_2, window_bounds = array<i64: 2, 128>}, {pipeline_mode = #tpu.pipeline_mode<synchronous>, transform_indices = @transform_3, window_bounds = array<i64: 128, 128>}, {pipeline_mode = #tpu.pipeline_mode<synchronous>, transform_indices = @transform_4, window_bounds = array<i64: 2, 128>}, {pipeline_mode = #tpu.pipeline_mode<synchronous>, transform_indices = @transform_5, window_bounds = array<i64: 32, 128>}]} {
    %c0 = arith.constant 0 : index
    %c0_0 = arith.constant 0 : index
    %0 = vector.load %arg1[%c0, %c0_0] : memref<32x128xbf16, #tpu.memory_space<vmem>>, vector<32x128xbf16>
    %c0_1 = arith.constant 0 : index
    %c0_2 = arith.constant 0 : index
    %1 = vector.load %arg2[%c0_1, %c0_2] : memref<128x128xbf16, #tpu.memory_space<vmem>>, vector<128x128xbf16>
    %cst = arith.constant dense<0.000000e+00> : vector<32x128xf32>
    %2 = tpu.matmul %0, %1, %cst {dimension_numbers = #tpu.dot_dimension_numbers<[1], [0], [0], [1], [0, 0, 1, 1], [], []>} : vector<32x128xbf16>, vector<128x128xbf16>, vector<32x128xf32> -> vector<32x128xf32>
    %cst_3 = arith.constant dense<0.000000e+00> : vector<128xf32>
    %3 = vector.multi_reduction <add>, %2, %cst_3 [0] : vector<32x128xf32> to vector<128xf32>
    %4 = vector.shape_cast %3 : vector<128xf32> to vector<1x128xf32>
    %5 = arith.mulf %2, %2 : vector<32x128xf32>
    %cst_4 = arith.constant dense<0.000000e+00> : vector<128xf32>
    %6 = vector.multi_reduction <add>, %5, %cst_4 [0] : vector<32x128xf32> to vector<128xf32>
    %7 = vector.shape_cast %6 : vector<128xf32> to vector<1x128xf32>
    %c0_5 = arith.constant 0 : index
    %c0_6 = arith.constant 0 : index
    %8 = vector.load %arg3[%c0_5, %c0_6] : memref<2x128xf32, #tpu.memory_space<vmem>>, vector<1x128xf32>
    %c1 = arith.constant 1 : index
    %c0_7 = arith.constant 0 : index
    %9 = vector.load %arg3[%c1, %c0_7] : memref<2x128xf32, #tpu.memory_space<vmem>>, vector<1x128xf32>
    %cst_8 = arith.constant 3.125000e-02 : f32
    %10 = vector.broadcast %cst_8 : f32 to vector<1x128xf32>
    %11 = arith.mulf %4, %10 : vector<1x128xf32>
    %cst_9 = arith.constant 3.125000e-02 : f32
    %12 = vector.broadcast %cst_9 : f32 to vector<1x128xf32>
    %13 = arith.mulf %7, %12 : vector<1x128xf32>
    %14 = arith.mulf %11, %11 : vector<1x128xf32>
    %15 = arith.subf %13, %14 : vector<1x128xf32>
    %cst_10 = arith.constant 0.000000e+00 : f32
    %16 = vector.broadcast %cst_10 : f32 to vector<1x128xf32>
    %17 = arith.maximumf %15, %16 : vector<1x128xf32>
    %cst_11 = arith.constant 9.99999974E-6 : f32
    %18 = vector.broadcast %cst_11 : f32 to vector<1x128xf32>
    %19 = arith.addf %17, %18 : vector<1x128xf32>
    %20 = math.rsqrt %19 : vector<1x128xf32>
    %21 = arith.mulf %8, %20 : vector<1x128xf32>
    %22 = arith.mulf %11, %21 : vector<1x128xf32>
    %23 = arith.subf %9, %22 : vector<1x128xf32>
    %24 = vector.broadcast %21 : vector<1x128xf32> to vector<32x128xf32>
    %25 = arith.mulf %2, %24 : vector<32x128xf32>
    %26 = vector.broadcast %23 : vector<1x128xf32> to vector<32x128xf32>
    %27 = arith.addf %25, %26 : vector<32x128xf32>
    %cst_12 = arith.constant 0.000000e+00 : f32
    %28 = vector.broadcast %cst_12 : f32 to vector<32x128xf32>
    %29 = arith.maximumf %27, %28 : vector<32x128xf32>
    %30 = arith.truncf %29 : vector<32x128xf32> to vector<32x128xbf16>
    %c0_13 = arith.constant 0 : index
    %c0_14 = arith.constant 0 : index
    %31 = vector.load %arg4[%c0_13, %c0_14] : memref<128x128xbf16, #tpu.memory_space<vmem>>, vector<128x128xbf16>
    %cst_15 = arith.constant dense<0.000000e+00> : vector<32x128xf32>
    %32 = tpu.matmul %30, %31, %cst_15 {dimension_numbers = #tpu.dot_dimension_numbers<[1], [0], [0], [1], [0, 0, 1, 1], [], []>} : vector<32x128xbf16>, vector<128x128xbf16>, vector<32x128xf32> -> vector<32x128xf32>
    %cst_16 = arith.constant dense<0.000000e+00> : vector<128xf32>
    %33 = vector.multi_reduction <add>, %32, %cst_16 [0] : vector<32x128xf32> to vector<128xf32>
    %34 = vector.shape_cast %33 : vector<128xf32> to vector<1x128xf32>
    %35 = arith.mulf %32, %32 : vector<32x128xf32>
    %cst_17 = arith.constant dense<0.000000e+00> : vector<128xf32>
    %36 = vector.multi_reduction <add>, %35, %cst_17 [0] : vector<32x128xf32> to vector<128xf32>
    %37 = vector.shape_cast %36 : vector<128xf32> to vector<1x128xf32>
    %c0_18 = arith.constant 0 : index
    %c0_19 = arith.constant 0 : index
    %38 = vector.load %arg5[%c0_18, %c0_19] : memref<2x128xf32, #tpu.memory_space<vmem>>, vector<1x128xf32>
    %c1_20 = arith.constant 1 : index
    %c0_21 = arith.constant 0 : index
    %39 = vector.load %arg5[%c1_20, %c0_21] : memref<2x128xf32, #tpu.memory_space<vmem>>, vector<1x128xf32>
    %cst_22 = arith.constant 3.125000e-02 : f32
    %40 = vector.broadcast %cst_22 : f32 to vector<1x128xf32>
    %41 = arith.mulf %34, %40 : vector<1x128xf32>
    %cst_23 = arith.constant 3.125000e-02 : f32
    %42 = vector.broadcast %cst_23 : f32 to vector<1x128xf32>
    %43 = arith.mulf %37, %42 : vector<1x128xf32>
    %44 = arith.mulf %41, %41 : vector<1x128xf32>
    %45 = arith.subf %43, %44 : vector<1x128xf32>
    %cst_24 = arith.constant 0.000000e+00 : f32
    %46 = vector.broadcast %cst_24 : f32 to vector<1x128xf32>
    %47 = arith.maximumf %45, %46 : vector<1x128xf32>
    %cst_25 = arith.constant 9.99999974E-6 : f32
    %48 = vector.broadcast %cst_25 : f32 to vector<1x128xf32>
    %49 = arith.addf %47, %48 : vector<1x128xf32>
    %50 = math.rsqrt %49 : vector<1x128xf32>
    %51 = arith.mulf %38, %50 : vector<1x128xf32>
    %52 = arith.mulf %41, %51 : vector<1x128xf32>
    %53 = arith.subf %39, %52 : vector<1x128xf32>
    %54 = vector.broadcast %51 : vector<1x128xf32> to vector<32x128xf32>
    %55 = arith.mulf %32, %54 : vector<32x128xf32>
    %56 = vector.broadcast %53 : vector<1x128xf32> to vector<32x128xf32>
    %57 = arith.addf %55, %56 : vector<32x128xf32>
    %58 = arith.extf %0 : vector<32x128xbf16> to vector<32x128xf32>
    %59 = arith.addf %57, %58 : vector<32x128xf32>
    %cst_26 = arith.constant 0.000000e+00 : f32
    %60 = vector.broadcast %cst_26 : f32 to vector<32x128xf32>
    %61 = arith.maximumf %59, %60 : vector<32x128xf32>
    %62 = arith.truncf %61 : vector<32x128xf32> to vector<32x128xbf16>
    %c0_27 = arith.constant 0 : index
    %c0_28 = arith.constant 0 : index
    %63 = vector.load %arg6[%c0_27, %c0_28] : memref<32x128xbf16, #tpu.memory_space<vmem>>, vector<32x128xbf16>
    tpu.vector_store %arg6[%c0_27, %c0_28], %62 {strides = array<i32>} : memref<32x128xbf16, #tpu.memory_space<vmem>>, vector<32x128xbf16>,
    return
  }
  func.func @transform_0(%arg0: i32) -> (i32, i32) {
    %c0_i32 = arith.constant 0 : i32
    %c0_i32_0 = arith.constant 0 : i32
    %c0_i32_1 = arith.constant 0 : i32
    return %c0_i32, %c0_i32_0 : i32, i32
  }
  func.func @transform_1(%arg0: i32) -> (i32, i32) {
    %c0_i32 = arith.constant 0 : i32
    %c0_i32_0 = arith.constant 0 : i32
    %c0_i32_1 = arith.constant 0 : i32
    return %c0_i32, %c0_i32_0 : i32, i32
  }
  func.func @transform_2(%arg0: i32) -> (i32, i32) {
    %c0_i32 = arith.constant 0 : i32
    %c0_i32_0 = arith.constant 0 : i32
    %c0_i32_1 = arith.constant 0 : i32
    return %c0_i32, %c0_i32_0 : i32, i32
  }
  func.func @transform_3(%arg0: i32) -> (i32, i32) {
    %c0_i32 = arith.constant 0 : i32
    %c0_i32_0 = arith.constant 0 : i32
    %c0_i32_1 = arith.constant 0 : i32
    return %c0_i32, %c0_i32_0 : i32, i32
  }
  func.func @transform_4(%arg0: i32) -> (i32, i32) {
    %c0_i32 = arith.constant 0 : i32
    %c0_i32_0 = arith.constant 0 : i32
    %c0_i32_1 = arith.constant 0 : i32
    return %c0_i32, %c0_i32_0 : i32, i32
  }
  func.func @transform_5(%arg0: i32) -> (i32, i32) {
    %c0_i32 = arith.constant 0 : i32
    %c0_i32_0 = arith.constant 0 : i32
    %c0_i32_1 = arith.constant 0 : i32
    return %c0_i32, %c0_i32_0 : i32, i32
  }
}

module attributes {stable_mosaic.version = 11 : i64} {
  func.func @_pool_kernel(%arg0: i32, %arg1: memref<8x4x128xbf16, #tpu.memory_space<vmem>>, %arg2: memref<8x128xf32, #tpu.memory_space<vmem>>) attributes {dimension_semantics = [#tpu.dimension_semantics<parallel>], iteration_bounds = array<i64: 1>, scalar_prefetch = 0 : i64, scratch_operands = 0 : i64, tpu.core_type = #tpu.core_type<tc>, window_params = [{transform_indices = @transform_0, window_bounds = array<i64: 8, 4, 128>}, {transform_indices = @transform_1, window_bounds = array<i64: 8, 128>}]} {
    %c0 = arith.constant 0 : index
    %c0_0 = arith.constant 0 : index
    %c0_1 = arith.constant 0 : index
    %0 = vector.load %arg1[%c0, %c0_0, %c0_1] : memref<8x4x128xbf16, #tpu.memory_space<vmem>>, vector<8x4x128xbf16>
    %1 = arith.extf %0 : vector<8x4x128xbf16> to vector<8x4x128xf32>
    %cst = arith.constant dense<0xFF800000> : vector<8x128xf32>
    %2 = vector.multi_reduction <maximumf>, %1, %cst [1] : vector<8x4x128xf32> to vector<8x128xf32>
    %cst_2 = arith.constant dense<0.000000e+00> : vector<8x128xf32>
    %3 = vector.multi_reduction <add>, %1, %cst_2 [1] : vector<8x4x128xf32> to vector<8x128xf32>
    %cst_3 = arith.constant 4.000000e+00 : f32
    %4 = vector.broadcast %cst_3 : f32 to vector<8x128xf32>
    %5 = arith.divf %3, %4 : vector<8x128xf32>
    %6 = arith.addf %2, %5 : vector<8x128xf32>
    %c0_4 = arith.constant 0 : index
    %c0_5 = arith.constant 0 : index
    %7 = vector.load %arg2[%c0_4, %c0_5] : memref<8x128xf32, #tpu.memory_space<vmem>>, vector<8x128xf32>
    tpu.vector_store %arg2[%c0_4, %c0_5], %6 {strides = array<i32>} : memref<8x128xf32, #tpu.memory_space<vmem>>, vector<8x128xf32>,
    return
  }
  func.func @transform_0(%arg0: i32) -> (i32, i32, i32) {
    %c0_i32 = arith.constant 0 : i32
    %c0_i32_0 = arith.constant 0 : i32
    %c0_i32_1 = arith.constant 0 : i32
    return %arg0, %c0_i32, %c0_i32_0 : i32, i32, i32
  }
  func.func @transform_1(%arg0: i32) -> (i32, i32) {
    %c0_i32 = arith.constant 0 : i32
    %c0_i32_0 = arith.constant 0 : i32
    return %arg0, %c0_i32 : i32, i32
  }
}

module attributes {stable_mosaic.version = 11 : i64} {
  func.func @_pool_kernel(%arg0: i32, %arg1: memref<2x4x128xf32, #tpu.memory_space<vmem>>, %arg2: memref<2x128xf32, #tpu.memory_space<vmem>>) attributes {dimension_semantics = [#tpu.dimension_semantics<parallel>], iteration_bounds = array<i64: 1>, scalar_prefetch = 0 : i64, scratch_operands = 0 : i64, tpu.core_type = #tpu.core_type<tc>, window_params = [{transform_indices = @transform_0, window_bounds = array<i64: 2, 4, 128>}, {transform_indices = @transform_1, window_bounds = array<i64: 2, 128>}]} {
    %c0 = arith.constant 0 : index
    %c0_0 = arith.constant 0 : index
    %c0_1 = arith.constant 0 : index
    %0 = vector.load %arg1[%c0, %c0_0, %c0_1] : memref<2x4x128xf32, #tpu.memory_space<vmem>>, vector<2x4x128xf32>
    %cst = arith.constant dense<0xFF800000> : vector<2x128xf32>
    %1 = vector.multi_reduction <maximumf>, %0, %cst [1] : vector<2x4x128xf32> to vector<2x128xf32>
    %cst_2 = arith.constant dense<0.000000e+00> : vector<2x128xf32>
    %2 = vector.multi_reduction <add>, %0, %cst_2 [1] : vector<2x4x128xf32> to vector<2x128xf32>
    %cst_3 = arith.constant 4.000000e+00 : f32
    %3 = vector.broadcast %cst_3 : f32 to vector<2x128xf32>
    %4 = arith.divf %2, %3 : vector<2x128xf32>
    %5 = arith.addf %1, %4 : vector<2x128xf32>
    %c0_4 = arith.constant 0 : index
    %c0_5 = arith.constant 0 : index
    %6 = vector.load %arg2[%c0_4, %c0_5] : memref<2x128xf32, #tpu.memory_space<vmem>>, vector<2x128xf32>
    tpu.vector_store %arg2[%c0_4, %c0_5], %5 {strides = array<i32>} : memref<2x128xf32, #tpu.memory_space<vmem>>, vector<2x128xf32>,
    return
  }
  func.func @transform_0(%arg0: i32) -> (i32, i32, i32) {
    %c0_i32 = arith.constant 0 : i32
    %c0_i32_0 = arith.constant 0 : i32
    %c0_i32_1 = arith.constant 0 : i32
    return %arg0, %c0_i32, %c0_i32_0 : i32, i32, i32
  }
  func.func @transform_1(%arg0: i32) -> (i32, i32) {
    %c0_i32 = arith.constant 0 : i32
    %c0_i32_0 = arith.constant 0 : i32
    return %arg0, %c0_i32 : i32, i32
  }
}

</mosaic_0001>

<llo_original>
// kernel: custom-call.20
$region0: #{custom-call.20}
  %s0 = inlined_call_operand.vmem [shape: f32[2,16], index: 0, kind: output, shape index: {}]

// kernel: custom-call.21
$region0: #{custom-call.21}
  %s0 = inlined_call_operand.vmem [shape: f32[2,8], index: 0, kind: output, shape index: {}]

// kernel: neg.3
$region0: #{neg.3}
  #allocation0 [shape = 's32[1]{0}', space=sflag, size = 0x4, scoped, tag = 'scoped memory for neg.3']
  %s0 = inlined_call_operand.vmem [shape: f32[2,4,8], index: 0, kind: input, shape index: {}]
  %s1 = inlined_call_operand.vmem [shape: f32[2,4,8], index: 1, kind: output, shape index: {}]
  %v2 = vld [vmem:[%s0] sm:$0xf]
  %3 = xla_tuple %v2
  %4 = xla_tuple %3
  %v5 = vxor.u32 %v2, 2147483648
  %6 = xla_tuple %v5
  %7 = vst [vmem:[%s1] sm:$0xf] %v5
  %s8 = scalar_lea.vmem %s0, 4
  %v9 = vld [vmem:[%s8] sm:$0xf]
  %10 = xla_tuple %v9
  %11 = xla_tuple %10
  %v12 = vxor.u32 %v9, 2147483648
  %13 = xla_tuple %v12
  %s14 = scalar_lea.vmem %s1, 4
  %15 = vst [vmem:[%s14] sm:$0xf] %v12

// kernel: neg.2
$region0: #{neg.2}
  #allocation0 [shape = 's32[1]{0}', space=sflag, size = 0x4, scoped, tag = 'scoped memory for neg.2']
  %s0 = inlined_call_operand.vmem [shape: f32[2,8,16], index: 0, kind: input, shape index: {}]
  %s1 = inlined_call_operand.vmem [shape: f32[2,8,16], index: 1, kind: output, shape index: {}]
  %v2 = vld [vmem:[%s0] sm:$0xff]
  %3 = xla_tuple %v2
  %4 = xla_tuple %3
  %v5 = vxor.u32 %v2, 2147483648
  %6 = xla_tuple %v5
  %7 = vst [vmem:[%s1] sm:$0xff] %v5
  %s8 = scalar_lea.vmem %s0, 8
  %v9 = vld [vmem:[%s8] sm:$0xff]
  %10 = xla_tuple %v9
  %11 = xla_tuple %10
  %v12 = vxor.u32 %v9, 2147483648
  %13 = xla_tuple %v12
  %s14 = scalar_lea.vmem %s1, 8
  %15 = vst [vmem:[%s14] sm:$0xff] %v12

// kernel: encp_forward.8
$region0: #{encp_forward.8}
  #allocation0 [shape = 'u32[]', space=smem, size = 0x4, offset = 0x4, fixed_abs, tag = 'smem constant byte address 0x4 - core index']
  #allocation1 [shape = 'u32[72,128]{1,0:T(1,128)}', space=vmem, size = 0x9000, scoped, tag = 'internal scratch']
  %s0 = inlined_call_operand.vmem [shape: f32[32,8], index: 0, kind: input, shape index: {}]
  %s1 = inlined_call_operand.vmem [shape: bf16[8,128], index: 1, kind: input, shape index: {}]
  %s2 = inlined_call_operand.vmem [shape: f32[2,128], index: 2, kind: input, shape index: {}]
  %s3 = inlined_call_operand.vmem [shape: bf16[32,128], index: 3, kind: output, shape index: {}]
  %s4 = sld [smem:[#allocation0]]
  $region22: #{encp_forward.8} parent=0
    _
  %s6 = ssub.s32 1, %s4
  %s7 = scalar_select 0, %s6, %s4
  // Predicated region
  $region2: #{encp_forward.8} parent=0 // pred_check
    _
  $region3: #{encp_forward.8} parent=0 // pred_check_branch
    %9 = sbr.rel (0) target = $region5
  $region4: #{encp_forward.8} parent=0 // pred_region
    _
  $region5: #{encp_forward.8} parent=0 // pred_fallthru
    _
  // Predicated region
  $region6: #{encp_forward.8} parent=0 // pred_check
    _
  $region7: #{encp_forward.8} parent=0 // pred_check_branch
    %11 = sbr.rel (0) target = $region9
  $region8: #{encp_forward.8} parent=0 // pred_region
    _
  $region9: #{encp_forward.8} parent=0 // pred_fallthru
    _
  // Predicated region
  $region10: #{encp_forward.8} parent=0 // pred_check
    _
  $region11: #{encp_forward.8} parent=0 // pred_check_branch
    %13 = sbr.rel (0) target = $region13
  $region12: #{encp_forward.8} parent=0 // pred_region
    _
  $region13: #{encp_forward.8} parent=0 // pred_fallthru
    _
  %v15 = vld [vmem:[%s0] sm:$0xff]
  %v16 = vld [vmem:[%s0 + $0x8] sm:$0xff]
  %v17 = vld [vmem:[%s0 + $0x10] sm:$0xff]
  %v18 = vld [vmem:[%s0 + $0x18] sm:$0xff]
  %v19 = vpack.c.bf16 %v16, %v15
  %v20 = vpack.c.bf16 %v18, %v17
  %v21 = vld [vmem:[%s1] sm:$0xf]
  %vm22 = vcmask 64512
  %v24 = vsel %vm22, %v19, 0
  %v27 = vsel %vm22, %v20, 0
  %vm29 = vcmask 1043456
  %v31 = vsel %vm29, %v21, 0
  %33 = vmatpush.bf16.msra.mxu0 0
  %34 = vmatpush.bf16.msra.mxu0 0
  %35 = vmatpush.bf16.msra.mxu0 0
  %36 = vmatpush.bf16.msra.mxu0 0
  %37 = vmatpush.bf16.msra.mxu0 0
  %38 = vmatpush.bf16.msra.mxu0 0
  %39 = vmatpush.bf16.msra.mxu0 0
  %40 = vmatpush.bf16.msra.mxu0 %v31
  %41 = vmatmul.bf16.gmra.mxu0 %v24
  %v42 = vpop.f32.mrf.mxu0
  %v43 = vadd.f32 0.0, %v42
  %v44 = vpop.f32.mrf.mxu0
  %v45 = vadd.f32 0.0, %v44
  %46 = vmatmul.bf16.gmra.mxu0 %v27
  %v47 = vpop.f32.mrf.mxu0
  %v48 = vadd.f32 0.0, %v47
  %v49 = vpop.f32.mrf.mxu0
  %v50 = vadd.f32 0.0, %v49
  %51 = vdwg.mxu0
  %v52 = vadd.f32 %v43, %v45
  %v53 = vadd.f32 %v52, %v48
  %v54 = vadd.f32 %v53, %v50
  %v55 = vrot.slane %v54, 4
  %v56 = vadd.f32 %v54, %v55
  %v57 = vrot.slane %v56, 2
  %v58 = vadd.f32 %v56, %v57
  %v59 = vrot.slane %v58, 1
  %v60 = vadd.f32 %v58, %v59
  %v61 = vmul.f32 %v43, %v43
  %v62 = vmul.f32 %v45, %v45
  %v63 = vmul.f32 %v48, %v48
  %v64 = vmul.f32 %v50, %v50
  %v65 = vadd.f32 %v61, %v62
  %v66 = vadd.f32 %v65, %v63
  %v67 = vadd.f32 %v66, %v64
  %v68 = vrot.slane %v67, 4
  %v69 = vadd.f32 %v67, %v68
  %v70 = vrot.slane %v69, 2
  %v71 = vadd.f32 %v69, %v70
  %v72 = vrot.slane %v71, 1
  %v73 = vadd.f32 %v71, %v72
  %v74 = vld [vmem:[%s2] sm:$0x1]
  %v75 = vld [vmem:[%s2 + $0x1] sm:$0x1]
  %v76 = vmul.f32 %v60, 0.03125
  %v77 = vmul.f32 %v73, 0.03125
  %v78 = vmul.f32 %v76, %v76
  %v79 = vsub.f32 %v77, %v78
  %v80 = vmax.f32 %v79, 0.0
  %v81 = vadd.f32 %v80, 1e-05
  %v82 = vrsqrt.pop %v81
  %v83 = vmul.f32 %v82, %v81
  %v84 = vmul.f32 %v83, %v82
  %v85 = vmul.f32 0.5, %v84
  %v86 = vsub.f32 1.5, %v85
  %v87 = vmul.f32 %v82, %v86
  %vm88 = vweird.f32 %v81
  %vm89 = vweird.f32 %v82
  %vm90 = vmor %vm88, %vm89
  %v91 = vsel %vm90, %v82, %v87
  %v92 = vmul.f32 %v74, %v91
  %v93 = vmul.f32 %v76, %v92
  %v94 = vsub.f32 %v75, %v93
  %v95 = vperm.slane %v92, 0
  %v96 = vmul.f32 %v43, %v95
  %v97 = vmul.f32 %v45, %v95
  %v98 = vmul.f32 %v48, %v95
  %v99 = vmul.f32 %v50, %v95
  %v100 = vperm.slane %v94, 0
  %v101 = vadd.f32 %v96, %v100
  %v102 = vadd.f32 %v97, %v100
  %v103 = vadd.f32 %v98, %v100
  %v104 = vadd.f32 %v99, %v100
  %v105 = vmax.f32 %v101, 0.0
  %v106 = vmax.f32 %v102, 0.0
  %v107 = vmax.f32 %v103, 0.0
  %v108 = vmax.f32 %v104, 0.0
  %v109 = vpack.c.bf16 %v105, %v105
  %v110 = vpack.c.bf16 %v106, %v106
  %v111 = vpack.c.bf16 %v107, %v107
  %v112 = vpack.c.bf16 %v108, %v108
  %113 = vst [vmem:[%s3] sm:$0xf] %v109
  %114 = vst [vmem:[%s3 + $0x4] sm:$0xf] %v110
  %115 = vst [vmem:[%s3 + $0x8] sm:$0xf] %v111
  %116 = vst [vmem:[%s3 + $0xc] sm:$0xf] %v112
  // Predicated region
  $region14: #{encp_forward.8} parent=0 // pred_check
    _
  $region15: #{encp_forward.8} parent=0 // pred_check_branch
    %118 = sbr.rel (0) target = $region17
  $region16: #{encp_forward.8} parent=0 // pred_region
    _
  $region17: #{encp_forward.8} parent=0 // pred_fallthru
    _
  // Predicated region
  $region18: #{encp_forward.8} parent=0 // pred_check
    _
  $region19: #{encp_forward.8} parent=0 // pred_check_branch
    %120 = sbr.rel (0) target = $region21
  $region20: #{encp_forward.8} parent=0 // pred_region
    _
  $region21: #{encp_forward.8} parent=0 // pred_fallthru
    _

// kernel: encp_forward.9
$region0: #{encp_forward.9}
  #allocation0 [shape = 'u32[]', space=smem, size = 0x4, offset = 0x4, fixed_abs, tag = 'smem constant byte address 0x4 - core index']
  #allocation1 [shape = 'u32[72,128]{1,0:T(1,128)}', space=vmem, size = 0x9000, scoped, tag = 'internal scratch']
  %s0 = inlined_call_operand.vmem [shape: bf16[64,128], index: 0, kind: input, shape index: {}]
  %s1 = inlined_call_operand.vmem [shape: bf16[64,128], index: 1, kind: input, shape index: {}]
  %s2 = inlined_call_operand.vmem [shape: f32[64,8], index: 2, kind: input, shape index: {}]
  %s3 = inlined_call_operand.vmem [shape: bf16[128,128], index: 3, kind: input, shape index: {}]
  %s4 = inlined_call_operand.vmem [shape: bf16[128,128], index: 4, kind: input, shape index: {}]
  %s5 = inlined_call_operand.vmem [shape: f32[2,128], index: 5, kind: input, shape index: {}]
  %s6 = inlined_call_operand.vmem [shape: f32[8,128], index: 6, kind: input, shape index: {}]
  %s7 = inlined_call_operand.vmem [shape: f32[1,128], index: 7, kind: input, shape index: {}]
  %s8 = inlined_call_operand.vmem [shape: bf16[64,128], index: 8, kind: output, shape index: {}]
  %s9 = sld [smem:[#allocation0]]
  $region42: #{encp_forward.9} parent=0
    _
  %s11 = ssub.s32 1, %s9
  %s12 = scalar_select 0, %s11, %s9
  // Predicated region
  $region2: #{encp_forward.9} parent=0 // pred_check
    _
  $region3: #{encp_forward.9} parent=0 // pred_check_branch
    %14 = sbr.rel (0) target = $region5
  $region4: #{encp_forward.9} parent=0 // pred_region
    _
  $region5: #{encp_forward.9} parent=0 // pred_fallthru
    _
  // Predicated region
  $region6: #{encp_forward.9} parent=0 // pred_check
    _
  $region7: #{encp_forward.9} parent=0 // pred_check_branch
    %16 = sbr.rel (0) target = $region9
  $region8: #{encp_forward.9} parent=0 // pred_region
    _
  $region9: #{encp_forward.9} parent=0 // pred_fallthru
    _
  // Predicated region
  $region10: #{encp_forward.9} parent=0 // pred_check
    _
  $region11: #{encp_forward.9} parent=0 // pred_check_branch
    %18 = sbr.rel (0) target = $region13
  $region12: #{encp_forward.9} parent=0 // pred_region
    _
  $region13: #{encp_forward.9} parent=0 // pred_fallthru
    _
  // Predicated region
  $region14: #{encp_forward.9} parent=0 // pred_check
    _
  $region15: #{encp_forward.9} parent=0 // pred_check_branch
    %20 = sbr.rel (0) target = $region17
  $region16: #{encp_forward.9} parent=0 // pred_region
    _
  $region17: #{encp_forward.9} parent=0 // pred_fallthru
    _
  // Predicated region
  $region18: #{encp_forward.9} parent=0 // pred_check
    _
  $region19: #{encp_forward.9} parent=0 // pred_check_branch
    %22 = sbr.rel (0) target = $region21
  $region20: #{encp_forward.9} parent=0 // pred_region
    _
  $region21: #{encp_forward.9} parent=0 // pred_fallthru
    _
  // Predicated region
  $region22: #{encp_forward.9} parent=0 // pred_check
    _
  $region23: #{encp_forward.9} parent=0 // pred_check_branch
    %24 = sbr.rel (0) target = $region25
  $region24: #{encp_forward.9} parent=0 // pred_region
    _
  $region25: #{encp_forward.9} parent=0 // pred_fallthru
    _
  // Predicated region
  $region26: #{encp_forward.9} parent=0 // pred_check
    _
  $region27: #{encp_forward.9} parent=0 // pred_check_branch
    %26 = sbr.rel (0) target = $region29
  $region28: #{encp_forward.9} parent=0 // pred_region
    _
  $region29: #{encp_forward.9} parent=0 // pred_fallthru
    _
  // Predicated region
  $region30: #{encp_forward.9} parent=0 // pred_check
    _
  $region31: #{encp_forward.9} parent=0 // pred_check_branch
    %28 = sbr.rel (0) target = $region33
  $region32: #{encp_forward.9} parent=0 // pred_region
    _
  $region33: #{encp_forward.9} parent=0 // pred_fallthru
    _
  %v29 = vld [vmem:[%s0] sm:$0xf]
  %v30 = vld [vmem:[%s0 + $0x4] sm:$0xf]
  %v31 = vld [vmem:[%s0 + $0x8] sm:$0xf]
  %v32 = vld [vmem:[%s0 + $0xc] sm:$0xf]
  %v33 = vld [vmem:[%s0 + $0x10] sm:$0xf]
  %v34 = vld [vmem:[%s0 + $0x14] sm:$0xf]
  %v35 = vld [vmem:[%s0 + $0x18] sm:$0xf]
  %v36 = vld [vmem:[%s0 + $0x1c] sm:$0xf]
  %v37 = vld [vmem:[%s3] sm:$0xf]
  %v38 = vld [vmem:[%s3 + $0x4] sm:$0xf]
  %v39 = vld [vmem:[%s3 + $0x8] sm:$0xf]
  %v40 = vld [vmem:[%s3 + $0xc] sm:$0xf]
  %v41 = vld [vmem:[%s3 + $0x10] sm:$0xf]
  %v42 = vld [vmem:[%s3 + $0x14] sm:$0xf]
  %v43 = vld [vmem:[%s3 + $0x18] sm:$0xf]
  %v44 = vld [vmem:[%s3 + $0x1c] sm:$0xf]
  %v45 = vld [vmem:[%s3 + $0x20] sm:$0xf]
  %v46 = vld [vmem:[%s3 + $0x24] sm:$0xf]
  %v47 = vld [vmem:[%s3 + $0x28] sm:$0xf]
  %v48 = vld [vmem:[%s3 + $0x2c] sm:$0xf]
  %v49 = vld [vmem:[%s3 + $0x30] sm:$0xf]
  %v50 = vld [vmem:[%s3 + $0x34] sm:$0xf]
  %v51 = vld [vmem:[%s3 + $0x38] sm:$0xf]
  %v52 = vld [vmem:[%s3 + $0x3c] sm:$0xf]
  %v53 = vld [vmem:[%s1] sm:$0xf]
  %v54 = vld [vmem:[%s1 + $0x4] sm:$0xf]
  %v55 = vld [vmem:[%s1 + $0x8] sm:$0xf]
  %v56 = vld [vmem:[%s1 + $0xc] sm:$0xf]
  %v57 = vld [vmem:[%s1 + $0x10] sm:$0xf]
  %v58 = vld [vmem:[%s1 + $0x14] sm:$0xf]
  %v59 = vld [vmem:[%s1 + $0x18] sm:$0xf]
  %v60 = vld [vmem:[%s1 + $0x1c] sm:$0xf]
  %v61 = vld [vmem:[%s4] sm:$0xf]
  %v62 = vld [vmem:[%s4 + $0x4] sm:$0xf]
  %v63 = vld [vmem:[%s4 + $0x8] sm:$0xf]
  %v64 = vld [vmem:[%s4 + $0xc] sm:$0xf]
  %v65 = vld [vmem:[%s4 + $0x10] sm:$0xf]
  %v66 = vld [vmem:[%s4 + $0x14] sm:$0xf]
  %v67 = vld [vmem:[%s4 + $0x18] sm:$0xf]
  %v68 = vld [vmem:[%s4 + $0x1c] sm:$0xf]
  %v69 = vld [vmem:[%s4 + $0x20] sm:$0xf]
  %v70 = vld [vmem:[%s4 + $0x24] sm:$0xf]
  %v71 = vld [vmem:[%s4 + $0x28] sm:$0xf]
  %v72 = vld [vmem:[%s4 + $0x2c] sm:$0xf]
  %v73 = vld [vmem:[%s4 + $0x30] sm:$0xf]
  %v74 = vld [vmem:[%s4 + $0x34] sm:$0xf]
  %v75 = vld [vmem:[%s4 + $0x38] sm:$0xf]
  %v76 = vld [vmem:[%s4 + $0x3c] sm:$0xf]
  %v85 = vunpack.c.l.b16 %v53
  %v86 = vunpack.c.l.b16 %v54
  %v87 = vunpack.c.l.b16 %v55
  %v88 = vunpack.c.l.b16 %v56
  %v89 = vunpack.c.l.b16 %v57
  %v90 = vunpack.c.l.b16 %v58
  %v91 = vunpack.c.l.b16 %v59
  %v92 = vunpack.c.l.b16 %v60
  %v93 = vpack.c.b16 %v86, %v85
  %v94 = vpack.c.b16 %v88, %v87
  %v95 = vpack.c.b16 %v90, %v89
  %v96 = vpack.c.b16 %v92, %v91
  %v117 = vunpack.c.l.b16 %v61
  %v118 = vunpack.c.l.b16 %v62
  %v119 = vunpack.c.l.b16 %v63
  %v120 = vunpack.c.l.b16 %v64
  %v121 = vunpack.c.l.b16 %v65
  %v122 = vunpack.c.l.b16 %v66
  %v123 = vunpack.c.l.b16 %v67
  %v124 = vunpack.c.l.b16 %v68
  %v125 = vunpack.c.l.b16 %v69
  %v126 = vunpack.c.l.b16 %v70
  %v127 = vunpack.c.l.b16 %v71
  %v128 = vunpack.c.l.b16 %v72
  %v129 = vunpack.c.l.b16 %v73
  %v130 = vunpack.c.l.b16 %v74
  %v131 = vunpack.c.l.b16 %v75
  %v132 = vunpack.c.l.b16 %v76
  %v133 = vpack.c.b16 %v118, %v117
  %v134 = vpack.c.b16 %v120, %v119
  %v135 = vpack.c.b16 %v122, %v121
  %v136 = vpack.c.b16 %v124, %v123
  %v137 = vpack.c.b16 %v126, %v125
  %v138 = vpack.c.b16 %v128, %v127
  %v139 = vpack.c.b16 %v130, %v129
  %v140 = vpack.c.b16 %v132, %v131
  %149 = vmatpush.bf16.msra.mxu0 %v140
  %150 = vmatpush.bf16.msra.mxu0 %v139
  %151 = vmatpush.bf16.msra.mxu0 %v138
  %152 = vmatpush.bf16.msra.mxu0 %v137
  %153 = vmatpush.bf16.msra.mxu0 %v136
  %154 = vmatpush.bf16.msra.mxu0 %v135
  %155 = vmatpush.bf16.msra.mxu0 %v134
  %156 = vmatpush.bf16.msra.mxu0 %v133
  %157 = vmatmul.bf16.gmra.mxu0 %v93
  %v158 = vpop.f32.mrf.mxu0
  %v159 = vadd.f32 0.0, %v158
  %v160 = vpop.f32.mrf.mxu0
  %v161 = vadd.f32 0.0, %v160
  %162 = vmatmul.bf16.gmra.mxu0 %v94
  %v163 = vpop.f32.mrf.mxu0
  %v164 = vadd.f32 0.0, %v163
  %v165 = vpop.f32.mrf.mxu0
  %v166 = vadd.f32 0.0, %v165
  %167 = vmatmul.bf16.gmra.mxu0 %v95
  %v168 = vpop.f32.mrf.mxu0
  %v169 = vadd.f32 0.0, %v168
  %v170 = vpop.f32.mrf.mxu0
  %v171 = vadd.f32 0.0, %v170
  %172 = vmatmul.bf16.gmra.mxu0 %v96
  %v173 = vpop.f32.mrf.mxu0
  %v174 = vadd.f32 0.0, %v173
  %v175 = vpop.f32.mrf.mxu0
  %v176 = vadd.f32 0.0, %v175
  %177 = vdwg.mxu0
  %v186 = vunpack.c.l.b16 %v29
  %v187 = vunpack.c.l.b16 %v30
  %v188 = vunpack.c.l.b16 %v31
  %v189 = vunpack.c.l.b16 %v32
  %v190 = vunpack.c.l.b16 %v33
  %v191 = vunpack.c.l.b16 %v34
  %v192 = vunpack.c.l.b16 %v35
  %v193 = vunpack.c.l.b16 %v36
  %v194 = vpack.c.b16 %v187, %v186
  %v195 = vpack.c.b16 %v189, %v188
  %v196 = vpack.c.b16 %v191, %v190
  %v197 = vpack.c.b16 %v193, %v192
  %v218 = vunpack.c.l.b16 %v37
  %v219 = vunpack.c.l.b16 %v38
  %v220 = vunpack.c.l.b16 %v39
  %v221 = vunpack.c.l.b16 %v40
  %v222 = vunpack.c.l.b16 %v41
  %v223 = vunpack.c.l.b16 %v42
  %v224 = vunpack.c.l.b16 %v43
  %v225 = vunpack.c.l.b16 %v44
  %v226 = vunpack.c.l.b16 %v45
  %v227 = vunpack.c.l.b16 %v46
  %v228 = vunpack.c.l.b16 %v47
  %v229 = vunpack.c.l.b16 %v48
  %v230 = vunpack.c.l.b16 %v49
  %v231 = vunpack.c.l.b16 %v50
  %v232 = vunpack.c.l.b16 %v51
  %v233 = vunpack.c.l.b16 %v52
  %v234 = vpack.c.b16 %v219, %v218
  %v235 = vpack.c.b16 %v221, %v220
  %v236 = vpack.c.b16 %v223, %v222
  %v237 = vpack.c.b16 %v225, %v224
  %v238 = vpack.c.b16 %v227, %v226
  %v239 = vpack.c.b16 %v229, %v228
  %v240 = vpack.c.b16 %v231, %v230
  %v241 = vpack.c.b16 %v233, %v232
  %250 = vmatpush.bf16.msra.mxu0 %v241
  %251 = vmatpush.bf16.msra.mxu0 %v240
  %252 = vmatpush.bf16.msra.mxu0 %v239
  %253 = vmatpush.bf16.msra.mxu0 %v238
  %254 = vmatpush.bf16.msra.mxu0 %v237
  %255 = vmatpush.bf16.msra.mxu0 %v236
  %256 = vmatpush.bf16.msra.mxu0 %v235
  %257 = vmatpush.bf16.msra.mxu0 %v234
  %258 = vmatmul.bf16.gmra.mxu0 %v194
  %v259 = vpop.f32.mrf.mxu0
  %v260 = vadd.f32 %v159, %v259
  %v261 = vpop.f32.mrf.mxu0
  %v262 = vadd.f32 %v161, %v261
  %263 = vmatmul.bf16.gmra.mxu0 %v195
  %v264 = vpop.f32.mrf.mxu0
  %v265 = vadd.f32 %v164, %v264
  %v266 = vpop.f32.mrf.mxu0
  %v267 = vadd.f32 %v166, %v266
  %268 = vmatmul.bf16.gmra.mxu0 %v196
  %v269 = vpop.f32.mrf.mxu0
  %v270 = vadd.f32 %v169, %v269
  %v271 = vpop.f32.mrf.mxu0
  %v272 = vadd.f32 %v171, %v271
  %273 = vmatmul.bf16.gmra.mxu0 %v197
  %v274 = vpop.f32.mrf.mxu0
  %v275 = vadd.f32 %v174, %v274
  %v276 = vpop.f32.mrf.mxu0
  %v277 = vadd.f32 %v176, %v276
  %278 = vdwg.mxu0
  %v279 = vadd.f32 %v260, %v262
  %v280 = vadd.f32 %v279, %v265
  %v281 = vadd.f32 %v280, %v267
  %v282 = vadd.f32 %v281, %v270
  %v283 = vadd.f32 %v282, %v272
  %v284 = vadd.f32 %v283, %v275
  %v285 = vadd.f32 %v284, %v277
  %v286 = vrot.slane %v285, 4
  %v287 = vadd.f32 %v285, %v286
  %v288 = vrot.slane %v287, 2
  %v289 = vadd.f32 %v287, %v288
  %v290 = vrot.slane %v289, 1
  %v291 = vadd.f32 %v289, %v290
  %v292 = vmul.f32 %v260, %v260
  %v293 = vmul.f32 %v262, %v262
  %v294 = vmul.f32 %v265, %v265
  %v295 = vmul.f32 %v267, %v267
  %v296 = vmul.f32 %v270, %v270
  %v297 = vmul.f32 %v272, %v272
  %v298 = vmul.f32 %v275, %v275
  %v299 = vmul.f32 %v277, %v277
  %v300 = vadd.f32 %v292, %v293
  %v301 = vadd.f32 %v300, %v294
  %v302 = vadd.f32 %v301, %v295
  %v303 = vadd.f32 %v302, %v296
  %v304 = vadd.f32 %v303, %v297
  %v305 = vadd.f32 %v304, %v298
  %v306 = vadd.f32 %v305, %v299
  %v307 = vrot.slane %v306, 4
  %v308 = vadd.f32 %v306, %v307
  %v309 = vrot.slane %v308, 2
  %v310 = vadd.f32 %v308, %v309
  %v311 = vrot.slane %v310, 1
  %v312 = vadd.f32 %v310, %v311
  %v313 = vld [vmem:[%s5] sm:$0x1]
  %v314 = vld [vmem:[%s5 + $0x1] sm:$0x1]
  %v315 = vmul.f32 %v291, 0.015625
  %v316 = vmul.f32 %v312, 0.015625
  %v317 = vmul.f32 %v315, %v315
  %v318 = vsub.f32 %v316, %v317
  %v319 = vmax.f32 %v318, 0.0
  %v320 = vadd.f32 %v319, 1e-05
  %v321 = vrsqrt.pop %v320
  %v322 = vmul.f32 %v321, %v320
  %v323 = vmul.f32 %v322, %v321
  %v324 = vmul.f32 0.5, %v323
  %v325 = vsub.f32 1.5, %v324
  %v326 = vmul.f32 %v321, %v325
  %vm327 = vweird.f32 %v320
  %vm328 = vweird.f32 %v321
  %vm329 = vmor %vm327, %vm328
  %v330 = vsel %vm329, %v321, %v326
  %v331 = vmul.f32 %v313, %v330
  %v332 = vmul.f32 %v315, %v331
  %v333 = vsub.f32 %v314, %v332
  %v334 = vperm.slane %v331, 0
  %v335 = vmul.f32 %v260, %v334
  %v336 = vmul.f32 %v262, %v334
  %v337 = vmul.f32 %v265, %v334
  %v338 = vmul.f32 %v267, %v334
  %v339 = vmul.f32 %v270, %v334
  %v340 = vmul.f32 %v272, %v334
  %v341 = vmul.f32 %v275, %v334
  %v342 = vmul.f32 %v277, %v334
  %v343 = vperm.slane %v333, 0
  %v344 = vadd.f32 %v335, %v343
  %v345 = vadd.f32 %v336, %v343
  %v346 = vadd.f32 %v337, %v343
  %v347 = vadd.f32 %v338, %v343
  %v348 = vadd.f32 %v339, %v343
  %v349 = vadd.f32 %v340, %v343
  %v350 = vadd.f32 %v341, %v343
  %v351 = vadd.f32 %v342, %v343
  %v352 = vmax.f32 %v344, 0.0
  %v353 = vmax.f32 %v345, 0.0
  %v354 = vmax.f32 %v346, 0.0
  %v355 = vmax.f32 %v347, 0.0
  %v356 = vmax.f32 %v348, 0.0
  %v357 = vmax.f32 %v349, 0.0
  %v358 = vmax.f32 %v350, 0.0
  %v359 = vmax.f32 %v351, 0.0
  %v360 = vld [vmem:[%s2] sm:$0xff]
  %v361 = vld [vmem:[%s2 + $0x8] sm:$0xff]
  %v362 = vld [vmem:[%s2 + $0x10] sm:$0xff]
  %v363 = vld [vmem:[%s2 + $0x18] sm:$0xff]
  %v364 = vld [vmem:[%s2 + $0x20] sm:$0xff]
  %v365 = vld [vmem:[%s2 + $0x28] sm:$0xff]
  %v366 = vld [vmem:[%s2 + $0x30] sm:$0xff]
  %v367 = vld [vmem:[%s2 + $0x38] sm:$0xff]
  %v368 = vld [vmem:[%s6] sm:$0xff]
  %v369 = vld [vmem:[%s7] sm:$0x1]
  %v371 = vperm.slane %v369, 0
  %vm373 = vcmask 64512
  %v375 = vsel %vm373, %v360, 0
  %v378 = vsel %vm373, %v361, 0
  %v381 = vsel %vm373, %v362, 0
  %v384 = vsel %vm373, %v363, 0
  %v387 = vsel %vm373, %v364, 0
  %v390 = vsel %vm373, %v365, 0
  %v393 = vsel %vm373, %v366, 0
  %v396 = vsel %vm373, %v367, 0
  %398 = vmatpush.msra.mxu0 0.0
  %399 = vmatpush.msra.mxu0 0.0
  %400 = vmatpush.msra.mxu0 0.0
  %401 = vmatpush.msra.mxu0 0.0
  %402 = vmatpush.msra.mxu0 0.0
  %403 = vmatpush.msra.mxu0 0.0
  %404 = vmatpush.msra.mxu0 0.0
  %405 = vmatpush.msra.mxu0 0.0
  %406 = vmatpush.msra.mxu0 0.0
  %407 = vmatpush.msra.mxu0 0.0
  %408 = vmatpush.msra.mxu0 0.0
  %409 = vmatpush.msra.mxu0 0.0
  %410 = vmatpush.msra.mxu0 0.0
  %411 = vmatpush.msra.mxu0 0.0
  %412 = vmatpush.msra.mxu0 0.0
  %413 = vmatpush.msra.mxu0 %v368
  %414 = vmatmul.f32.gmra.mxu0 %v375
  %v415 = vpop.f32.mrf.mxu0
  %v416 = vadd.f32 %v371, %v415
  %417 = vmatmul.f32.gmra.mxu0 %v378
  %v418 = vpop.f32.mrf.mxu0
  %v419 = vadd.f32 %v371, %v418
  %420 = vmatmul.f32.gmra.mxu0 %v381
  %v421 = vpop.f32.mrf.mxu0
  %v422 = vadd.f32 %v371, %v421
  %423 = vmatmul.f32.gmra.mxu0 %v384
  %v424 = vpop.f32.mrf.mxu0
  %v425 = vadd.f32 %v371, %v424
  %426 = vmatmul.f32.gmra.mxu0 %v387
  %v427 = vpop.f32.mrf.mxu0
  %v428 = vadd.f32 %v371, %v427
  %429 = vmatmul.f32.gmra.mxu0 %v390
  %v430 = vpop.f32.mrf.mxu0
  %v431 = vadd.f32 %v371, %v430
  %432 = vmatmul.f32.gmra.mxu0 %v393
  %v433 = vpop.f32.mrf.mxu0
  %v434 = vadd.f32 %v371, %v433
  %435 = vmatmul.f32.gmra.mxu0 %v396
  %v436 = vpop.f32.mrf.mxu0
  %v437 = vadd.f32 %v371, %v436
  %438 = vdwg.mxu0
  %v439 = vand.u32 2147483647, %v416
  %vm440 = vcmp.le.f32.partialorder %v439, 0.7853982
  %vm441 = vcmp.lt.s32.totalorder %v416, 0
  %v442 = vand.u32 %v416, 2139095040
  %v443 = vshrl.u32 %v442, 23
  %v444 = vsub.s32 %v443, 127
  %v445 = vand.u32 2147483647, %v416
  %v446 = vand.u32 %v445, 8388607
  %v447 = vor.u32 %v446, 8388608
  %v448 = vsub.s32 0, %v447
  %v449 = vadd.s32 %v444, 1
  %vm450 = vcmp.gt.s32.totalorder %v449, 0
  %v451 = vsel %vm450, %v449, 0
  %v452 = vshrl.u32 %v451, 5
  %v453 = vand.u32 %v451, 31
  %v454 = vsub.s32 32, %v453
  %v455 = vshrl.u32 683565275, %v454
  %v456 = vshll.u32 683565275, %v453
  %v457 = vshrl.u32 2475754826, %v454
  %v458 = vor.u32 %v456, %v457
  %v459 = vshll.u32 2475754826, %v453
  %v460 = vshrl.u32 2131351028, %v454
  %v461 = vor.u32 %v459, %v460
  %v462 = vshll.u32 2131351028, %v453
  %v463 = vshrl.u32 2102212464, %v454
  %v464 = vor.u32 %v462, %v463
  %v465 = vshll.u32 2102212464, %v453
  %v466 = vshrl.u32 920167782, %v454
  %v467 = vor.u32 %v465, %v466
  %v468 = vshll.u32 920167782, %v453
  %v469 = vshrl.u32 1326507024, %v454
  %v470 = vor.u32 %v468, %v469
  %vm471 = vcmp.lt.s32.totalorder %v452, 1
  %vm472 = vcmp.lt.s32.totalorder %v452, 2
  %vm473 = vcmp.lt.s32.totalorder %v452, 3
  %vm474 = vcmp.lt.s32.totalorder %v452, 4
  %v475 = vsel %vm471, %v455, %v458
  %v476 = vsel %vm474, %v464, 2102212464
  %v477 = vsel %vm473, %v461, %v476
  %v478 = vsel %vm472, %v475, %v477
  %v479 = vsel %vm471, %v458, %v461
  %v480 = vsel %vm474, %v467, 920167782
  %v481 = vsel %vm473, %v464, %v480
  %v482 = vsel %vm472, %v479, %v481
  %v483 = vsel %vm471, %v461, %v464
  %v484 = vsel %vm474, %v470, 1326507024
  %v485 = vsel %vm473, %v467, %v484
  %v486 = vsel %vm472, %v483, %v485
  %v487 = vshll.u32 %v447, 8
  %v488 = vand.u32 %v487, 65535
  %v489 = vshrl.u32 %v487, 16
  %v490 = vand.u32 %v486, 65535
  %v491 = vshrl.u32 %v486, 16
  %v492 = vmul.u32 %v488, %v490
  %v493 = vmul.u32 %v488, %v491
  %v494 = vmul.u32 %v489, %v490
  %v495 = vmul.u32 %v489, %v491
  %v496 = vshll.u32 %v493, 16
  %v497 = vshrl.u32 %v493, 16
  %v498 = vshll.u32 %v494, 16
  %v499 = vshrl.u32 %v494, 16
  %vm500 = vc.u32 %v492, %v496
  %v501 = vsel %vm500, 1, 0
  %v502 = vadd.s32 %v492, %v496
  %v503 = vadd.s32 %v495, %v501
  %vm504 = vc.u32 %v502, %v498
  %v505 = vsel %vm504, 1, 0
  %v506 = vadd.s32 %v502, %v498
  %v507 = vadd.s32 %v503, %v505
  %v508 = vadd.s32 %v507, %v497
  %v509 = vadd.s32 %v508, %v499
  %v510 = vand.u32 %v487, 65535
  %v511 = vshrl.u32 %v487, 16
  %v512 = vand.u32 %v482, 65535
  %v513 = vshrl.u32 %v482, 16
  %v514 = vmul.u32 %v510, %v512
  %v515 = vmul.u32 %v510, %v513
  %v516 = vmul.u32 %v511, %v512
  %v517 = vmul.u32 %v511, %v513
  %v518 = vshll.u32 %v515, 16
  %v519 = vshrl.u32 %v515, 16
  %v520 = vshll.u32 %v516, 16
  %v521 = vshrl.u32 %v516, 16
  %vm522 = vc.u32 %v514, %v518
  %v523 = vsel %vm522, 1, 0
  %v524 = vadd.s32 %v514, %v518
  %v525 = vadd.s32 %v517, %v523
  %vm526 = vc.u32 %v524, %v520
  %v527 = vsel %vm526, 1, 0
  %v528 = vadd.s32 %v524, %v520
  %v529 = vadd.s32 %v525, %v527
  %v530 = vadd.s32 %v529, %v519
  %v531 = vadd.s32 %v530, %v521
  %v532 = vmul.u32 %v487, %v478
  %v533 = vadd.s32 %v509, %v528
  %vm534 = vc.u32 %v509, %v528
  %v535 = vadd.s32 %v531, 1
  %v536 = vsel %vm534, %v535, %v531
  %v537 = vadd.s32 %v532, %v536
  %v538 = vadd.s32 %v537, 536870912
  %v539 = vshrl.u32 %v538, 30
  %v540 = vshll.u32 %v539, 30
  %v541 = vsub.s32 %v537, %v540
  %vm542 = vcmp.lt.s32.totalorder %v541, 0
  %v543 = vsub.s32 0, %v541
  %v544 = vsel %vm542, %v543, %v541
  %v545 = vclz %v544
  %v546 = vsub.s32 %v545, 2
  %vm547 = vcmp.gt.s32.totalorder 0, %v546
  %v548 = vsel %vm547, 0, %v546
  %v549 = vsub.s32 32, %v548
  %v550 = vshll.u32 %v541, %v548
  %v551 = vshrl.u32 %v533, %v549
  %v552 = vor.u32 %v550, %v551
  %v553 = vsub.s32 4294967266, %v548
  %v554 = vadd.s32 %v553, 127
  %v555 = vshll.u32 %v554, 23
  %v556 = vor.u32 4788187, %v555
  %v557 = vand.u32 2147483647, %v556
  %v559 = vcvt.s32.f32 %v552
  %v560 = vmul.f32 %v559, %v557
  %v561 = vxor.u32 %v560, 2147483648
  %v562 = vsel %vm441, %v561, %v560
  %v563 = vsub.s32 4, %v539
  %v564 = vsel %vm441, %v563, %v539
  %v565 = vsel %vm440, %v416, %v562
  %v566 = vsel %vm440, 0, %v564
  %v567 = vmul.f32 %v565, %v565
  %v568 = vmul.f32 %v567, -0.001358992
  %v569 = vadd.f32 %v568, 0.041655596
  %v570 = vmul.f32 %v567, %v569
  %v571 = vadd.f32 %v570, -0.4999988
  %v572 = vmul.f32 %v567, %v571
  %v573 = vadd.f32 1.0, %v572
  %v574 = vmul.f32 %v565, %v565
  %v575 = vmul.f32 %v574, -0.00019511016
  %v576 = vadd.f32 %v575, 0.008332121
  %v577 = vmul.f32 %v574, %v576
  %v578 = vadd.f32 %v577, -0.16666654
  %v579 = vmul.f32 %v574, %v578
  %v580 = vadd.f32 %v579, 1.0
  %v581 = vmul.f32 %v580, %v565
  %vm582 = vweird.f32 %v416
  %v583 = vadd.s32 %v566, 3
  %v584 = vand.u32 %v583, 3
  %vm585 = vcmp.lt.s32.totalorder %v584, 2
  %vm586 = vcmp.eq.s32.totalorder %v584, 0
  %v587 = vxor.u32 %v581, 2147483648
  %v588 = vsel %vm586, %v573, %v587
  %vm589 = vcmp.eq.s32.totalorder %v584, 2
  %v590 = vxor.u32 %v573, 2147483648
  %v591 = vsel %vm589, %v590, %v581
  %v592 = vsel %vm585, %v588, %v591
  %v593 = vsel %vm582, nan, %v592
  %v594 = vand.u32 2147483647, %v419
  %vm595 = vcmp.le.f32.partialorder %v594, 0.7853982
  %vm596 = vcmp.lt.s32.totalorder %v419, 0
  %v597 = vand.u32 %v419, 2139095040
  %v598 = vshrl.u32 %v597, 23
  %v599 = vsub.s32 %v598, 127
  %v600 = vand.u32 2147483647, %v419
  %v601 = vand.u32 %v600, 8388607
  %v602 = vor.u32 %v601, 8388608
  %v603 = vsub.s32 0, %v602
  %v604 = vadd.s32 %v599, 1
  %vm605 = vcmp.gt.s32.totalorder %v604, 0
  %v606 = vsel %vm605, %v604, 0
  %v607 = vshrl.u32 %v606, 5
  %v608 = vand.u32 %v606, 31
  %v609 = vsub.s32 32, %v608
  %v610 = vshrl.u32 683565275, %v609
  %v611 = vshll.u32 683565275, %v608
  %v612 = vshrl.u32 2475754826, %v609
  %v613 = vor.u32 %v611, %v612
  %v614 = vshll.u32 2475754826, %v608
  %v615 = vshrl.u32 2131351028, %v609
  %v616 = vor.u32 %v614, %v615
  %v617 = vshll.u32 2131351028, %v608
  %v618 = vshrl.u32 2102212464, %v609
  %v619 = vor.u32 %v617, %v618
  %v620 = vshll.u32 2102212464, %v608
  %v621 = vshrl.u32 920167782, %v609
  %v622 = vor.u32 %v620, %v621
  %v623 = vshll.u32 920167782, %v608
  %v624 = vshrl.u32 1326507024, %v609
  %v625 = vor.u32 %v623, %v624
  %vm626 = vcmp.lt.s32.totalorder %v607, 1
  %vm627 = vcmp.lt.s32.totalorder %v607, 2
  %vm628 = vcmp.lt.s32.totalorder %v607, 3
  %vm629 = vcmp.lt.s32.totalorder %v607, 4
  %v630 = vsel %vm626, %v610, %v613
  %v631 = vsel %vm629, %v619, 2102212464
  %v632 = vsel %vm628, %v616, %v631
  %v633 = vsel %vm627, %v630, %v632
  %v634 = vsel %vm626, %v613, %v616
  %v635 = vsel %vm629, %v622, 920167782
  %v636 = vsel %vm628, %v619, %v635
  %v637 = vsel %vm627, %v634, %v636
  %v638 = vsel %vm626, %v616, %v619
  %v639 = vsel %vm629, %v625, 1326507024
  %v640 = vsel %vm628, %v622, %v639
  %v641 = vsel %vm627, %v638, %v640
  %v642 = vshll.u32 %v602, 8
  %v643 = vand.u32 %v642, 65535
  %v644 = vshrl.u32 %v642, 16
  %v645 = vand.u32 %v641, 65535
  %v646 = vshrl.u32 %v641, 16
  %v647 = vmul.u32 %v643, %v645
  %v648 = vmul.u32 %v643, %v646
  %v649 = vmul.u32 %v644, %v645
  %v650 = vmul.u32 %v644, %v646
  %v651 = vshll.u32 %v648, 16
  %v652 = vshrl.u32 %v648, 16
  %v653 = vshll.u32 %v649, 16
  %v654 = vshrl.u32 %v649, 16
  %vm655 = vc.u32 %v647, %v651
  %v656 = vsel %vm655, 1, 0
  %v657 = vadd.s32 %v647, %v651
  %v658 = vadd.s32 %v650, %v656
  %vm659 = vc.u32 %v657, %v653
  %v660 = vsel %vm659, 1, 0
  %v661 = vadd.s32 %v657, %v653
  %v662 = vadd.s32 %v658, %v660
  %v663 = vadd.s32 %v662, %v652
  %v664 = vadd.s32 %v663, %v654
  %v665 = vand.u32 %v642, 65535
  %v666 = vshrl.u32 %v642, 16
  %v667 = vand.u32 %v637, 65535
  %v668 = vshrl.u32 %v637, 16
  %v669 = vmul.u32 %v665, %v667
  %v670 = vmul.u32 %v665, %v668
  %v671 = vmul.u32 %v666, %v667
  %v672 = vmul.u32 %v666, %v668
  %v673 = vshll.u32 %v670, 16
  %v674 = vshrl.u32 %v670, 16
  %v675 = vshll.u32 %v671, 16
  %v676 = vshrl.u32 %v671, 16
  %vm677 = vc.u32 %v669, %v673
  %v678 = vsel %vm677, 1, 0
  %v679 = vadd.s32 %v669, %v673
  %v680 = vadd.s32 %v672, %v678
  %vm681 = vc.u32 %v679, %v675
  %v682 = vsel %vm681, 1, 0
  %v683 = vadd.s32 %v679, %v675
  %v684 = vadd.s32 %v680, %v682
  %v685 = vadd.s32 %v684, %v674
  %v686 = vadd.s32 %v685, %v676
  %v687 = vmul.u32 %v642, %v633
  %v688 = vadd.s32 %v664, %v683
  %vm689 = vc.u32 %v664, %v683
  %v690 = vadd.s32 %v686, 1
  %v691 = vsel %vm689, %v690, %v686
  %v692 = vadd.s32 %v687, %v691
  %v693 = vadd.s32 %v692, 536870912
  %v694 = vshrl.u32 %v693, 30
  %v695 = vshll.u32 %v694, 30
  %v696 = vsub.s32 %v692, %v695
  %vm697 = vcmp.lt.s32.totalorder %v696, 0
  %v698 = vsub.s32 0, %v696
  %v699 = vsel %vm697, %v698, %v696
  %v700 = vclz %v699
  %v701 = vsub.s32 %v700, 2
  %vm702 = vcmp.gt.s32.totalorder 0, %v701
  %v703 = vsel %vm702, 0, %v701
  %v704 = vsub.s32 32, %v703
  %v705 = vshll.u32 %v696, %v703
  %v706 = vshrl.u32 %v688, %v704
  %v707 = vor.u32 %v705, %v706
  %v708 = vsub.s32 4294967266, %v703
  %v709 = vadd.s32 %v708, 127
  %v710 = vshll.u32 %v709, 23
  %v711 = vor.u32 4788187, %v710
  %v712 = vand.u32 2147483647, %v711
  %v714 = vcvt.s32.f32 %v707
  %v715 = vmul.f32 %v714, %v712
  %v716 = vxor.u32 %v715, 2147483648
  %v717 = vsel %vm596, %v716, %v715
  %v718 = vsub.s32 4, %v694
  %v719 = vsel %vm596, %v718, %v694
  %v720 = vsel %vm595, %v419, %v717
  %v721 = vsel %vm595, 0, %v719
  %v722 = vmul.f32 %v720, %v720
  %v723 = vmul.f32 %v722, -0.001358992
  %v724 = vadd.f32 %v723, 0.041655596
  %v725 = vmul.f32 %v722, %v724
  %v726 = vadd.f32 %v725, -0.4999988
  %v727 = vmul.f32 %v722, %v726
  %v728 = vadd.f32 1.0, %v727
  %v729 = vmul.f32 %v720, %v720
  %v730 = vmul.f32 %v729, -0.00019511016
  %v731 = vadd.f32 %v730, 0.008332121
  %v732 = vmul.f32 %v729, %v731
  %v733 = vadd.f32 %v732, -0.16666654
  %v734 = vmul.f32 %v729, %v733
  %v735 = vadd.f32 %v734, 1.0
  %v736 = vmul.f32 %v735, %v720
  %vm737 = vweird.f32 %v419
  %v738 = vadd.s32 %v721, 3
  %v739 = vand.u32 %v738, 3
  %vm740 = vcmp.lt.s32.totalorder %v739, 2
  %vm741 = vcmp.eq.s32.totalorder %v739, 0
  %v742 = vxor.u32 %v736, 2147483648
  %v743 = vsel %vm741, %v728, %v742
  %vm744 = vcmp.eq.s32.totalorder %v739, 2
  %v745 = vxor.u32 %v728, 2147483648
  %v746 = vsel %vm744, %v745, %v736
  %v747 = vsel %vm740, %v743, %v746
  %v748 = vsel %vm737, nan, %v747
  %v749 = vand.u32 2147483647, %v422
  %vm750 = vcmp.le.f32.partialorder %v749, 0.7853982
  %vm751 = vcmp.lt.s32.totalorder %v422, 0
  %v752 = vand.u32 %v422, 2139095040
  %v753 = vshrl.u32 %v752, 23
  %v754 = vsub.s32 %v753, 127
  %v755 = vand.u32 2147483647, %v422
  %v756 = vand.u32 %v755, 8388607
  %v757 = vor.u32 %v756, 8388608
  %v758 = vsub.s32 0, %v757
  %v759 = vadd.s32 %v754, 1
  %vm760 = vcmp.gt.s32.totalorder %v759, 0
  %v761 = vsel %vm760, %v759, 0
  %v762 = vshrl.u32 %v761, 5
  %v763 = vand.u32 %v761, 31
  %v764 = vsub.s32 32, %v763
  %v765 = vshrl.u32 683565275, %v764
  %v766 = vshll.u32 683565275, %v763
  %v767 = vshrl.u32 2475754826, %v764
  %v768 = vor.u32 %v766, %v767
  %v769 = vshll.u32 2475754826, %v763
  %v770 = vshrl.u32 2131351028, %v764
  %v771 = vor.u32 %v769, %v770
  %v772 = vshll.u32 2131351028, %v763
  %v773 = vshrl.u32 2102212464, %v764
  %v774 = vor.u32 %v772, %v773
  %v775 = vshll.u32 2102212464, %v763
  %v776 = vshrl.u32 920167782, %v764
  %v777 = vor.u32 %v775, %v776
  %v778 = vshll.u32 920167782, %v763
  %v779 = vshrl.u32 1326507024, %v764
  %v780 = vor.u32 %v778, %v779
  %vm781 = vcmp.lt.s32.totalorder %v762, 1
  %vm782 = vcmp.lt.s32.totalorder %v762, 2
  %vm783 = vcmp.lt.s32.totalorder %v762, 3
  %vm784 = vcmp.lt.s32.totalorder %v762, 4
  %v785 = vsel %vm781, %v765, %v768
  %v786 = vsel %vm784, %v774, 2102212464
  %v787 = vsel %vm783, %v771, %v786
  %v788 = vsel %vm782, %v785, %v787
  %v789 = vsel %vm781, %v768, %v771
  %v790 = vsel %vm784, %v777, 920167782
  %v791 = vsel %vm783, %v774, %v790
  %v792 = vsel %vm782, %v789, %v791
  %v793 = vsel %vm781, %v771, %v774
  %v794 = vsel %vm784, %v780, 1326507024
  %v795 = vsel %vm783, %v777, %v794
  %v796 = vsel %vm782, %v793, %v795
  %v797 = vshll.u32 %v757, 8
  %v798 = vand.u32 %v797, 65535
  %v799 = vshrl.u32 %v797, 16
  %v800 = vand.u32 %v796, 65535
  %v801 = vshrl.u32 %v796, 16
  %v802 = vmul.u32 %v798, %v800
  %v803 = vmul.u32 %v798, %v801
  %v804 = vmul.u32 %v799, %v800
  %v805 = vmul.u32 %v799, %v801
  %v806 = vshll.u32 %v803, 16
  %v807 = vshrl.u32 %v803, 16
  %v808 = vshll.u32 %v804, 16
  %v809 = vshrl.u32 %v804, 16
  %vm810 = vc.u32 %v802, %v806
  %v811 = vsel %vm810, 1, 0
  %v812 = vadd.s32 %v802, %v806
  %v813 = vadd.s32 %v805, %v811
  %vm814 = vc.u32 %v812, %v808
  %v815 = vsel %vm814, 1, 0
  %v816 = vadd.s32 %v812, %v808
  %v817 = vadd.s32 %v813, %v815
  %v818 = vadd.s32 %v817, %v807
  %v819 = vadd.s32 %v818, %v809
  %v820 = vand.u32 %v797, 65535
  %v821 = vshrl.u32 %v797, 16
  %v822 = vand.u32 %v792, 65535
  %v823 = vshrl.u32 %v792, 16
  %v824 = vmul.u32 %v820, %v822
  %v825 = vmul.u32 %v820, %v823
  %v826 = vmul.u32 %v821, %v822
  %v827 = vmul.u32 %v821, %v823
  %v828 = vshll.u32 %v825, 16
  %v829 = vshrl.u32 %v825, 16
  %v830 = vshll.u32 %v826, 16
  %v831 = vshrl.u32 %v826, 16
  %vm832 = vc.u32 %v824, %v828
  %v833 = vsel %vm832, 1, 0
  %v834 = vadd.s32 %v824, %v828
  %v835 = vadd.s32 %v827, %v833
  %vm836 = vc.u32 %v834, %v830
  %v837 = vsel %vm836, 1, 0
  %v838 = vadd.s32 %v834, %v830
  %v839 = vadd.s32 %v835, %v837
  %v840 = vadd.s32 %v839, %v829
  %v841 = vadd.s32 %v840, %v831
  %v842 = vmul.u32 %v797, %v788
  %v843 = vadd.s32 %v819, %v838
  %vm844 = vc.u32 %v819, %v838
  %v845 = vadd.s32 %v841, 1
  %v846 = vsel %vm844, %v845, %v841
  %v847 = vadd.s32 %v842, %v846
  %v848 = vadd.s32 %v847, 536870912
  %v849 = vshrl.u32 %v848, 30
  %v850 = vshll.u32 %v849, 30
  %v851 = vsub.s32 %v847, %v850
  %vm852 = vcmp.lt.s32.totalorder %v851, 0
  %v853 = vsub.s32 0, %v851
  %v854 = vsel %vm852, %v853, %v851
  %v855 = vclz %v854
  %v856 = vsub.s32 %v855, 2
  %vm857 = vcmp.gt.s32.totalorder 0, %v856
  %v858 = vsel %vm857, 0, %v856
  %v859 = vsub.s32 32, %v858
  %v860 = vshll.u32 %v851, %v858
  %v861 = vshrl.u32 %v843, %v859
  %v862 = vor.u32 %v860, %v861
  %v863 = vsub.s32 4294967266, %v858
  %v864 = vadd.s32 %v863, 127
  %v865 = vshll.u32 %v864, 23
  %v866 = vor.u32 4788187, %v865
  %v867 = vand.u32 2147483647, %v866
  %v869 = vcvt.s32.f32 %v862
  %v870 = vmul.f32 %v869, %v867
  %v871 = vxor.u32 %v870, 2147483648
  %v872 = vsel %vm751, %v871, %v870
  %v873 = vsub.s32 4, %v849
  %v874 = vsel %vm751, %v873, %v849
  %v875 = vsel %vm750, %v422, %v872
  %v876 = vsel %vm750, 0, %v874
  %v877 = vmul.f32 %v875, %v875
  %v878 = vmul.f32 %v877, -0.001358992
  %v879 = vadd.f32 %v878, 0.041655596
  %v880 = vmul.f32 %v877, %v879
  %v881 = vadd.f32 %v880, -0.4999988
  %v882 = vmul.f32 %v877, %v881
  %v883 = vadd.f32 1.0, %v882
  %v884 = vmul.f32 %v875, %v875
  %v885 = vmul.f32 %v884, -0.00019511016
  %v886 = vadd.f32 %v885, 0.008332121
  %v887 = vmul.f32 %v884, %v886
  %v888 = vadd.f32 %v887, -0.16666654
  %v889 = vmul.f32 %v884, %v888
  %v890 = vadd.f32 %v889, 1.0
  %v891 = vmul.f32 %v890, %v875
  %vm892 = vweird.f32 %v422
  %v893 = vadd.s32 %v876, 3
  %v894 = vand.u32 %v893, 3
  %vm895 = vcmp.lt.s32.totalorder %v894, 2
  %vm896 = vcmp.eq.s32.totalorder %v894, 0
  %v897 = vxor.u32 %v891, 2147483648
  %v898 = vsel %vm896, %v883, %v897
  %vm899 = vcmp.eq.s32.totalorder %v894, 2
  %v900 = vxor.u32 %v883, 2147483648
  %v901 = vsel %vm899, %v900, %v891
  %v902 = vsel %vm895, %v898, %v901
  %v903 = vsel %vm892, nan, %v902
  %v904 = vand.u32 2147483647, %v425
  %vm905 = vcmp.le.f32.partialorder %v904, 0.7853982
  %vm906 = vcmp.lt.s32.totalorder %v425, 0
  %v907 = vand.u32 %v425, 2139095040
  %v908 = vshrl.u32 %v907, 23
  %v909 = vsub.s32 %v908, 127
  %v910 = vand.u32 2147483647, %v425
  %v911 = vand.u32 %v910, 8388607
  %v912 = vor.u32 %v911, 8388608
  %v913 = vsub.s32 0, %v912
  %v914 = vadd.s32 %v909, 1
  %vm915 = vcmp.gt.s32.totalorder %v914, 0
  %v916 = vsel %vm915, %v914, 0
  %v917 = vshrl.u32 %v916, 5
  %v918 = vand.u32 %v916, 31
  %v919 = vsub.s32 32, %v918
  %v920 = vshrl.u32 683565275, %v919
  %v921 = vshll.u32 683565275, %v918
  %v922 = vshrl.u32 2475754826, %v919
  %v923 = vor.u32 %v921, %v922
  %v924 = vshll.u32 2475754826, %v918
  %v925 = vshrl.u32 2131351028, %v919
  %v926 = vor.u32 %v924, %v925
  %v927 = vshll.u32 2131351028, %v918
  %v928 = vshrl.u32 2102212464, %v919
  %v929 = vor.u32 %v927, %v928
  %v930 = vshll.u32 2102212464, %v918
  %v931 = vshrl.u32 920167782, %v919
  %v932 = vor.u32 %v930, %v931
  %v933 = vshll.u32 920167782, %v918
  %v934 = vshrl.u32 1326507024, %v919
  %v935 = vor.u32 %v933, %v934
  %vm936 = vcmp.lt.s32.totalorder %v917, 1
  %vm937 = vcmp.lt.s32.totalorder %v917, 2
  %vm938 = vcmp.lt.s32.totalorder %v917, 3
  %vm939 = vcmp.lt.s32.totalorder %v917, 4
  %v940 = vsel %vm936, %v920, %v923
  %v941 = vsel %vm939, %v929, 2102212464
  %v942 = vsel %vm938, %v926, %v941
  %v943 = vsel %vm937, %v940, %v942
  %v944 = vsel %vm936, %v923, %v926
  %v945 = vsel %vm939, %v932, 920167782
  %v946 = vsel %vm938, %v929, %v945
  %v947 = vsel %vm937, %v944, %v946
  %v948 = vsel %vm936, %v926, %v929
  %v949 = vsel %vm939, %v935, 1326507024
  %v950 = vsel %vm938, %v932, %v949
  %v951 = vsel %vm937, %v948, %v950
  %v952 = vshll.u32 %v912, 8
  %v953 = vand.u32 %v952, 65535
  %v954 = vshrl.u32 %v952, 16
  %v955 = vand.u32 %v951, 65535
  %v956 = vshrl.u32 %v951, 16
  %v957 = vmul.u32 %v953, %v955
  %v958 = vmul.u32 %v953, %v956
  %v959 = vmul.u32 %v954, %v955
  %v960 = vmul.u32 %v954, %v956
  %v961 = vshll.u32 %v958, 16
  %v962 = vshrl.u32 %v958, 16
  %v963 = vshll.u32 %v959, 16
  %v964 = vshrl.u32 %v959, 16
  %vm965 = vc.u32 %v957, %v961
  %v966 = vsel %vm965, 1, 0
  %v967 = vadd.s32 %v957, %v961
  %v968 = vadd.s32 %v960, %v966
  %vm969 = vc.u32 %v967, %v963
  %v970 = vsel %vm969, 1, 0
  %v971 = vadd.s32 %v967, %v963
  %v972 = vadd.s32 %v968, %v970
  %v973 = vadd.s32 %v972, %v962
  %v974 = vadd.s32 %v973, %v964
  %v975 = vand.u32 %v952, 65535
  %v976 = vshrl.u32 %v952, 16
  %v977 = vand.u32 %v947, 65535
  %v978 = vshrl.u32 %v947, 16
  %v979 = vmul.u32 %v975, %v977
  %v980 = vmul.u32 %v975, %v978
  %v981 = vmul.u32 %v976, %v977
  %v982 = vmul.u32 %v976, %v978
  %v983 = vshll.u32 %v980, 16
  %v984 = vshrl.u32 %v980, 16
  %v985 = vshll.u32 %v981, 16
  %v986 = vshrl.u32 %v981, 16
  %vm987 = vc.u32 %v979, %v983
  %v988 = vsel %vm987, 1, 0
  %v989 = vadd.s32 %v979, %v983
  %v990 = vadd.s32 %v982, %v988
  %vm991 = vc.u32 %v989, %v985
  %v992 = vsel %vm991, 1, 0
  %v993 = vadd.s32 %v989, %v985
  %v994 = vadd.s32 %v990, %v992
  %v995 = vadd.s32 %v994, %v984
  %v996 = vadd.s32 %v995, %v986
  %v997 = vmul.u32 %v952, %v943
  %v998 = vadd.s32 %v974, %v993
  %vm999 = vc.u32 %v974, %v993
  %v1000 = vadd.s32 %v996, 1
  %v1001 = vsel %vm999, %v1000, %v996
  %v1002 = vadd.s32 %v997, %v1001
  %v1003 = vadd.s32 %v1002, 536870912
  %v1004 = vshrl.u32 %v1003, 30
  %v1005 = vshll.u32 %v1004, 30
  %v1006 = vsub.s32 %v1002, %v1005
  %vm1007 = vcmp.lt.s32.totalorder %v1006, 0
  %v1008 = vsub.s32 0, %v1006
  %v1009 = vsel %vm1007, %v1008, %v1006
  %v1010 = vclz %v1009
  %v1011 = vsub.s32 %v1010, 2
  %vm1012 = vcmp.gt.s32.totalorder 0, %v1011
  %v1013 = vsel %vm1012, 0, %v1011
  %v1014 = vsub.s32 32, %v1013
  %v1015 = vshll.u32 %v1006, %v1013
  %v1016 = vshrl.u32 %v998, %v1014
  %v1017 = vor.u32 %v1015, %v1016
  %v1018 = vsub.s32 4294967266, %v1013
  %v1019 = vadd.s32 %v1018, 127
  %v1020 = vshll.u32 %v1019, 23
  %v1021 = vor.u32 4788187, %v1020
  %v1022 = vand.u32 2147483647, %v1021
  %v1024 = vcvt.s32.f32 %v1017
  %v1025 = vmul.f32 %v1024, %v1022
  %v1026 = vxor.u32 %v1025, 2147483648
  %v1027 = vsel %vm906, %v1026, %v1025
  %v1028 = vsub.s32 4, %v1004
  %v1029 = vsel %vm906, %v1028, %v1004
  %v1030 = vsel %vm905, %v425, %v1027
  %v1031 = vsel %vm905, 0, %v1029
  %v1032 = vmul.f32 %v1030, %v1030
  %v1033 = vmul.f32 %v1032, -0.001358992
  %v1034 = vadd.f32 %v1033, 0.041655596
  %v1035 = vmul.f32 %v1032, %v1034
  %v1036 = vadd.f32 %v1035, -0.4999988
  %v1037 = vmul.f32 %v1032, %v1036
  %v1038 = vadd.f32 1.0, %v1037
  %v1039 = vmul.f32 %v1030, %v1030
  %v1040 = vmul.f32 %v1039, -0.00019511016
  %v1041 = vadd.f32 %v1040, 0.008332121
  %v1042 = vmul.f32 %v1039, %v1041
  %v1043 = vadd.f32 %v1042, -0.16666654
  %v1044 = vmul.f32 %v1039, %v1043
  %v1045 = vadd.f32 %v1044, 1.0
  %v1046 = vmul.f32 %v1045, %v1030
  %vm1047 = vweird.f32 %v425
  %v1048 = vadd.s32 %v1031, 3
  %v1049 = vand.u32 %v1048, 3
  %vm1050 = vcmp.lt.s32.totalorder %v1049, 2
  %vm1051 = vcmp.eq.s32.totalorder %v1049, 0
  %v1052 = vxor.u32 %v1046, 2147483648
  %v1053 = vsel %vm1051, %v1038, %v1052
  %vm1054 = vcmp.eq.s32.totalorder %v1049, 2
  %v1055 = vxor.u32 %v1038, 2147483648
  %v1056 = vsel %vm1054, %v1055, %v1046
  %v1057 = vsel %vm1050, %v1053, %v1056
  %v1058 = vsel %vm1047, nan, %v1057
  %v1059 = vand.u32 2147483647, %v428
  %vm1060 = vcmp.le.f32.partialorder %v1059, 0.7853982
  %vm1061 = vcmp.lt.s32.totalorder %v428, 0
  %v1062 = vand.u32 %v428, 2139095040
  %v1063 = vshrl.u32 %v1062, 23
  %v1064 = vsub.s32 %v1063, 127
  %v1065 = vand.u32 2147483647, %v428
  %v1066 = vand.u32 %v1065, 8388607
  %v1067 = vor.u32 %v1066, 8388608
  %v1068 = vsub.s32 0, %v1067
  %v1069 = vadd.s32 %v1064, 1
  %vm1070 = vcmp.gt.s32.totalorder %v1069, 0
  %v1071 = vsel %vm1070, %v1069, 0
  %v1072 = vshrl.u32 %v1071, 5
  %v1073 = vand.u32 %v1071, 31
  %v1074 = vsub.s32 32, %v1073
  %v1075 = vshrl.u32 683565275, %v1074
  %v1076 = vshll.u32 683565275, %v1073
  %v1077 = vshrl.u32 2475754826, %v1074
  %v1078 = vor.u32 %v1076, %v1077
  %v1079 = vshll.u32 2475754826, %v1073
  %v1080 = vshrl.u32 2131351028, %v1074
  %v1081 = vor.u32 %v1079, %v1080
  %v1082 = vshll.u32 2131351028, %v1073
  %v1083 = vshrl.u32 2102212464, %v1074
  %v1084 = vor.u32 %v1082, %v1083
  %v1085 = vshll.u32 2102212464, %v1073
  %v1086 = vshrl.u32 920167782, %v1074
  %v1087 = vor.u32 %v1085, %v1086
  %v1088 = vshll.u32 920167782, %v1073
  %v1089 = vshrl.u32 1326507024, %v1074
  %v1090 = vor.u32 %v1088, %v1089
  %vm1091 = vcmp.lt.s32.totalorder %v1072, 1
  %vm1092 = vcmp.lt.s32.totalorder %v1072, 2
  %vm1093 = vcmp.lt.s32.totalorder %v1072, 3
  %vm1094 = vcmp.lt.s32.totalorder %v1072, 4
  %v1095 = vsel %vm1091, %v1075, %v1078
  %v1096 = vsel %vm1094, %v1084, 2102212464
  %v1097 = vsel %vm1093, %v1081, %v1096
  %v1098 = vsel %vm1092, %v1095, %v1097
  %v1099 = vsel %vm1091, %v1078, %v1081
  %v1100 = vsel %vm1094, %v1087, 920167782
  %v1101 = vsel %vm1093, %v1084, %v1100
  %v1102 = vsel %vm1092, %v1099, %v1101
  %v1103 = vsel %vm1091, %v1081, %v1084
  %v1104 = vsel %vm1094, %v1090, 1326507024
  %v1105 = vsel %vm1093, %v1087, %v1104
  %v1106 = vsel %vm1092, %v1103, %v1105
  %v1107 = vshll.u32 %v1067, 8
  %v1108 = vand.u32 %v1107, 65535
  %v1109 = vshrl.u32 %v1107, 16
  %v1110 = vand.u32 %v1106, 65535
  %v1111 = vshrl.u32 %v1106, 16
  %v1112 = vmul.u32 %v1108, %v1110
  %v1113 = vmul.u32 %v1108, %v1111
  %v1114 = vmul.u32 %v1109, %v1110
  %v1115 = vmul.u32 %v1109, %v1111
  %v1116 = vshll.u32 %v1113, 16
  %v1117 = vshrl.u32 %v1113, 16
  %v1118 = vshll.u32 %v1114, 16
  %v1119 = vshrl.u32 %v1114, 16
  %vm1120 = vc.u32 %v1112, %v1116
  %v1121 = vsel %vm1120, 1, 0
  %v1122 = vadd.s32 %v1112, %v1116
  %v1123 = vadd.s32 %v1115, %v1121
  %vm1124 = vc.u32 %v1122, %v1118
  %v1125 = vsel %vm1124, 1, 0
  %v1126 = vadd.s32 %v1122, %v1118
  %v1127 = vadd.s32 %v1123, %v1125
  %v1128 = vadd.s32 %v1127, %v1117
  %v1129 = vadd.s32 %v1128, %v1119
  %v1130 = vand.u32 %v1107, 65535
  %v1131 = vshrl.u32 %v1107, 16
  %v1132 = vand.u32 %v1102, 65535
  %v1133 = vshrl.u32 %v1102, 16
  %v1134 = vmul.u32 %v1130, %v1132
  %v1135 = vmul.u32 %v1130, %v1133
  %v1136 = vmul.u32 %v1131, %v1132
  %v1137 = vmul.u32 %v1131, %v1133
  %v1138 = vshll.u32 %v1135, 16
  %v1139 = vshrl.u32 %v1135, 16
  %v1140 = vshll.u32 %v1136, 16
  %v1141 = vshrl.u32 %v1136, 16
  %vm1142 = vc.u32 %v1134, %v1138
  %v1143 = vsel %vm1142, 1, 0
  %v1144 = vadd.s32 %v1134, %v1138
  %v1145 = vadd.s32 %v1137, %v1143
  %vm1146 = vc.u32 %v1144, %v1140
  %v1147 = vsel %vm1146, 1, 0
  %v1148 = vadd.s32 %v1144, %v1140
  %v1149 = vadd.s32 %v1145, %v1147
  %v1150 = vadd.s32 %v1149, %v1139
  %v1151 = vadd.s32 %v1150, %v1141
  %v1152 = vmul.u32 %v1107, %v1098
  %v1153 = vadd.s32 %v1129, %v1148
  %vm1154 = vc.u32 %v1129, %v1148
  %v1155 = vadd.s32 %v1151, 1
  %v1156 = vsel %vm1154, %v1155, %v1151
  %v1157 = vadd.s32 %v1152, %v1156
  %v1158 = vadd.s32 %v1157, 536870912
  %v1159 = vshrl.u32 %v1158, 30
  %v1160 = vshll.u32 %v1159, 30
  %v1161 = vsub.s32 %v1157, %v1160
  %vm1162 = vcmp.lt.s32.totalorder %v1161, 0
  %v1163 = vsub.s32 0, %v1161
  %v1164 = vsel %vm1162, %v1163, %v1161
  %v1165 = vclz %v1164
  %v1166 = vsub.s32 %v1165, 2
  %vm1167 = vcmp.gt.s32.totalorder 0, %v1166
  %v1168 = vsel %vm1167, 0, %v1166
  %v1169 = vsub.s32 32, %v1168
  %v1170 = vshll.u32 %v1161, %v1168
  %v1171 = vshrl.u32 %v1153, %v1169
  %v1172 = vor.u32 %v1170, %v1171
  %v1173 = vsub.s32 4294967266, %v1168
  %v1174 = vadd.s32 %v1173, 127
  %v1175 = vshll.u32 %v1174, 23
  %v1176 = vor.u32 4788187, %v1175
  %v1177 = vand.u32 2147483647, %v1176
  %v1179 = vcvt.s32.f32 %v1172
  %v1180 = vmul.f32 %v1179, %v1177
  %v1181 = vxor.u32 %v1180, 2147483648
  %v1182 = vsel %vm1061, %v1181, %v1180
  %v1183 = vsub.s32 4, %v1159
  %v1184 = vsel %vm1061, %v1183, %v1159
  %v1185 = vsel %vm1060, %v428, %v1182
  %v1186 = vsel %vm1060, 0, %v1184
  %v1187 = vmul.f32 %v1185, %v1185
  %v1188 = vmul.f32 %v1187, -0.001358992
  %v1189 = vadd.f32 %v1188, 0.041655596
  %v1190 = vmul.f32 %v1187, %v1189
  %v1191 = vadd.f32 %v1190, -0.4999988
  %v1192 = vmul.f32 %v1187, %v1191
  %v1193 = vadd.f32 1.0, %v1192
  %v1194 = vmul.f32 %v1185, %v1185
  %v1195 = vmul.f32 %v1194, -0.00019511016
  %v1196 = vadd.f32 %v1195, 0.008332121
  %v1197 = vmul.f32 %v1194, %v1196
  %v1198 = vadd.f32 %v1197, -0.16666654
  %v1199 = vmul.f32 %v1194, %v1198
  %v1200 = vadd.f32 %v1199, 1.0
  %v1201 = vmul.f32 %v1200, %v1185
  %vm1202 = vweird.f32 %v428
  %v1203 = vadd.s32 %v1186, 3
  %v1204 = vand.u32 %v1203, 3
  %vm1205 = vcmp.lt.s32.totalorder %v1204, 2
  %vm1206 = vcmp.eq.s32.totalorder %v1204, 0
  %v1207 = vxor.u32 %v1201, 2147483648
  %v1208 = vsel %vm1206, %v1193, %v1207
  %vm1209 = vcmp.eq.s32.totalorder %v1204, 2
  %v1210 = vxor.u32 %v1193, 2147483648
  %v1211 = vsel %vm1209, %v1210, %v1201
  %v1212 = vsel %vm1205, %v1208, %v1211
  %v1213 = vsel %vm1202, nan, %v1212
  %v1214 = vand.u32 2147483647, %v431
  %vm1215 = vcmp.le.f32.partialorder %v1214, 0.7853982
  %vm1216 = vcmp.lt.s32.totalorder %v431, 0
  %v1217 = vand.u32 %v431, 2139095040
  %v1218 = vshrl.u32 %v1217, 23
  %v1219 = vsub.s32 %v1218, 127
  %v1220 = vand.u32 2147483647, %v431
  %v1221 = vand.u32 %v1220, 8388607
  %v1222 = vor.u32 %v1221, 8388608
  %v1223 = vsub.s32 0, %v1222
  %v1224 = vadd.s32 %v1219, 1
  %vm1225 = vcmp.gt.s32.totalorder %v1224, 0
  %v1226 = vsel %vm1225, %v1224, 0
  %v1227 = vshrl.u32 %v1226, 5
  %v1228 = vand.u32 %v1226, 31
  %v1229 = vsub.s32 32, %v1228
  %v1230 = vshrl.u32 683565275, %v1229
  %v1231 = vshll.u32 683565275, %v1228
  %v1232 = vshrl.u32 2475754826, %v1229
  %v1233 = vor.u32 %v1231, %v1232
  %v1234 = vshll.u32 2475754826, %v1228
  %v1235 = vshrl.u32 2131351028, %v1229
  %v1236 = vor.u32 %v1234, %v1235
  %v1237 = vshll.u32 2131351028, %v1228
  %v1238 = vshrl.u32 2102212464, %v1229
  %v1239 = vor.u32 %v1237, %v1238
  %v1240 = vshll.u32 2102212464, %v1228
  %v1241 = vshrl.u32 920167782, %v1229
  %v1242 = vor.u32 %v1240, %v1241
  %v1243 = vshll.u32 920167782, %v1228
  %v1244 = vshrl.u32 1326507024, %v1229
  %v1245 = vor.u32 %v1243, %v1244
  %vm1246 = vcmp.lt.s32.totalorder %v1227, 1
  %vm1247 = vcmp.lt.s32.totalorder %v1227, 2
  %vm1248 = vcmp.lt.s32.totalorder %v1227, 3
  %vm1249 = vcmp.lt.s32.totalorder %v1227, 4
  %v1250 = vsel %vm1246, %v1230, %v1233
  %v1251 = vsel %vm1249, %v1239, 2102212464
  %v1252 = vsel %vm1248, %v1236, %v1251
  %v1253 = vsel %vm1247, %v1250, %v1252
  %v1254 = vsel %vm1246, %v1233, %v1236
  %v1255 = vsel %vm1249, %v1242, 920167782
  %v1256 = vsel %vm1248, %v1239, %v1255
  %v1257 = vsel %vm1247, %v1254, %v1256
  %v1258 = vsel %vm1246, %v1236, %v1239
  %v1259 = vsel %vm1249, %v1245, 1326507024
  %v1260 = vsel %vm1248, %v1242, %v1259
  %v1261 = vsel %vm1247, %v1258, %v1260
  %v1262 = vshll.u32 %v1222, 8
  %v1263 = vand.u32 %v1262, 65535
  %v1264 = vshrl.u32 %v1262, 16
  %v1265 = vand.u32 %v1261, 65535
  %v1266 = vshrl.u32 %v1261, 16
  %v1267 = vmul.u32 %v1263, %v1265
  %v1268 = vmul.u32 %v1263, %v1266
  %v1269 = vmul.u32 %v1264, %v1265
  %v1270 = vmul.u32 %v1264, %v1266
  %v1271 = vshll.u32 %v1268, 16
  %v1272 = vshrl.u32 %v1268, 16
  %v1273 = vshll.u32 %v1269, 16
  %v1274 = vshrl.u32 %v1269, 16
  %vm1275 = vc.u32 %v1267, %v1271
  %v1276 = vsel %vm1275, 1, 0
  %v1277 = vadd.s32 %v1267, %v1271
  %v1278 = vadd.s32 %v1270, %v1276
  %vm1279 = vc.u32 %v1277, %v1273
  %v1280 = vsel %vm1279, 1, 0
  %v1281 = vadd.s32 %v1277, %v1273
  %v1282 = vadd.s32 %v1278, %v1280
  %v1283 = vadd.s32 %v1282, %v1272
  %v1284 = vadd.s32 %v1283, %v1274
  %v1285 = vand.u32 %v1262, 65535
  %v1286 = vshrl.u32 %v1262, 16
  %v1287 = vand.u32 %v1257, 65535
  %v1288 = vshrl.u32 %v1257, 16
  %v1289 = vmul.u32 %v1285, %v1287
  %v1290 = vmul.u32 %v1285, %v1288
  %v1291 = vmul.u32 %v1286, %v1287
  %v1292 = vmul.u32 %v1286, %v1288
  %v1293 = vshll.u32 %v1290, 16
  %v1294 = vshrl.u32 %v1290, 16
  %v1295 = vshll.u32 %v1291, 16
  %v1296 = vshrl.u32 %v1291, 16
  %vm1297 = vc.u32 %v1289, %v1293
  %v1298 = vsel %vm1297, 1, 0
  %v1299 = vadd.s32 %v1289, %v1293
  %v1300 = vadd.s32 %v1292, %v1298
  %vm1301 = vc.u32 %v1299, %v1295
  %v1302 = vsel %vm1301, 1, 0
  %v1303 = vadd.s32 %v1299, %v1295
  %v1304 = vadd.s32 %v1300, %v1302
  %v1305 = vadd.s32 %v1304, %v1294
  %v1306 = vadd.s32 %v1305, %v1296
  %v1307 = vmul.u32 %v1262, %v1253
  %v1308 = vadd.s32 %v1284, %v1303
  %vm1309 = vc.u32 %v1284, %v1303
  %v1310 = vadd.s32 %v1306, 1
  %v1311 = vsel %vm1309, %v1310, %v1306
  %v1312 = vadd.s32 %v1307, %v1311
  %v1313 = vadd.s32 %v1312, 536870912
  %v1314 = vshrl.u32 %v1313, 30
  %v1315 = vshll.u32 %v1314, 30
  %v1316 = vsub.s32 %v1312, %v1315
  %vm1317 = vcmp.lt.s32.totalorder %v1316, 0
  %v1318 = vsub.s32 0, %v1316
  %v1319 = vsel %vm1317, %v1318, %v1316
  %v1320 = vclz %v1319
  %v1321 = vsub.s32 %v1320, 2
  %vm1322 = vcmp.gt.s32.totalorder 0, %v1321
  %v1323 = vsel %vm1322, 0, %v1321
  %v1324 = vsub.s32 32, %v1323
  %v1325 = vshll.u32 %v1316, %v1323
  %v1326 = vshrl.u32 %v1308, %v1324
  %v1327 = vor.u32 %v1325, %v1326
  %v1328 = vsub.s32 4294967266, %v1323
  %v1329 = vadd.s32 %v1328, 127
  %v1330 = vshll.u32 %v1329, 23
  %v1331 = vor.u32 4788187, %v1330
  %v1332 = vand.u32 2147483647, %v1331
  %v1334 = vcvt.s32.f32 %v1327
  %v1335 = vmul.f32 %v1334, %v1332
  %v1336 = vxor.u32 %v1335, 2147483648
  %v1337 = vsel %vm1216, %v1336, %v1335
  %v1338 = vsub.s32 4, %v1314
  %v1339 = vsel %vm1216, %v1338, %v1314
  %v1340 = vsel %vm1215, %v431, %v1337
  %v1341 = vsel %vm1215, 0, %v1339
  %v1342 = vmul.f32 %v1340, %v1340
  %v1343 = vmul.f32 %v1342, -0.001358992
  %v1344 = vadd.f32 %v1343, 0.041655596
  %v1345 = vmul.f32 %v1342, %v1344
  %v1346 = vadd.f32 %v1345, -0.4999988
  %v1347 = vmul.f32 %v1342, %v1346
  %v1348 = vadd.f32 1.0, %v1347
  %v1349 = vmul.f32 %v1340, %v1340
  %v1350 = vmul.f32 %v1349, -0.00019511016
  %v1351 = vadd.f32 %v1350, 0.008332121
  %v1352 = vmul.f32 %v1349, %v1351
  %v1353 = vadd.f32 %v1352, -0.16666654
  %v1354 = vmul.f32 %v1349, %v1353
  %v1355 = vadd.f32 %v1354, 1.0
  %v1356 = vmul.f32 %v1355, %v1340
  %vm1357 = vweird.f32 %v431
  %v1358 = vadd.s32 %v1341, 3
  %v1359 = vand.u32 %v1358, 3
  %vm1360 = vcmp.lt.s32.totalorder %v1359, 2
  %vm1361 = vcmp.eq.s32.totalorder %v1359, 0
  %v1362 = vxor.u32 %v1356, 2147483648
  %v1363 = vsel %vm1361, %v1348, %v1362
  %vm1364 = vcmp.eq.s32.totalorder %v1359, 2
  %v1365 = vxor.u32 %v1348, 2147483648
  %v1366 = vsel %vm1364, %v1365, %v1356
  %v1367 = vsel %vm1360, %v1363, %v1366
  %v1368 = vsel %vm1357, nan, %v1367
  %v1369 = vand.u32 2147483647, %v434
  %vm1370 = vcmp.le.f32.partialorder %v1369, 0.7853982
  %vm1371 = vcmp.lt.s32.totalorder %v434, 0
  %v1372 = vand.u32 %v434, 2139095040
  %v1373 = vshrl.u32 %v1372, 23
  %v1374 = vsub.s32 %v1373, 127
  %v1375 = vand.u32 2147483647, %v434
  %v1376 = vand.u32 %v1375, 8388607
  %v1377 = vor.u32 %v1376, 8388608
  %v1378 = vsub.s32 0, %v1377
  %v1379 = vadd.s32 %v1374, 1
  %vm1380 = vcmp.gt.s32.totalorder %v1379, 0
  %v1381 = vsel %vm1380, %v1379, 0
  %v1382 = vshrl.u32 %v1381, 5
  %v1383 = vand.u32 %v1381, 31
  %v1384 = vsub.s32 32, %v1383
  %v1385 = vshrl.u32 683565275, %v1384
  %v1386 = vshll.u32 683565275, %v1383
  %v1387 = vshrl.u32 2475754826, %v1384
  %v1388 = vor.u32 %v1386, %v1387
  %v1389 = vshll.u32 2475754826, %v1383
  %v1390 = vshrl.u32 2131351028, %v1384
  %v1391 = vor.u32 %v1389, %v1390
  %v1392 = vshll.u32 2131351028, %v1383
  %v1393 = vshrl.u32 2102212464, %v1384
  %v1394 = vor.u32 %v1392, %v1393
  %v1395 = vshll.u32 2102212464, %v1383
  %v1396 = vshrl.u32 920167782, %v1384
  %v1397 = vor.u32 %v1395, %v1396
  %v1398 = vshll.u32 920167782, %v1383
  %v1399 = vshrl.u32 1326507024, %v1384
  %v1400 = vor.u32 %v1398, %v1399
  %vm1401 = vcmp.lt.s32.totalorder %v1382, 1
  %vm1402 = vcmp.lt.s32.totalorder %v1382, 2
  %vm1403 = vcmp.lt.s32.totalorder %v1382, 3
  %vm1404 = vcmp.lt.s32.totalorder %v1382, 4
  %v1405 = vsel %vm1401, %v1385, %v1388
  %v1406 = vsel %vm1404, %v1394, 2102212464
  %v1407 = vsel %vm1403, %v1391, %v1406
  %v1408 = vsel %vm1402, %v1405, %v1407
  %v1409 = vsel %vm1401, %v1388, %v1391
  %v1410 = vsel %vm1404, %v1397, 920167782
  %v1411 = vsel %vm1403, %v1394, %v1410
  %v1412 = vsel %vm1402, %v1409, %v1411
  %v1413 = vsel %vm1401, %v1391, %v1394
  %v1414 = vsel %vm1404, %v1400, 1326507024
  %v1415 = vsel %vm1403, %v1397, %v1414
  %v1416 = vsel %vm1402, %v1413, %v1415
  %v1417 = vshll.u32 %v1377, 8
  %v1418 = vand.u32 %v1417, 65535
  %v1419 = vshrl.u32 %v1417, 16
  %v1420 = vand.u32 %v1416, 65535
  %v1421 = vshrl.u32 %v1416, 16
  %v1422 = vmul.u32 %v1418, %v1420
  %v1423 = vmul.u32 %v1418, %v1421
  %v1424 = vmul.u32 %v1419, %v1420
  %v1425 = vmul.u32 %v1419, %v1421
  %v1426 = vshll.u32 %v1423, 16
  %v1427 = vshrl.u32 %v1423, 16
  %v1428 = vshll.u32 %v1424, 16
  %v1429 = vshrl.u32 %v1424, 16
  %vm1430 = vc.u32 %v1422, %v1426
  %v1431 = vsel %vm1430, 1, 0
  %v1432 = vadd.s32 %v1422, %v1426
  %v1433 = vadd.s32 %v1425, %v1431
  %vm1434 = vc.u32 %v1432, %v1428
  %v1435 = vsel %vm1434, 1, 0
  %v1436 = vadd.s32 %v1432, %v1428
  %v1437 = vadd.s32 %v1433, %v1435
  %v1438 = vadd.s32 %v1437, %v1427
  %v1439 = vadd.s32 %v1438, %v1429
  %v1440 = vand.u32 %v1417, 65535
  %v1441 = vshrl.u32 %v1417, 16
  %v1442 = vand.u32 %v1412, 65535
  %v1443 = vshrl.u32 %v1412, 16
  %v1444 = vmul.u32 %v1440, %v1442
  %v1445 = vmul.u32 %v1440, %v1443
  %v1446 = vmul.u32 %v1441, %v1442
  %v1447 = vmul.u32 %v1441, %v1443
  %v1448 = vshll.u32 %v1445, 16
  %v1449 = vshrl.u32 %v1445, 16
  %v1450 = vshll.u32 %v1446, 16
  %v1451 = vshrl.u32 %v1446, 16
  %vm1452 = vc.u32 %v1444, %v1448
  %v1453 = vsel %vm1452, 1, 0
  %v1454 = vadd.s32 %v1444, %v1448
  %v1455 = vadd.s32 %v1447, %v1453
  %vm1456 = vc.u32 %v1454, %v1450
  %v1457 = vsel %vm1456, 1, 0
  %v1458 = vadd.s32 %v1454, %v1450
  %v1459 = vadd.s32 %v1455, %v1457
  %v1460 = vadd.s32 %v1459, %v1449
  %v1461 = vadd.s32 %v1460, %v1451
  %v1462 = vmul.u32 %v1417, %v1408
  %v1463 = vadd.s32 %v1439, %v1458
  %vm1464 = vc.u32 %v1439, %v1458
  %v1465 = vadd.s32 %v1461, 1
  %v1466 = vsel %vm1464, %v1465, %v1461
  %v1467 = vadd.s32 %v1462, %v1466
  %v1468 = vadd.s32 %v1467, 536870912
  %v1469 = vshrl.u32 %v1468, 30
  %v1470 = vshll.u32 %v1469, 30
  %v1471 = vsub.s32 %v1467, %v1470
  %vm1472 = vcmp.lt.s32.totalorder %v1471, 0
  %v1473 = vsub.s32 0, %v1471
  %v1474 = vsel %vm1472, %v1473, %v1471
  %v1475 = vclz %v1474
  %v1476 = vsub.s32 %v1475, 2
  %vm1477 = vcmp.gt.s32.totalorder 0, %v1476
  %v1478 = vsel %vm1477, 0, %v1476
  %v1479 = vsub.s32 32, %v1478
  %v1480 = vshll.u32 %v1471, %v1478
  %v1481 = vshrl.u32 %v1463, %v1479
  %v1482 = vor.u32 %v1480, %v1481
  %v1483 = vsub.s32 4294967266, %v1478
  %v1484 = vadd.s32 %v1483, 127
  %v1485 = vshll.u32 %v1484, 23
  %v1486 = vor.u32 4788187, %v1485
  %v1487 = vand.u32 2147483647, %v1486
  %v1489 = vcvt.s32.f32 %v1482
  %v1490 = vmul.f32 %v1489, %v1487
  %v1491 = vxor.u32 %v1490, 2147483648
  %v1492 = vsel %vm1371, %v1491, %v1490
  %v1493 = vsub.s32 4, %v1469
  %v1494 = vsel %vm1371, %v1493, %v1469
  %v1495 = vsel %vm1370, %v434, %v1492
  %v1496 = vsel %vm1370, 0, %v1494
  %v1497 = vmul.f32 %v1495, %v1495
  %v1498 = vmul.f32 %v1497, -0.001358992
  %v1499 = vadd.f32 %v1498, 0.041655596
  %v1500 = vmul.f32 %v1497, %v1499
  %v1501 = vadd.f32 %v1500, -0.4999988
  %v1502 = vmul.f32 %v1497, %v1501
  %v1503 = vadd.f32 1.0, %v1502
  %v1504 = vmul.f32 %v1495, %v1495
  %v1505 = vmul.f32 %v1504, -0.00019511016
  %v1506 = vadd.f32 %v1505, 0.008332121
  %v1507 = vmul.f32 %v1504, %v1506
  %v1508 = vadd.f32 %v1507, -0.16666654
  %v1509 = vmul.f32 %v1504, %v1508
  %v1510 = vadd.f32 %v1509, 1.0
  %v1511 = vmul.f32 %v1510, %v1495
  %vm1512 = vweird.f32 %v434
  %v1513 = vadd.s32 %v1496, 3
  %v1514 = vand.u32 %v1513, 3
  %vm1515 = vcmp.lt.s32.totalorder %v1514, 2
  %vm1516 = vcmp.eq.s32.totalorder %v1514, 0
  %v1517 = vxor.u32 %v1511, 2147483648
  %v1518 = vsel %vm1516, %v1503, %v1517
  %vm1519 = vcmp.eq.s32.totalorder %v1514, 2
  %v1520 = vxor.u32 %v1503, 2147483648
  %v1521 = vsel %vm1519, %v1520, %v1511
  %v1522 = vsel %vm1515, %v1518, %v1521
  %v1523 = vsel %vm1512, nan, %v1522
  %v1524 = vand.u32 2147483647, %v437
  %vm1525 = vcmp.le.f32.partialorder %v1524, 0.7853982
  %vm1526 = vcmp.lt.s32.totalorder %v437, 0
  %v1527 = vand.u32 %v437, 2139095040
  %v1528 = vshrl.u32 %v1527, 23
  %v1529 = vsub.s32 %v1528, 127
  %v1530 = vand.u32 2147483647, %v437
  %v1531 = vand.u32 %v1530, 8388607
  %v1532 = vor.u32 %v1531, 8388608
  %v1533 = vsub.s32 0, %v1532
  %v1534 = vadd.s32 %v1529, 1
  %vm1535 = vcmp.gt.s32.totalorder %v1534, 0
  %v1536 = vsel %vm1535, %v1534, 0
  %v1537 = vshrl.u32 %v1536, 5
  %v1538 = vand.u32 %v1536, 31
  %v1539 = vsub.s32 32, %v1538
  %v1540 = vshrl.u32 683565275, %v1539
  %v1541 = vshll.u32 683565275, %v1538
  %v1542 = vshrl.u32 2475754826, %v1539
  %v1543 = vor.u32 %v1541, %v1542
  %v1544 = vshll.u32 2475754826, %v1538
  %v1545 = vshrl.u32 2131351028, %v1539
  %v1546 = vor.u32 %v1544, %v1545
  %v1547 = vshll.u32 2131351028, %v1538
  %v1548 = vshrl.u32 2102212464, %v1539
  %v1549 = vor.u32 %v1547, %v1548
  %v1550 = vshll.u32 2102212464, %v1538
  %v1551 = vshrl.u32 920167782, %v1539
  %v1552 = vor.u32 %v1550, %v1551
  %v1553 = vshll.u32 920167782, %v1538
  %v1554 = vshrl.u32 1326507024, %v1539
  %v1555 = vor.u32 %v1553, %v1554
  %vm1556 = vcmp.lt.s32.totalorder %v1537, 1
  %vm1557 = vcmp.lt.s32.totalorder %v1537, 2
  %vm1558 = vcmp.lt.s32.totalorder %v1537, 3
  %vm1559 = vcmp.lt.s32.totalorder %v1537, 4
  %v1560 = vsel %vm1556, %v1540, %v1543
  %v1561 = vsel %vm1559, %v1549, 2102212464
  %v1562 = vsel %vm1558, %v1546, %v1561
  %v1563 = vsel %vm1557, %v1560, %v1562
  %v1564 = vsel %vm1556, %v1543, %v1546
  %v1565 = vsel %vm1559, %v1552, 920167782
  %v1566 = vsel %vm1558, %v1549, %v1565
  %v1567 = vsel %vm1557, %v1564, %v1566
  %v1568 = vsel %vm1556, %v1546, %v1549
  %v1569 = vsel %vm1559, %v1555, 1326507024
  %v1570 = vsel %vm1558, %v1552, %v1569
  %v1571 = vsel %vm1557, %v1568, %v1570
  %v1572 = vshll.u32 %v1532, 8
  %v1573 = vand.u32 %v1572, 65535
  %v1574 = vshrl.u32 %v1572, 16
  %v1575 = vand.u32 %v1571, 65535
  %v1576 = vshrl.u32 %v1571, 16
  %v1577 = vmul.u32 %v1573, %v1575
  %v1578 = vmul.u32 %v1573, %v1576
  %v1579 = vmul.u32 %v1574, %v1575
  %v1580 = vmul.u32 %v1574, %v1576
  %v1581 = vshll.u32 %v1578, 16
  %v1582 = vshrl.u32 %v1578, 16
  %v1583 = vshll.u32 %v1579, 16
  %v1584 = vshrl.u32 %v1579, 16
  %vm1585 = vc.u32 %v1577, %v1581
  %v1586 = vsel %vm1585, 1, 0
  %v1587 = vadd.s32 %v1577, %v1581
  %v1588 = vadd.s32 %v1580, %v1586
  %vm1589 = vc.u32 %v1587, %v1583
  %v1590 = vsel %vm1589, 1, 0
  %v1591 = vadd.s32 %v1587, %v1583
  %v1592 = vadd.s32 %v1588, %v1590
  %v1593 = vadd.s32 %v1592, %v1582
  %v1594 = vadd.s32 %v1593, %v1584
  %v1595 = vand.u32 %v1572, 65535
  %v1596 = vshrl.u32 %v1572, 16
  %v1597 = vand.u32 %v1567, 65535
  %v1598 = vshrl.u32 %v1567, 16
  %v1599 = vmul.u32 %v1595, %v1597
  %v1600 = vmul.u32 %v1595, %v1598
  %v1601 = vmul.u32 %v1596, %v1597
  %v1602 = vmul.u32 %v1596, %v1598
  %v1603 = vshll.u32 %v1600, 16
  %v1604 = vshrl.u32 %v1600, 16
  %v1605 = vshll.u32 %v1601, 16
  %v1606 = vshrl.u32 %v1601, 16
  %vm1607 = vc.u32 %v1599, %v1603
  %v1608 = vsel %vm1607, 1, 0
  %v1609 = vadd.s32 %v1599, %v1603
  %v1610 = vadd.s32 %v1602, %v1608
  %vm1611 = vc.u32 %v1609, %v1605
  %v1612 = vsel %vm1611, 1, 0
  %v1613 = vadd.s32 %v1609, %v1605
  %v1614 = vadd.s32 %v1610, %v1612
  %v1615 = vadd.s32 %v1614, %v1604
  %v1616 = vadd.s32 %v1615, %v1606
  %v1617 = vmul.u32 %v1572, %v1563
  %v1618 = vadd.s32 %v1594, %v1613
  %vm1619 = vc.u32 %v1594, %v1613
  %v1620 = vadd.s32 %v1616, 1
  %v1621 = vsel %vm1619, %v1620, %v1616
  %v1622 = vadd.s32 %v1617, %v1621
  %v1623 = vadd.s32 %v1622, 536870912
  %v1624 = vshrl.u32 %v1623, 30
  %v1625 = vshll.u32 %v1624, 30
  %v1626 = vsub.s32 %v1622, %v1625
  %vm1627 = vcmp.lt.s32.totalorder %v1626, 0
  %v1628 = vsub.s32 0, %v1626
  %v1629 = vsel %vm1627, %v1628, %v1626
  %v1630 = vclz %v1629
  %v1631 = vsub.s32 %v1630, 2
  %vm1632 = vcmp.gt.s32.totalorder 0, %v1631
  %v1633 = vsel %vm1632, 0, %v1631
  %v1634 = vsub.s32 32, %v1633
  %v1635 = vshll.u32 %v1626, %v1633
  %v1636 = vshrl.u32 %v1618, %v1634
  %v1637 = vor.u32 %v1635, %v1636
  %v1638 = vsub.s32 4294967266, %v1633
  %v1639 = vadd.s32 %v1638, 127
  %v1640 = vshll.u32 %v1639, 23
  %v1641 = vor.u32 4788187, %v1640
  %v1642 = vand.u32 2147483647, %v1641
  %v1644 = vcvt.s32.f32 %v1637
  %v1645 = vmul.f32 %v1644, %v1642
  %v1646 = vxor.u32 %v1645, 2147483648
  %v1647 = vsel %vm1526, %v1646, %v1645
  %v1648 = vsub.s32 4, %v1624
  %v1649 = vsel %vm1526, %v1648, %v1624
  %v1650 = vsel %vm1525, %v437, %v1647
  %v1651 = vsel %vm1525, 0, %v1649
  %v1652 = vmul.f32 %v1650, %v1650
  %v1653 = vmul.f32 %v1652, -0.001358992
  %v1654 = vadd.f32 %v1653, 0.041655596
  %v1655 = vmul.f32 %v1652, %v1654
  %v1656 = vadd.f32 %v1655, -0.4999988
  %v1657 = vmul.f32 %v1652, %v1656
  %v1658 = vadd.f32 1.0, %v1657
  %v1659 = vmul.f32 %v1650, %v1650
  %v1660 = vmul.f32 %v1659, -0.00019511016
  %v1661 = vadd.f32 %v1660, 0.008332121
  %v1662 = vmul.f32 %v1659, %v1661
  %v1663 = vadd.f32 %v1662, -0.16666654
  %v1664 = vmul.f32 %v1659, %v1663
  %v1665 = vadd.f32 %v1664, 1.0
  %v1666 = vmul.f32 %v1665, %v1650
  %vm1667 = vweird.f32 %v437
  %v1668 = vadd.s32 %v1651, 3
  %v1669 = vand.u32 %v1668, 3
  %vm1670 = vcmp.lt.s32.totalorder %v1669, 2
  %vm1671 = vcmp.eq.s32.totalorder %v1669, 0
  %v1672 = vxor.u32 %v1666, 2147483648
  %v1673 = vsel %vm1671, %v1658, %v1672
  %vm1674 = vcmp.eq.s32.totalorder %v1669, 2
  %v1675 = vxor.u32 %v1658, 2147483648
  %v1676 = vsel %vm1674, %v1675, %v1666
  %v1677 = vsel %vm1670, %v1673, %v1676
  %v1678 = vsel %vm1667, nan, %v1677
  %v1679 = vadd.f32 %v352, %v593
  %v1680 = vadd.f32 %v353, %v748
  %v1681 = vadd.f32 %v354, %v903
  %v1682 = vadd.f32 %v355, %v1058
  %v1683 = vadd.f32 %v356, %v1213
  %v1684 = vadd.f32 %v357, %v1368
  %v1685 = vadd.f32 %v358, %v1523
  %v1686 = vadd.f32 %v359, %v1678
  %v1687 = vmul.f32 %v1679, %v593
  %v1688 = vmul.f32 %v1680, %v748
  %v1689 = vmul.f32 %v1681, %v903
  %v1690 = vmul.f32 %v1682, %v1058
  %v1691 = vmul.f32 %v1683, %v1213
  %v1692 = vmul.f32 %v1684, %v1368
  %v1693 = vmul.f32 %v1685, %v1523
  %v1694 = vmul.f32 %v1686, %v1678
  %v1695 = vpack.c.bf16 %v1687, %v1687
  %v1696 = vpack.c.bf16 %v1688, %v1688
  %v1697 = vpack.c.bf16 %v1689, %v1689
  %v1698 = vpack.c.bf16 %v1690, %v1690
  %v1699 = vpack.c.bf16 %v1691, %v1691
  %v1700 = vpack.c.bf16 %v1692, %v1692
  %v1701 = vpack.c.bf16 %v1693, %v1693
  %v1702 = vpack.c.bf16 %v1694, %v1694
  %1703 = vst [vmem:[%s8] sm:$0xf] %v1695
  %1704 = vst [vmem:[%s8 + $0x4] sm:$0xf] %v1696
  %1705 = vst [vmem:[%s8 + $0x8] sm:$0xf] %v1697
  %1706 = vst [vmem:[%s8 + $0xc] sm:$0xf] %v1698
  %1707 = vst [vmem:[%s8 + $0x10] sm:$0xf] %v1699
  %1708 = vst [vmem:[%s8 + $0x14] sm:$0xf] %v1700
  %1709 = vst [vmem:[%s8 + $0x18] sm:$0xf] %v1701
  %1710 = vst [vmem:[%s8 + $0x1c] sm:$0xf] %v1702
  // Predicated region
  $region34: #{encp_forward.9} parent=0 // pred_check
    _
  $region35: #{encp_forward.9} parent=0 // pred_check_branch
    %1712 = sbr.rel (0) target = $region37
  $region36: #{encp_forward.9} parent=0 // pred_region
    _
  $region37: #{encp_forward.9} parent=0 // pred_fallthru
    _
  // Predicated region
  $region38: #{encp_forward.9} parent=0 // pred_check
    _
  $region39: #{encp_forward.9} parent=0 // pred_check_branch
    %1714 = sbr.rel (0) target = $region41
  $region40: #{encp_forward.9} parent=0 // pred_region
    _
  $region41: #{encp_forward.9} parent=0 // pred_fallthru
    _

// kernel: encp_forward.10
$region0: #{encp_forward.10}
  #allocation0 [shape = 'u32[]', space=smem, size = 0x4, offset = 0x4, fixed_abs, tag = 'smem constant byte address 0x4 - core index']
  #allocation1 [shape = 'u32[72,128]{1,0:T(1,128)}', space=vmem, size = 0x9000, scoped, tag = 'internal scratch']
  %s0 = inlined_call_operand.vmem [shape: bf16[64,128], index: 0, kind: input, shape index: {}]
  %s1 = inlined_call_operand.vmem [shape: bf16[128,128], index: 1, kind: input, shape index: {}]
  %s2 = inlined_call_operand.vmem [shape: f32[2,128], index: 2, kind: input, shape index: {}]
  %s3 = inlined_call_operand.vmem [shape: bf16[128,128], index: 3, kind: input, shape index: {}]
  %s4 = inlined_call_operand.vmem [shape: f32[2,128], index: 4, kind: input, shape index: {}]
  %s5 = inlined_call_operand.vmem [shape: bf16[64,128], index: 5, kind: output, shape index: {}]
  %s6 = sld [smem:[#allocation0]]
  $region30: #{encp_forward.10} parent=0
    _
  %s8 = ssub.s32 1, %s6
  %s9 = scalar_select 0, %s8, %s6
  // Predicated region
  $region2: #{encp_forward.10} parent=0 // pred_check
    _
  $region3: #{encp_forward.10} parent=0 // pred_check_branch
    %11 = sbr.rel (0) target = $region5
  $region4: #{encp_forward.10} parent=0 // pred_region
    _
  $region5: #{encp_forward.10} parent=0 // pred_fallthru
    _
  // Predicated region
  $region6: #{encp_forward.10} parent=0 // pred_check
    _
  $region7: #{encp_forward.10} parent=0 // pred_check_branch
    %13 = sbr.rel (0) target = $region9
  $region8: #{encp_forward.10} parent=0 // pred_region
    _
  $region9: #{encp_forward.10} parent=0 // pred_fallthru
    _
  // Predicated region
  $region10: #{encp_forward.10} parent=0 // pred_check
    _
  $region11: #{encp_forward.10} parent=0 // pred_check_branch
    %15 = sbr.rel (0) target = $region13
  $region12: #{encp_forward.10} parent=0 // pred_region
    _
  $region13: #{encp_forward.10} parent=0 // pred_fallthru
    _
  // Predicated region
  $region14: #{encp_forward.10} parent=0 // pred_check
    _
  $region15: #{encp_forward.10} parent=0 // pred_check_branch
    %17 = sbr.rel (0) target = $region17
  $region16: #{encp_forward.10} parent=0 // pred_region
    _
  $region17: #{encp_forward.10} parent=0 // pred_fallthru
    _
  // Predicated region
  $region18: #{encp_forward.10} parent=0 // pred_check
    _
  $region19: #{encp_forward.10} parent=0 // pred_check_branch
    %19 = sbr.rel (0) target = $region21
  $region20: #{encp_forward.10} parent=0 // pred_region
    _
  $region21: #{encp_forward.10} parent=0 // pred_fallthru
    _
  %v20 = vld [vmem:[%s0] sm:$0xf]
  %v21 = vld [vmem:[%s0 + $0x4] sm:$0xf]
  %v22 = vld [vmem:[%s0 + $0x8] sm:$0xf]
  %v23 = vld [vmem:[%s0 + $0xc] sm:$0xf]
  %v24 = vld [vmem:[%s0 + $0x10] sm:$0xf]
  %v25 = vld [vmem:[%s0 + $0x14] sm:$0xf]
  %v26 = vld [vmem:[%s0 + $0x18] sm:$0xf]
  %v27 = vld [vmem:[%s0 + $0x1c] sm:$0xf]
  %v28 = vld [vmem:[%s1] sm:$0xf]
  %v29 = vld [vmem:[%s1 + $0x4] sm:$0xf]
  %v30 = vld [vmem:[%s1 + $0x8] sm:$0xf]
  %v31 = vld [vmem:[%s1 + $0xc] sm:$0xf]
  %v32 = vld [vmem:[%s1 + $0x10] sm:$0xf]
  %v33 = vld [vmem:[%s1 + $0x14] sm:$0xf]
  %v34 = vld [vmem:[%s1 + $0x18] sm:$0xf]
  %v35 = vld [vmem:[%s1 + $0x1c] sm:$0xf]
  %v36 = vld [vmem:[%s1 + $0x20] sm:$0xf]
  %v37 = vld [vmem:[%s1 + $0x24] sm:$0xf]
  %v38 = vld [vmem:[%s1 + $0x28] sm:$0xf]
  %v39 = vld [vmem:[%s1 + $0x2c] sm:$0xf]
  %v40 = vld [vmem:[%s1 + $0x30] sm:$0xf]
  %v41 = vld [vmem:[%s1 + $0x34] sm:$0xf]
  %v42 = vld [vmem:[%s1 + $0x38] sm:$0xf]
  %v43 = vld [vmem:[%s1 + $0x3c] sm:$0xf]
  %v52 = vunpack.c.l.b16 %v20
  %v53 = vunpack.c.l.b16 %v21
  %v54 = vunpack.c.l.b16 %v22
  %v55 = vunpack.c.l.b16 %v23
  %v56 = vunpack.c.l.b16 %v24
  %v57 = vunpack.c.l.b16 %v25
  %v58 = vunpack.c.l.b16 %v26
  %v59 = vunpack.c.l.b16 %v27
  %v60 = vpack.c.b16 %v53, %v52
  %v61 = vpack.c.b16 %v55, %v54
  %v62 = vpack.c.b16 %v57, %v56
  %v63 = vpack.c.b16 %v59, %v58
  %v84 = vunpack.c.l.b16 %v28
  %v85 = vunpack.c.l.b16 %v29
  %v86 = vunpack.c.l.b16 %v30
  %v87 = vunpack.c.l.b16 %v31
  %v88 = vunpack.c.l.b16 %v32
  %v89 = vunpack.c.l.b16 %v33
  %v90 = vunpack.c.l.b16 %v34
  %v91 = vunpack.c.l.b16 %v35
  %v92 = vunpack.c.l.b16 %v36
  %v93 = vunpack.c.l.b16 %v37
  %v94 = vunpack.c.l.b16 %v38
  %v95 = vunpack.c.l.b16 %v39
  %v96 = vunpack.c.l.b16 %v40
  %v97 = vunpack.c.l.b16 %v41
  %v98 = vunpack.c.l.b16 %v42
  %v99 = vunpack.c.l.b16 %v43
  %v100 = vpack.c.b16 %v85, %v84
  %v101 = vpack.c.b16 %v87, %v86
  %v102 = vpack.c.b16 %v89, %v88
  %v103 = vpack.c.b16 %v91, %v90
  %v104 = vpack.c.b16 %v93, %v92
  %v105 = vpack.c.b16 %v95, %v94
  %v106 = vpack.c.b16 %v97, %v96
  %v107 = vpack.c.b16 %v99, %v98
  %116 = vmatpush.bf16.msra.mxu0 %v107
  %117 = vmatpush.bf16.msra.mxu0 %v106
  %118 = vmatpush.bf16.msra.mxu0 %v105
  %119 = vmatpush.bf16.msra.mxu0 %v104
  %120 = vmatpush.bf16.msra.mxu0 %v103
  %121 = vmatpush.bf16.msra.mxu0 %v102
  %122 = vmatpush.bf16.msra.mxu0 %v101
  %123 = vmatpush.bf16.msra.mxu0 %v100
  %124 = vmatmul.bf16.gmra.mxu0 %v60
  %v125 = vpop.f32.mrf.mxu0
  %v126 = vadd.f32 0.0, %v125
  %v127 = vpop.f32.mrf.mxu0
  %v128 = vadd.f32 0.0, %v127
  %129 = vmatmul.bf16.gmra.mxu0 %v61
  %v130 = vpop.f32.mrf.mxu0
  %v131 = vadd.f32 0.0, %v130
  %v132 = vpop.f32.mrf.mxu0
  %v133 = vadd.f32 0.0, %v132
  %134 = vmatmul.bf16.gmra.mxu0 %v62
  %v135 = vpop.f32.mrf.mxu0
  %v136 = vadd.f32 0.0, %v135
  %v137 = vpop.f32.mrf.mxu0
  %v138 = vadd.f32 0.0, %v137
  %139 = vmatmul.bf16.gmra.mxu0 %v63
  %v140 = vpop.f32.mrf.mxu0
  %v141 = vadd.f32 0.0, %v140
  %v142 = vpop.f32.mrf.mxu0
  %v143 = vadd.f32 0.0, %v142
  %144 = vdwg.mxu0
  %v145 = vadd.f32 %v126, %v128
  %v146 = vadd.f32 %v145, %v131
  %v147 = vadd.f32 %v146, %v133
  %v148 = vadd.f32 %v147, %v136
  %v149 = vadd.f32 %v148, %v138
  %v150 = vadd.f32 %v149, %v141
  %v151 = vadd.f32 %v150, %v143
  %v152 = vrot.slane %v151, 4
  %v153 = vadd.f32 %v151, %v152
  %v154 = vrot.slane %v153, 2
  %v155 = vadd.f32 %v153, %v154
  %v156 = vrot.slane %v155, 1
  %v157 = vadd.f32 %v155, %v156
  %v158 = vmul.f32 %v126, %v126
  %v159 = vmul.f32 %v128, %v128
  %v160 = vmul.f32 %v131, %v131
  %v161 = vmul.f32 %v133, %v133
  %v162 = vmul.f32 %v136, %v136
  %v163 = vmul.f32 %v138, %v138
  %v164 = vmul.f32 %v141, %v141
  %v165 = vmul.f32 %v143, %v143
  %v166 = vadd.f32 %v158, %v159
  %v167 = vadd.f32 %v166, %v160
  %v168 = vadd.f32 %v167, %v161
  %v169 = vadd.f32 %v168, %v162
  %v170 = vadd.f32 %v169, %v163
  %v171 = vadd.f32 %v170, %v164
  %v172 = vadd.f32 %v171, %v165
  %v173 = vrot.slane %v172, 4
  %v174 = vadd.f32 %v172, %v173
  %v175 = vrot.slane %v174, 2
  %v176 = vadd.f32 %v174, %v175
  %v177 = vrot.slane %v176, 1
  %v178 = vadd.f32 %v176, %v177
  %v179 = vld [vmem:[%s2] sm:$0x1]
  %v180 = vld [vmem:[%s2 + $0x1] sm:$0x1]
  %v181 = vmul.f32 %v157, 0.015625
  %v182 = vmul.f32 %v178, 0.015625
  %v183 = vmul.f32 %v181, %v181
  %v184 = vsub.f32 %v182, %v183
  %v185 = vmax.f32 %v184, 0.0
  %v186 = vadd.f32 %v185, 1e-05
  %v187 = vrsqrt.pop %v186
  %v188 = vmul.f32 %v187, %v186
  %v189 = vmul.f32 %v188, %v187
  %v190 = vmul.f32 0.5, %v189
  %v191 = vsub.f32 1.5, %v190
  %v192 = vmul.f32 %v187, %v191
  %vm193 = vweird.f32 %v186
  %vm194 = vweird.f32 %v187
  %vm195 = vmor %vm193, %vm194
  %v196 = vsel %vm195, %v187, %v192
  %v197 = vmul.f32 %v179, %v196
  %v198 = vmul.f32 %v181, %v197
  %v199 = vsub.f32 %v180, %v198
  %v200 = vperm.slane %v197, 0
  %v201 = vmul.f32 %v126, %v200
  %v202 = vmul.f32 %v128, %v200
  %v203 = vmul.f32 %v131, %v200
  %v204 = vmul.f32 %v133, %v200
  %v205 = vmul.f32 %v136, %v200
  %v206 = vmul.f32 %v138, %v200
  %v207 = vmul.f32 %v141, %v200
  %v208 = vmul.f32 %v143, %v200
  %v209 = vperm.slane %v199, 0
  %v210 = vadd.f32 %v201, %v209
  %v211 = vadd.f32 %v202, %v209
  %v212 = vadd.f32 %v203, %v209
  %v213 = vadd.f32 %v204, %v209
  %v214 = vadd.f32 %v205, %v209
  %v215 = vadd.f32 %v206, %v209
  %v216 = vadd.f32 %v207, %v209
  %v217 = vadd.f32 %v208, %v209
  %v218 = vmax.f32 %v210, 0.0
  %v219 = vmax.f32 %v211, 0.0
  %v220 = vmax.f32 %v212, 0.0
  %v221 = vmax.f32 %v213, 0.0
  %v222 = vmax.f32 %v214, 0.0
  %v223 = vmax.f32 %v215, 0.0
  %v224 = vmax.f32 %v216, 0.0
  %v225 = vmax.f32 %v217, 0.0
  %v226 = vpack.c.bf16 %v219, %v218
  %v227 = vpack.c.bf16 %v221, %v220
  %v228 = vpack.c.bf16 %v223, %v222
  %v229 = vpack.c.bf16 %v225, %v224
  %v230 = vld [vmem:[%s3] sm:$0xf]
  %v231 = vld [vmem:[%s3 + $0x4] sm:$0xf]
  %v232 = vld [vmem:[%s3 + $0x8] sm:$0xf]
  %v233 = vld [vmem:[%s3 + $0xc] sm:$0xf]
  %v234 = vld [vmem:[%s3 + $0x10] sm:$0xf]
  %v235 = vld [vmem:[%s3 + $0x14] sm:$0xf]
  %v236 = vld [vmem:[%s3 + $0x18] sm:$0xf]
  %v237 = vld [vmem:[%s3 + $0x1c] sm:$0xf]
  %v238 = vld [vmem:[%s3 + $0x20] sm:$0xf]
  %v239 = vld [vmem:[%s3 + $0x24] sm:$0xf]
  %v240 = vld [vmem:[%s3 + $0x28] sm:$0xf]
  %v241 = vld [vmem:[%s3 + $0x2c] sm:$0xf]
  %v242 = vld [vmem:[%s3 + $0x30] sm:$0xf]
  %v243 = vld [vmem:[%s3 + $0x34] sm:$0xf]
  %v244 = vld [vmem:[%s3 + $0x38] sm:$0xf]
  %v245 = vld [vmem:[%s3 + $0x3c] sm:$0xf]
  %v262 = vunpack.c.l.b16 %v230
  %v263 = vunpack.c.l.b16 %v231
  %v264 = vunpack.c.l.b16 %v232
  %v265 = vunpack.c.l.b16 %v233
  %v266 = vunpack.c.l.b16 %v234
  %v267 = vunpack.c.l.b16 %v235
  %v268 = vunpack.c.l.b16 %v236
  %v269 = vunpack.c.l.b16 %v237
  %v270 = vunpack.c.l.b16 %v238
  %v271 = vunpack.c.l.b16 %v239
  %v272 = vunpack.c.l.b16 %v240
  %v273 = vunpack.c.l.b16 %v241
  %v274 = vunpack.c.l.b16 %v242
  %v275 = vunpack.c.l.b16 %v243
  %v276 = vunpack.c.l.b16 %v244
  %v277 = vunpack.c.l.b16 %v245
  %v278 = vpack.c.b16 %v263, %v262
  %v279 = vpack.c.b16 %v265, %v264
  %v280 = vpack.c.b16 %v267, %v266
  %v281 = vpack.c.b16 %v269, %v268
  %v282 = vpack.c.b16 %v271, %v270
  %v283 = vpack.c.b16 %v273, %v272
  %v284 = vpack.c.b16 %v275, %v274
  %v285 = vpack.c.b16 %v277, %v276
  %294 = vmatpush.bf16.msra.mxu0 %v285
  %295 = vmatpush.bf16.msra.mxu0 %v284
  %296 = vmatpush.bf16.msra.mxu0 %v283
  %297 = vmatpush.bf16.msra.mxu0 %v282
  %298 = vmatpush.bf16.msra.mxu0 %v281
  %299 = vmatpush.bf16.msra.mxu0 %v280
  %300 = vmatpush.bf16.msra.mxu0 %v279
  %301 = vmatpush.bf16.msra.mxu0 %v278
  %302 = vmatmul.bf16.gmra.mxu0 %v226
  %v303 = vpop.f32.mrf.mxu0
  %v304 = vadd.f32 0.0, %v303
  %v305 = vpop.f32.mrf.mxu0
  %v306 = vadd.f32 0.0, %v305
  %307 = vmatmul.bf16.gmra.mxu0 %v227
  %v308 = vpop.f32.mrf.mxu0
  %v309 = vadd.f32 0.0, %v308
  %v310 = vpop.f32.mrf.mxu0
  %v311 = vadd.f32 0.0, %v310
  %312 = vmatmul.bf16.gmra.mxu0 %v228
  %v313 = vpop.f32.mrf.mxu0
  %v314 = vadd.f32 0.0, %v313
  %v315 = vpop.f32.mrf.mxu0
  %v316 = vadd.f32 0.0, %v315
  %317 = vmatmul.bf16.gmra.mxu0 %v229
  %v318 = vpop.f32.mrf.mxu0
  %v319 = vadd.f32 0.0, %v318
  %v320 = vpop.f32.mrf.mxu0
  %v321 = vadd.f32 0.0, %v320
  %322 = vdwg.mxu0
  %v323 = vadd.f32 %v304, %v306
  %v324 = vadd.f32 %v323, %v309
  %v325 = vadd.f32 %v324, %v311
  %v326 = vadd.f32 %v325, %v314
  %v327 = vadd.f32 %v326, %v316
  %v328 = vadd.f32 %v327, %v319
  %v329 = vadd.f32 %v328, %v321
  %v330 = vrot.slane %v329, 4
  %v331 = vadd.f32 %v329, %v330
  %v332 = vrot.slane %v331, 2
  %v333 = vadd.f32 %v331, %v332
  %v334 = vrot.slane %v333, 1
  %v335 = vadd.f32 %v333, %v334
  %v336 = vmul.f32 %v304, %v304
  %v337 = vmul.f32 %v306, %v306
  %v338 = vmul.f32 %v309, %v309
  %v339 = vmul.f32 %v311, %v311
  %v340 = vmul.f32 %v314, %v314
  %v341 = vmul.f32 %v316, %v316
  %v342 = vmul.f32 %v319, %v319
  %v343 = vmul.f32 %v321, %v321
  %v344 = vadd.f32 %v336, %v337
  %v345 = vadd.f32 %v344, %v338
  %v346 = vadd.f32 %v345, %v339
  %v347 = vadd.f32 %v346, %v340
  %v348 = vadd.f32 %v347, %v341
  %v349 = vadd.f32 %v348, %v342
  %v350 = vadd.f32 %v349, %v343
  %v351 = vrot.slane %v350, 4
  %v352 = vadd.f32 %v350, %v351
  %v353 = vrot.slane %v352, 2
  %v354 = vadd.f32 %v352, %v353
  %v355 = vrot.slane %v354, 1
  %v356 = vadd.f32 %v354, %v355
  %v357 = vld [vmem:[%s4] sm:$0x1]
  %v358 = vld [vmem:[%s4 + $0x1] sm:$0x1]
  %v359 = vmul.f32 %v335, 0.015625
  %v360 = vmul.f32 %v356, 0.015625
  %v361 = vmul.f32 %v359, %v359
  %v362 = vsub.f32 %v360, %v361
  %v363 = vmax.f32 %v362, 0.0
  %v364 = vadd.f32 %v363, 1e-05
  %v365 = vrsqrt.pop %v364
  %v366 = vmul.f32 %v365, %v364
  %v367 = vmul.f32 %v366, %v365
  %v368 = vmul.f32 0.5, %v367
  %v369 = vsub.f32 1.5, %v368
  %v370 = vmul.f32 %v365, %v369
  %vm371 = vweird.f32 %v364
  %vm372 = vweird.f32 %v365
  %vm373 = vmor %vm371, %vm372
  %v374 = vsel %vm373, %v365, %v370
  %v375 = vmul.f32 %v357, %v374
  %v376 = vmul.f32 %v359, %v375
  %v377 = vsub.f32 %v358, %v376
  %v378 = vperm.slane %v375, 0
  %v379 = vmul.f32 %v304, %v378
  %v380 = vmul.f32 %v306, %v378
  %v381 = vmul.f32 %v309, %v378
  %v382 = vmul.f32 %v311, %v378
  %v383 = vmul.f32 %v314, %v378
  %v384 = vmul.f32 %v316, %v378
  %v385 = vmul.f32 %v319, %v378
  %v386 = vmul.f32 %v321, %v378
  %v387 = vperm.slane %v377, 0
  %v388 = vadd.f32 %v379, %v387
  %v389 = vadd.f32 %v380, %v387
  %v390 = vadd.f32 %v381, %v387
  %v391 = vadd.f32 %v382, %v387
  %v392 = vadd.f32 %v383, %v387
  %v393 = vadd.f32 %v384, %v387
  %v394 = vadd.f32 %v385, %v387
  %v395 = vadd.f32 %v386, %v387
  %v396 = vunpack.c.l.bf16 %v20
  %v397 = vunpack.c.l.bf16 %v21
  %v398 = vunpack.c.l.bf16 %v22
  %v399 = vunpack.c.l.bf16 %v23
  %v400 = vunpack.c.l.bf16 %v24
  %v401 = vunpack.c.l.bf16 %v25
  %v402 = vunpack.c.l.bf16 %v26
  %v403 = vunpack.c.l.bf16 %v27
  %v404 = vadd.f32 %v388, %v396
  %v405 = vadd.f32 %v389, %v397
  %v406 = vadd.f32 %v390, %v398
  %v407 = vadd.f32 %v391, %v399
  %v408 = vadd.f32 %v392, %v400
  %v409 = vadd.f32 %v393, %v401
  %v410 = vadd.f32 %v394, %v402
  %v411 = vadd.f32 %v395, %v403
  %v412 = vmax.f32 %v404, 0.0
  %v413 = vmax.f32 %v405, 0.0
  %v414 = vmax.f32 %v406, 0.0
  %v415 = vmax.f32 %v407, 0.0
  %v416 = vmax.f32 %v408, 0.0
  %v417 = vmax.f32 %v409, 0.0
  %v418 = vmax.f32 %v410, 0.0
  %v419 = vmax.f32 %v411, 0.0
  %v420 = vpack.c.bf16 %v412, %v412
  %v421 = vpack.c.bf16 %v413, %v413
  %v422 = vpack.c.bf16 %v414, %v414
  %v423 = vpack.c.bf16 %v415, %v415
  %v424 = vpack.c.bf16 %v416, %v416
  %v425 = vpack.c.bf16 %v417, %v417
  %v426 = vpack.c.bf16 %v418, %v418
  %v427 = vpack.c.bf16 %v419, %v419
  %428 = vst [vmem:[%s5] sm:$0xf] %v420
  %429 = vst [vmem:[%s5 + $0x4] sm:$0xf] %v421
  %430 = vst [vmem:[%s5 + $0x8] sm:$0xf] %v422
  %431 = vst [vmem:[%s5 + $0xc] sm:$0xf] %v423
  %432 = vst [vmem:[%s5 + $0x10] sm:$0xf] %v424
  %433 = vst [vmem:[%s5 + $0x14] sm:$0xf] %v425
  %434 = vst [vmem:[%s5 + $0x18] sm:$0xf] %v426
  %435 = vst [vmem:[%s5 + $0x1c] sm:$0xf] %v427
  // Predicated region
  $region22: #{encp_forward.10} parent=0 // pred_check
    _
  $region23: #{encp_forward.10} parent=0 // pred_check_branch
    %437 = sbr.rel (0) target = $region25
  $region24: #{encp_forward.10} parent=0 // pred_region
    _
  $region25: #{encp_forward.10} parent=0 // pred_fallthru
    _
  // Predicated region
  $region26: #{encp_forward.10} parent=0 // pred_check
    _
  $region27: #{encp_forward.10} parent=0 // pred_check_branch
    %439 = sbr.rel (0) target = $region29
  $region28: #{encp_forward.10} parent=0 // pred_region
    _
  $region29: #{encp_forward.10} parent=0 // pred_fallthru
    _

// kernel: encp_forward.11
$region0: #{encp_forward.11}
  #allocation0 [shape = 'u32[]', space=smem, size = 0x4, offset = 0x4, fixed_abs, tag = 'smem constant byte address 0x4 - core index']
  #allocation1 [shape = 'u32[72,128]{1,0:T(1,128)}', space=vmem, size = 0x9000, scoped, tag = 'internal scratch']
  %s0 = inlined_call_operand.vmem [shape: bf16[16,4,128], index: 0, kind: input, shape index: {}]
  %s1 = inlined_call_operand.vmem [shape: f32[16,128], index: 1, kind: output, shape index: {}]
  %s2 = sld [smem:[#allocation0]]
  $region14: #{encp_forward.11} parent=0
    _
  %s4 = ssub.s32 1, %s2
  %s5 = scalar_select 0, %s4, %s2
  // Predicated region
  $region2: #{encp_forward.11} parent=0 // pred_check
    _
  $region3: #{encp_forward.11} parent=0 // pred_check_branch
    %7 = sbr.rel (0) target = $region5
  $region4: #{encp_forward.11} parent=0 // pred_region
    _
  $region5: #{encp_forward.11} parent=0 // pred_fallthru
    _
  %v8 = vld [vmem:[%s0] sm:$0x3]
  %v9 = vld [vmem:[%s0 + $0x2] sm:$0x3]
  %v10 = vld [vmem:[%s0 + $0x4] sm:$0x3]
  %v11 = vld [vmem:[%s0 + $0x6] sm:$0x3]
  %v12 = vld [vmem:[%s0 + $0x8] sm:$0x3]
  %v13 = vld [vmem:[%s0 + $0xa] sm:$0x3]
  %v14 = vld [vmem:[%s0 + $0xc] sm:$0x3]
  %v15 = vld [vmem:[%s0 + $0xe] sm:$0x3]
  %v16 = vld [vmem:[%s0 + $0x10] sm:$0x3]
  %v17 = vld [vmem:[%s0 + $0x12] sm:$0x3]
  %v18 = vld [vmem:[%s0 + $0x14] sm:$0x3]
  %v19 = vld [vmem:[%s0 + $0x16] sm:$0x3]
  %v20 = vld [vmem:[%s0 + $0x18] sm:$0x3]
  %v21 = vld [vmem:[%s0 + $0x1a] sm:$0x3]
  %v22 = vld [vmem:[%s0 + $0x1c] sm:$0x3]
  %v23 = vld [vmem:[%s0 + $0x1e] sm:$0x3]
  %v24 = vunpack.c.l.bf16 %v8
  %v25 = vunpack.c.l.bf16 %v9
  %v26 = vunpack.c.l.bf16 %v10
  %v27 = vunpack.c.l.bf16 %v11
  %v28 = vunpack.c.l.bf16 %v12
  %v29 = vunpack.c.l.bf16 %v13
  %v30 = vunpack.c.l.bf16 %v14
  %v31 = vunpack.c.l.bf16 %v15
  %v32 = vunpack.c.l.bf16 %v16
  %v33 = vunpack.c.l.bf16 %v17
  %v34 = vunpack.c.l.bf16 %v18
  %v35 = vunpack.c.l.bf16 %v19
  %v36 = vunpack.c.l.bf16 %v20
  %v37 = vunpack.c.l.bf16 %v21
  %v38 = vunpack.c.l.bf16 %v22
  %v39 = vunpack.c.l.bf16 %v23
  %vm40 = vcmask 1043456
  %v41 = vsel %vm40, %v24, -inf
  %v42 = vrot.slane %v41, 4
  %v43 = vmax.f32 %v41, %v42
  %v44 = vrot.slane %v43, 2
  %v45 = vmax.f32 %v43, %v44
  %v46 = vrot.slane %v45, 1
  %v47 = vmax.f32 %v45, %v46
  %v48 = vsel %vm40, %v25, -inf
  %v49 = vrot.slane %v48, 4
  %v50 = vmax.f32 %v48, %v49
  %v51 = vrot.slane %v50, 2
  %v52 = vmax.f32 %v50, %v51
  %v53 = vrot.slane %v52, 1
  %v54 = vmax.f32 %v52, %v53
  %v55 = vsel %vm40, %v26, -inf
  %v56 = vrot.slane %v55, 4
  %v57 = vmax.f32 %v55, %v56
  %v58 = vrot.slane %v57, 2
  %v59 = vmax.f32 %v57, %v58
  %v60 = vrot.slane %v59, 1
  %v61 = vmax.f32 %v59, %v60
  %v62 = vsel %vm40, %v27, -inf
  %v63 = vrot.slane %v62, 4
  %v64 = vmax.f32 %v62, %v63
  %v65 = vrot.slane %v64, 2
  %v66 = vmax.f32 %v64, %v65
  %v67 = vrot.slane %v66, 1
  %v68 = vmax.f32 %v66, %v67
  %v69 = vsel %vm40, %v28, -inf
  %v70 = vrot.slane %v69, 4
  %v71 = vmax.f32 %v69, %v70
  %v72 = vrot.slane %v71, 2
  %v73 = vmax.f32 %v71, %v72
  %v74 = vrot.slane %v73, 1
  %v75 = vmax.f32 %v73, %v74
  %v76 = vsel %vm40, %v29, -inf
  %v77 = vrot.slane %v76, 4
  %v78 = vmax.f32 %v76, %v77
  %v79 = vrot.slane %v78, 2
  %v80 = vmax.f32 %v78, %v79
  %v81 = vrot.slane %v80, 1
  %v82 = vmax.f32 %v80, %v81
  %v83 = vsel %vm40, %v30, -inf
  %v84 = vrot.slane %v83, 4
  %v85 = vmax.f32 %v83, %v84
  %v86 = vrot.slane %v85, 2
  %v87 = vmax.f32 %v85, %v86
  %v88 = vrot.slane %v87, 1
  %v89 = vmax.f32 %v87, %v88
  %v90 = vsel %vm40, %v31, -inf
  %v91 = vrot.slane %v90, 4
  %v92 = vmax.f32 %v90, %v91
  %v93 = vrot.slane %v92, 2
  %v94 = vmax.f32 %v92, %v93
  %v95 = vrot.slane %v94, 1
  %v96 = vmax.f32 %v94, %v95
  %v97 = vsel %vm40, %v32, -inf
  %v98 = vrot.slane %v97, 4
  %v99 = vmax.f32 %v97, %v98
  %v100 = vrot.slane %v99, 2
  %v101 = vmax.f32 %v99, %v100
  %v102 = vrot.slane %v101, 1
  %v103 = vmax.f32 %v101, %v102
  %v104 = vsel %vm40, %v33, -inf
  %v105 = vrot.slane %v104, 4
  %v106 = vmax.f32 %v104, %v105
  %v107 = vrot.slane %v106, 2
  %v108 = vmax.f32 %v106, %v107
  %v109 = vrot.slane %v108, 1
  %v110 = vmax.f32 %v108, %v109
  %v111 = vsel %vm40, %v34, -inf
  %v112 = vrot.slane %v111, 4
  %v113 = vmax.f32 %v111, %v112
  %v114 = vrot.slane %v113, 2
  %v115 = vmax.f32 %v113, %v114
  %v116 = vrot.slane %v115, 1
  %v117 = vmax.f32 %v115, %v116
  %v118 = vsel %vm40, %v35, -inf
  %v119 = vrot.slane %v118, 4
  %v120 = vmax.f32 %v118, %v119
  %v121 = vrot.slane %v120, 2
  %v122 = vmax.f32 %v120, %v121
  %v123 = vrot.slane %v122, 1
  %v124 = vmax.f32 %v122, %v123
  %v125 = vsel %vm40, %v36, -inf
  %v126 = vrot.slane %v125, 4
  %v127 = vmax.f32 %v125, %v126
  %v128 = vrot.slane %v127, 2
  %v129 = vmax.f32 %v127, %v128
  %v130 = vrot.slane %v129, 1
  %v131 = vmax.f32 %v129, %v130
  %v132 = vsel %vm40, %v37, -inf
  %v133 = vrot.slane %v132, 4
  %v134 = vmax.f32 %v132, %v133
  %v135 = vrot.slane %v134, 2
  %v136 = vmax.f32 %v134, %v135
  %v137 = vrot.slane %v136, 1
  %v138 = vmax.f32 %v136, %v137
  %v139 = vsel %vm40, %v38, -inf
  %v140 = vrot.slane %v139, 4
  %v141 = vmax.f32 %v139, %v140
  %v142 = vrot.slane %v141, 2
  %v143 = vmax.f32 %v141, %v142
  %v144 = vrot.slane %v143, 1
  %v145 = vmax.f32 %v143, %v144
  %v146 = vsel %vm40, %v39, -inf
  %v147 = vrot.slane %v146, 4
  %v148 = vmax.f32 %v146, %v147
  %v149 = vrot.slane %v148, 2
  %v150 = vmax.f32 %v148, %v149
  %v151 = vrot.slane %v150, 1
  %v152 = vmax.f32 %v150, %v151
  %v153 = vsel %vm40, %v24, 0.0
  %v154 = vrot.slane %v153, 4
  %v155 = vadd.f32 %v153, %v154
  %v156 = vrot.slane %v155, 2
  %v157 = vadd.f32 %v155, %v156
  %v158 = vrot.slane %v157, 1
  %v159 = vadd.f32 %v157, %v158
  %v160 = vsel %vm40, %v25, 0.0
  %v161 = vrot.slane %v160, 4
  %v162 = vadd.f32 %v160, %v161
  %v163 = vrot.slane %v162, 2
  %v164 = vadd.f32 %v162, %v163
  %v165 = vrot.slane %v164, 1
  %v166 = vadd.f32 %v164, %v165
  %v167 = vsel %vm40, %v26, 0.0
  %v168 = vrot.slane %v167, 4
  %v169 = vadd.f32 %v167, %v168
  %v170 = vrot.slane %v169, 2
  %v171 = vadd.f32 %v169, %v170
  %v172 = vrot.slane %v171, 1
  %v173 = vadd.f32 %v171, %v172
  %v174 = vsel %vm40, %v27, 0.0
  %v175 = vrot.slane %v174, 4
  %v176 = vadd.f32 %v174, %v175
  %v177 = vrot.slane %v176, 2
  %v178 = vadd.f32 %v176, %v177
  %v179 = vrot.slane %v178, 1
  %v180 = vadd.f32 %v178, %v179
  %v181 = vsel %vm40, %v28, 0.0
  %v182 = vrot.slane %v181, 4
  %v183 = vadd.f32 %v181, %v182
  %v184 = vrot.slane %v183, 2
  %v185 = vadd.f32 %v183, %v184
  %v186 = vrot.slane %v185, 1
  %v187 = vadd.f32 %v185, %v186
  %v188 = vsel %vm40, %v29, 0.0
  %v189 = vrot.slane %v188, 4
  %v190 = vadd.f32 %v188, %v189
  %v191 = vrot.slane %v190, 2
  %v192 = vadd.f32 %v190, %v191
  %v193 = vrot.slane %v192, 1
  %v194 = vadd.f32 %v192, %v193
  %v195 = vsel %vm40, %v30, 0.0
  %v196 = vrot.slane %v195, 4
  %v197 = vadd.f32 %v195, %v196
  %v198 = vrot.slane %v197, 2
  %v199 = vadd.f32 %v197, %v198
  %v200 = vrot.slane %v199, 1
  %v201 = vadd.f32 %v199, %v200
  %v202 = vsel %vm40, %v31, 0.0
  %v203 = vrot.slane %v202, 4
  %v204 = vadd.f32 %v202, %v203
  %v205 = vrot.slane %v204, 2
  %v206 = vadd.f32 %v204, %v205
  %v207 = vrot.slane %v206, 1
  %v208 = vadd.f32 %v206, %v207
  %v209 = vsel %vm40, %v32, 0.0
  %v210 = vrot.slane %v209, 4
  %v211 = vadd.f32 %v209, %v210
  %v212 = vrot.slane %v211, 2
  %v213 = vadd.f32 %v211, %v212
  %v214 = vrot.slane %v213, 1
  %v215 = vadd.f32 %v213, %v214
  %v216 = vsel %vm40, %v33, 0.0
  %v217 = vrot.slane %v216, 4
  %v218 = vadd.f32 %v216, %v217
  %v219 = vrot.slane %v218, 2
  %v220 = vadd.f32 %v218, %v219
  %v221 = vrot.slane %v220, 1
  %v222 = vadd.f32 %v220, %v221
  %v223 = vsel %vm40, %v34, 0.0
  %v224 = vrot.slane %v223, 4
  %v225 = vadd.f32 %v223, %v224
  %v226 = vrot.slane %v225, 2
  %v227 = vadd.f32 %v225, %v226
  %v228 = vrot.slane %v227, 1
  %v229 = vadd.f32 %v227, %v228
  %v230 = vsel %vm40, %v35, 0.0
  %v231 = vrot.slane %v230, 4
  %v232 = vadd.f32 %v230, %v231
  %v233 = vrot.slane %v232, 2
  %v234 = vadd.f32 %v232, %v233
  %v235 = vrot.slane %v234, 1
  %v236 = vadd.f32 %v234, %v235
  %v237 = vsel %vm40, %v36, 0.0
  %v238 = vrot.slane %v237, 4
  %v239 = vadd.f32 %v237, %v238
  %v240 = vrot.slane %v239, 2
  %v241 = vadd.f32 %v239, %v240
  %v242 = vrot.slane %v241, 1
  %v243 = vadd.f32 %v241, %v242
  %v244 = vsel %vm40, %v37, 0.0
  %v245 = vrot.slane %v244, 4
  %v246 = vadd.f32 %v244, %v245
  %v247 = vrot.slane %v246, 2
  %v248 = vadd.f32 %v246, %v247
  %v249 = vrot.slane %v248, 1
  %v250 = vadd.f32 %v248, %v249
  %v251 = vsel %vm40, %v38, 0.0
  %v252 = vrot.slane %v251, 4
  %v253 = vadd.f32 %v251, %v252
  %v254 = vrot.slane %v253, 2
  %v255 = vadd.f32 %v253, %v254
  %v256 = vrot.slane %v255, 1
  %v257 = vadd.f32 %v255, %v256
  %v258 = vsel %vm40, %v39, 0.0
  %v259 = vrot.slane %v258, 4
  %v260 = vadd.f32 %v258, %v259
  %v261 = vrot.slane %v260, 2
  %v262 = vadd.f32 %v260, %v261
  %v263 = vrot.slane %v262, 1
  %v264 = vadd.f32 %v262, %v263
  %v265 = vrcp.pop 4.0
  %v266 = vmul.f32 4.0, %v265
  %v267 = vsub.f32 1.0, %v266
  %v268 = vmul.f32 %v265, %v267
  %v269 = vadd.f32 %v265, %v268
  %vm270 = vweird.f32 %v265
  %v271 = vsel %vm270, %v265, %v269
  %v272 = vmul.f32 %v159, %v271
  %v273 = vmul.f32 %v166, %v271
  %v274 = vmul.f32 %v173, %v271
  %v275 = vmul.f32 %v180, %v271
  %v276 = vmul.f32 %v187, %v271
  %v277 = vmul.f32 %v194, %v271
  %v278 = vmul.f32 %v201, %v271
  %v279 = vmul.f32 %v208, %v271
  %v280 = vmul.f32 %v215, %v271
  %v281 = vmul.f32 %v222, %v271
  %v282 = vmul.f32 %v229, %v271
  %v283 = vmul.f32 %v236, %v271
  %v284 = vmul.f32 %v243, %v271
  %v285 = vmul.f32 %v250, %v271
  %v286 = vmul.f32 %v257, %v271
  %v287 = vmul.f32 %v264, %v271
  %v288 = vadd.f32 %v47, %v272
  %v289 = vadd.f32 %v54, %v273
  %v290 = vadd.f32 %v61, %v274
  %v291 = vadd.f32 %v68, %v275
  %v292 = vadd.f32 %v75, %v276
  %v293 = vadd.f32 %v82, %v277
  %v294 = vadd.f32 %v89, %v278
  %v295 = vadd.f32 %v96, %v279
  %v296 = vadd.f32 %v103, %v280
  %v297 = vadd.f32 %v110, %v281
  %v298 = vadd.f32 %v117, %v282
  %v299 = vadd.f32 %v124, %v283
  %v300 = vadd.f32 %v131, %v284
  %v301 = vadd.f32 %v138, %v285
  %v302 = vadd.f32 %v145, %v286
  %v303 = vadd.f32 %v152, %v287
  %vm320 = vcmask 1041409
  %v321 = vsel %vm320, %v289, %v288
  %vm322 = vcmask 1042434
  %v323 = vsel %vm322, %v290, %v321
  %vm324 = vcmask 1043459
  %v325 = vsel %vm324, %v291, %v323
  %vm326 = vcmask 1044484
  %v327 = vsel %vm326, %v292, %v325
  %vm328 = vcmask 1045509
  %v329 = vsel %vm328, %v293, %v327
  %vm330 = vcmask 1046534
  %v331 = vsel %vm330, %v294, %v329
  %vm332 = vcmask 1047559
  %v333 = vsel %vm332, %v295, %v331
  %v334 = vsel %vm320, %v297, %v296
  %v335 = vsel %vm322, %v298, %v334
  %v336 = vsel %vm324, %v299, %v335
  %v337 = vsel %vm326, %v300, %v336
  %v338 = vsel %vm328, %v301, %v337
  %v339 = vsel %vm330, %v302, %v338
  %v340 = vsel %vm332, %v303, %v339
  %343 = vst [vmem:[%s1] sm:$0xff] %v333
  %344 = vst [vmem:[%s1 + $0x8] sm:$0xff] %v340
  // Predicated region
  $region6: #{encp_forward.11} parent=0 // pred_check
    _
  $region7: #{encp_forward.11} parent=0 // pred_check_branch
    %346 = sbr.rel (0) target = $region9
  $region8: #{encp_forward.11} parent=0 // pred_region
    _
  $region9: #{encp_forward.11} parent=0 // pred_fallthru
    _
  // Predicated region
  $region10: #{encp_forward.11} parent=0 // pred_check
    _
  $region11: #{encp_forward.11} parent=0 // pred_check_branch
    %348 = sbr.rel (0) target = $region13
  $region12: #{encp_forward.11} parent=0 // pred_region
    _
  $region13: #{encp_forward.11} parent=0 // pred_fallthru
    _

// kernel: encp_forward.15
$region0: #{encp_forward.15}
  #allocation0 [shape = 'u32[]', space=smem, size = 0x4, offset = 0x4, fixed_abs, tag = 'smem constant byte address 0x4 - core index']
  #allocation1 [shape = 'u32[72,128]{1,0:T(1,128)}', space=vmem, size = 0x9000, scoped, tag = 'internal scratch']
  %s0 = inlined_call_operand.vmem [shape: f32[2,4,128], index: 0, kind: input, shape index: {}]
  %s1 = inlined_call_operand.hbm [shape: f32[2,128], index: 1, kind: output, shape index: {}]
  %s2 = sld [smem:[#allocation0]]
  $region14: #{encp_forward.15} parent=0
    _
  %s4 = ssub.s32 1, %s2
  %s5 = scalar_select 0, %s4, %s2
  $region1: #{encp_forward.15} parent=0
    #allocation2 [shape = 'u8[1024]{0}', space=vmem, size = 0x400, scoped, tag = 'output window, operand 0, single buffered']
    #allocation3 [shape = 's32[1]{0}', space=sflag, size = 0x4, scoped, tag = 'scoped memory for encp_forward.15']
    %6 = vsyncpa [#allocation3], 0
    // Predicated region
    $region2: #{encp_forward.15} parent=1 // pred_check
      _
    $region3: #{encp_forward.15} parent=1 // pred_check_branch
      %8 = sbr.rel (0) target = $region5
    $region4: #{encp_forward.15} parent=1 // pred_region
      _
    $region5: #{encp_forward.15} parent=1 // pred_fallthru
      _
    %v9 = vld [vmem:[%s0] sm:$0xf]
    %v10 = vld [vmem:[%s0 + $0x4] sm:$0xf]
    %vm11 = vcmask 1043456
    %v12 = vsel %vm11, %v9, -inf
    %v13 = vrot.slane %v12, 4
    %v14 = vmax.f32 %v12, %v13
    %v15 = vrot.slane %v14, 2
    %v16 = vmax.f32 %v14, %v15
    %v17 = vrot.slane %v16, 1
    %v18 = vmax.f32 %v16, %v17
    %v19 = vsel %vm11, %v10, -inf
    %v20 = vrot.slane %v19, 4
    %v21 = vmax.f32 %v19, %v20
    %v22 = vrot.slane %v21, 2
    %v23 = vmax.f32 %v21, %v22
    %v24 = vrot.slane %v23, 1
    %v25 = vmax.f32 %v23, %v24
    %v26 = vsel %vm11, %v9, 0.0
    %v27 = vrot.slane %v26, 4
    %v28 = vadd.f32 %v26, %v27
    %v29 = vrot.slane %v28, 2
    %v30 = vadd.f32 %v28, %v29
    %v31 = vrot.slane %v30, 1
    %v32 = vadd.f32 %v30, %v31
    %v33 = vsel %vm11, %v10, 0.0
    %v34 = vrot.slane %v33, 4
    %v35 = vadd.f32 %v33, %v34
    %v36 = vrot.slane %v35, 2
    %v37 = vadd.f32 %v35, %v36
    %v38 = vrot.slane %v37, 1
    %v39 = vadd.f32 %v37, %v38
    %v40 = vrcp.pop 4.0
    %v41 = vmul.f32 4.0, %v40
    %v42 = vsub.f32 1.0, %v41
    %v43 = vmul.f32 %v40, %v42
    %v44 = vadd.f32 %v40, %v43
    %vm45 = vweird.f32 %v40
    %v46 = vsel %vm45, %v40, %v44
    %v47 = vmul.f32 %v32, %v46
    %v48 = vmul.f32 %v39, %v46
    %v49 = vadd.f32 %v18, %v47
    %v50 = vadd.f32 %v25, %v48
    %vm53 = vcmask 1041409
    %v54 = vsel %vm53, %v50, %v49
    %56 = vst [vmem:[#allocation2] sm:$0x3] %v54
    // Predicated region
    $region6: #{encp_forward.15} parent=1 // pred_check
      _
    $region7: #{encp_forward.15} parent=1 // pred_check_branch
      %58 = sbr.rel (0) target = $region9
    $region8: #{encp_forward.15} parent=1 // pred_region
      %60 = vsyncadd [#allocation3], 0
      %s62 = sshll.u32 [#allocation2], 4
      %s63 = int_to_ptr.vmem [resolvable:$true] %s62
      %s64 = sshll.u32 %s1, 4
      %s65 = int_to_ptr.hbm [resolvable:$true] %s64
      %67 = dma.vmem_to_hbm [thread:$0]  %s63, 32, %s65, [#allocation3]
    $region9: #{encp_forward.15} parent=1 // pred_fallthru
      _
    // Predicated region
    $region10: #{encp_forward.15} parent=1 // pred_check
      _
    $region11: #{encp_forward.15} parent=1 // pred_check_branch
      %69 = sbr.rel (0) target = $region13
    $region12: #{encp_forward.15} parent=1 // pred_region
      %71 = dma.done [#allocation3], 32
    $region13: #{encp_forward.15} parent=1 // pred_fallthru
      _
    %72 = vsyncpa [#allocation3], 1

// kernel: encp_forward.14
$region0: #{encp_forward.14}
  #allocation0 [shape = 'u32[]', space=smem, size = 0x4, offset = 0x4, fixed_abs, tag = 'smem constant byte address 0x4 - core index']
  #allocation1 [shape = 'u32[72,128]{1,0:T(1,128)}', space=vmem, size = 0x9000, scoped, tag = 'internal scratch']
  %s0 = inlined_call_operand.vmem [shape: bf16[8,4,128], index: 0, kind: input, shape index: {}]
  %s1 = inlined_call_operand.vmem [shape: f32[8,128], index: 1, kind: output, shape index: {}]
  %s2 = sld [smem:[#allocation0]]
  $region14: #{encp_forward.14} parent=0
    _
  %s4 = ssub.s32 1, %s2
  %s5 = scalar_select 0, %s4, %s2
  // Predicated region
  $region2: #{encp_forward.14} parent=0 // pred_check
    _
  $region3: #{encp_forward.14} parent=0 // pred_check_branch
    %7 = sbr.rel (0) target = $region5
  $region4: #{encp_forward.14} parent=0 // pred_region
    _
  $region5: #{encp_forward.14} parent=0 // pred_fallthru
    _
  %v8 = vld [vmem:[%s0] sm:$0x3]
  %v9 = vld [vmem:[%s0 + $0x2] sm:$0x3]
  %v10 = vld [vmem:[%s0 + $0x4] sm:$0x3]
  %v11 = vld [vmem:[%s0 + $0x6] sm:$0x3]
  %v12 = vld [vmem:[%s0 + $0x8] sm:$0x3]
  %v13 = vld [vmem:[%s0 + $0xa] sm:$0x3]
  %v14 = vld [vmem:[%s0 + $0xc] sm:$0x3]
  %v15 = vld [vmem:[%s0 + $0xe] sm:$0x3]
  %v16 = vunpack.c.l.bf16 %v8
  %v17 = vunpack.c.l.bf16 %v9
  %v18 = vunpack.c.l.bf16 %v10
  %v19 = vunpack.c.l.bf16 %v11
  %v20 = vunpack.c.l.bf16 %v12
  %v21 = vunpack.c.l.bf16 %v13
  %v22 = vunpack.c.l.bf16 %v14
  %v23 = vunpack.c.l.bf16 %v15
  %vm24 = vcmask 1043456
  %v25 = vsel %vm24, %v16, -inf
  %v26 = vrot.slane %v25, 4
  %v27 = vmax.f32 %v25, %v26
  %v28 = vrot.slane %v27, 2
  %v29 = vmax.f32 %v27, %v28
  %v30 = vrot.slane %v29, 1
  %v31 = vmax.f32 %v29, %v30
  %v32 = vsel %vm24, %v17, -inf
  %v33 = vrot.slane %v32, 4
  %v34 = vmax.f32 %v32, %v33
  %v35 = vrot.slane %v34, 2
  %v36 = vmax.f32 %v34, %v35
  %v37 = vrot.slane %v36, 1
  %v38 = vmax.f32 %v36, %v37
  %v39 = vsel %vm24, %v18, -inf
  %v40 = vrot.slane %v39, 4
  %v41 = vmax.f32 %v39, %v40
  %v42 = vrot.slane %v41, 2
  %v43 = vmax.f32 %v41, %v42
  %v44 = vrot.slane %v43, 1
  %v45 = vmax.f32 %v43, %v44
  %v46 = vsel %vm24, %v19, -inf
  %v47 = vrot.slane %v46, 4
  %v48 = vmax.f32 %v46, %v47
  %v49 = vrot.slane %v48, 2
  %v50 = vmax.f32 %v48, %v49
  %v51 = vrot.slane %v50, 1
  %v52 = vmax.f32 %v50, %v51
  %v53 = vsel %vm24, %v20, -inf
  %v54 = vrot.slane %v53, 4
  %v55 = vmax.f32 %v53, %v54
  %v56 = vrot.slane %v55, 2
  %v57 = vmax.f32 %v55, %v56
  %v58 = vrot.slane %v57, 1
  %v59 = vmax.f32 %v57, %v58
  %v60 = vsel %vm24, %v21, -inf
  %v61 = vrot.slane %v60, 4
  %v62 = vmax.f32 %v60, %v61
  %v63 = vrot.slane %v62, 2
  %v64 = vmax.f32 %v62, %v63
  %v65 = vrot.slane %v64, 1
  %v66 = vmax.f32 %v64, %v65
  %v67 = vsel %vm24, %v22, -inf
  %v68 = vrot.slane %v67, 4
  %v69 = vmax.f32 %v67, %v68
  %v70 = vrot.slane %v69, 2
  %v71 = vmax.f32 %v69, %v70
  %v72 = vrot.slane %v71, 1
  %v73 = vmax.f32 %v71, %v72
  %v74 = vsel %vm24, %v23, -inf
  %v75 = vrot.slane %v74, 4
  %v76 = vmax.f32 %v74, %v75
  %v77 = vrot.slane %v76, 2
  %v78 = vmax.f32 %v76, %v77
  %v79 = vrot.slane %v78, 1
  %v80 = vmax.f32 %v78, %v79
  %v81 = vsel %vm24, %v16, 0.0
  %v82 = vrot.slane %v81, 4
  %v83 = vadd.f32 %v81, %v82
  %v84 = vrot.slane %v83, 2
  %v85 = vadd.f32 %v83, %v84
  %v86 = vrot.slane %v85, 1
  %v87 = vadd.f32 %v85, %v86
  %v88 = vsel %vm24, %v17, 0.0
  %v89 = vrot.slane %v88, 4
  %v90 = vadd.f32 %v88, %v89
  %v91 = vrot.slane %v90, 2
  %v92 = vadd.f32 %v90, %v91
  %v93 = vrot.slane %v92, 1
  %v94 = vadd.f32 %v92, %v93
  %v95 = vsel %vm24, %v18, 0.0
  %v96 = vrot.slane %v95, 4
  %v97 = vadd.f32 %v95, %v96
  %v98 = vrot.slane %v97, 2
  %v99 = vadd.f32 %v97, %v98
  %v100 = vrot.slane %v99, 1
  %v101 = vadd.f32 %v99, %v100
  %v102 = vsel %vm24, %v19, 0.0
  %v103 = vrot.slane %v102, 4
  %v104 = vadd.f32 %v102, %v103
  %v105 = vrot.slane %v104, 2
  %v106 = vadd.f32 %v104, %v105
  %v107 = vrot.slane %v106, 1
  %v108 = vadd.f32 %v106, %v107
  %v109 = vsel %vm24, %v20, 0.0
  %v110 = vrot.slane %v109, 4
  %v111 = vadd.f32 %v109, %v110
  %v112 = vrot.slane %v111, 2
  %v113 = vadd.f32 %v111, %v112
  %v114 = vrot.slane %v113, 1
  %v115 = vadd.f32 %v113, %v114
  %v116 = vsel %vm24, %v21, 0.0
  %v117 = vrot.slane %v116, 4
  %v118 = vadd.f32 %v116, %v117
  %v119 = vrot.slane %v118, 2
  %v120 = vadd.f32 %v118, %v119
  %v121 = vrot.slane %v120, 1
  %v122 = vadd.f32 %v120, %v121
  %v123 = vsel %vm24, %v22, 0.0
  %v124 = vrot.slane %v123, 4
  %v125 = vadd.f32 %v123, %v124
  %v126 = vrot.slane %v125, 2
  %v127 = vadd.f32 %v125, %v126
  %v128 = vrot.slane %v127, 1
  %v129 = vadd.f32 %v127, %v128
  %v130 = vsel %vm24, %v23, 0.0
  %v131 = vrot.slane %v130, 4
  %v132 = vadd.f32 %v130, %v131
  %v133 = vrot.slane %v132, 2
  %v134 = vadd.f32 %v132, %v133
  %v135 = vrot.slane %v134, 1
  %v136 = vadd.f32 %v134, %v135
  %v137 = vrcp.pop 4.0
  %v138 = vmul.f32 4.0, %v137
  %v139 = vsub.f32 1.0, %v138
  %v140 = vmul.f32 %v137, %v139
  %v141 = vadd.f32 %v137, %v140
  %vm142 = vweird.f32 %v137
  %v143 = vsel %vm142, %v137, %v141
  %v144 = vmul.f32 %v87, %v143
  %v145 = vmul.f32 %v94, %v143
  %v146 = vmul.f32 %v101, %v143
  %v147 = vmul.f32 %v108, %v143
  %v148 = vmul.f32 %v115, %v143
  %v149 = vmul.f32 %v122, %v143
  %v150 = vmul.f32 %v129, %v143
  %v151 = vmul.f32 %v136, %v143
  %v152 = vadd.f32 %v31, %v144
  %v153 = vadd.f32 %v38, %v145
  %v154 = vadd.f32 %v45, %v146
  %v155 = vadd.f32 %v52, %v147
  %v156 = vadd.f32 %v59, %v148
  %v157 = vadd.f32 %v66, %v149
  %v158 = vadd.f32 %v73, %v150
  %v159 = vadd.f32 %v80, %v151
  %vm168 = vcmask 1041409
  %v169 = vsel %vm168, %v153, %v152
  %vm170 = vcmask 1042434
  %v171 = vsel %vm170, %v154, %v169
  %vm172 = vcmask 1043459
  %v173 = vsel %vm172, %v155, %v171
  %vm174 = vcmask 1044484
  %v175 = vsel %vm174, %v156, %v173
  %vm176 = vcmask 1045509
  %v177 = vsel %vm176, %v157, %v175
  %vm178 = vcmask 1046534
  %v179 = vsel %vm178, %v158, %v177
  %vm180 = vcmask 1047559
  %v181 = vsel %vm180, %v159, %v179
  %183 = vst [vmem:[%s1] sm:$0xff] %v181
  // Predicated region
  $region6: #{encp_forward.14} parent=0 // pred_check
    _
  $region7: #{encp_forward.14} parent=0 // pred_check_branch
    %185 = sbr.rel (0) target = $region9
  $region8: #{encp_forward.14} parent=0 // pred_region
    _
  $region9: #{encp_forward.14} parent=0 // pred_fallthru
    _
  // Predicated region
  $region10: #{encp_forward.14} parent=0 // pred_check
    _
  $region11: #{encp_forward.14} parent=0 // pred_check_branch
    %187 = sbr.rel (0) target = $region13
  $region12: #{encp_forward.14} parent=0 // pred_region
    _
  $region13: #{encp_forward.14} parent=0 // pred_fallthru
    _

// kernel: encp_forward.13
$region0: #{encp_forward.13}
  #allocation0 [shape = 'u32[]', space=smem, size = 0x4, offset = 0x4, fixed_abs, tag = 'smem constant byte address 0x4 - core index']
  #allocation1 [shape = 'u32[72,128]{1,0:T(1,128)}', space=vmem, size = 0x9000, scoped, tag = 'internal scratch']
  %s0 = inlined_call_operand.vmem [shape: bf16[32,128], index: 0, kind: input, shape index: {}]
  %s1 = inlined_call_operand.vmem [shape: bf16[128,128], index: 1, kind: input, shape index: {}]
  %s2 = inlined_call_operand.vmem [shape: f32[2,128], index: 2, kind: input, shape index: {}]
  %s3 = inlined_call_operand.vmem [shape: bf16[128,128], index: 3, kind: input, shape index: {}]
  %s4 = inlined_call_operand.vmem [shape: f32[2,128], index: 4, kind: input, shape index: {}]
  %s5 = inlined_call_operand.vmem [shape: bf16[32,128], index: 5, kind: output, shape index: {}]
  %s6 = sld [smem:[#allocation0]]
  $region30: #{encp_forward.13} parent=0
    _
  %s8 = ssub.s32 1, %s6
  %s9 = scalar_select 0, %s8, %s6
  // Predicated region
  $region2: #{encp_forward.13} parent=0 // pred_check
    _
  $region3: #{encp_forward.13} parent=0 // pred_check_branch
    %11 = sbr.rel (0) target = $region5
  $region4: #{encp_forward.13} parent=0 // pred_region
    _
  $region5: #{encp_forward.13} parent=0 // pred_fallthru
    _
  // Predicated region
  $region6: #{encp_forward.13} parent=0 // pred_check
    _
  $region7: #{encp_forward.13} parent=0 // pred_check_branch
    %13 = sbr.rel (0) target = $region9
  $region8: #{encp_forward.13} parent=0 // pred_region
    _
  $region9: #{encp_forward.13} parent=0 // pred_fallthru
    _
  // Predicated region
  $region10: #{encp_forward.13} parent=0 // pred_check
    _
  $region11: #{encp_forward.13} parent=0 // pred_check_branch
    %15 = sbr.rel (0) target = $region13
  $region12: #{encp_forward.13} parent=0 // pred_region
    _
  $region13: #{encp_forward.13} parent=0 // pred_fallthru
    _
  // Predicated region
  $region14: #{encp_forward.13} parent=0 // pred_check
    _
  $region15: #{encp_forward.13} parent=0 // pred_check_branch
    %17 = sbr.rel (0) target = $region17
  $region16: #{encp_forward.13} parent=0 // pred_region
    _
  $region17: #{encp_forward.13} parent=0 // pred_fallthru
    _
  // Predicated region
  $region18: #{encp_forward.13} parent=0 // pred_check
    _
  $region19: #{encp_forward.13} parent=0 // pred_check_branch
    %19 = sbr.rel (0) target = $region21
  $region20: #{encp_forward.13} parent=0 // pred_region
    _
  $region21: #{encp_forward.13} parent=0 // pred_fallthru
    _
  %v20 = vld [vmem:[%s0] sm:$0xf]
  %v21 = vld [vmem:[%s0 + $0x4] sm:$0xf]
  %v22 = vld [vmem:[%s0 + $0x8] sm:$0xf]
  %v23 = vld [vmem:[%s0 + $0xc] sm:$0xf]
  %v24 = vld [vmem:[%s1] sm:$0xf]
  %v25 = vld [vmem:[%s1 + $0x4] sm:$0xf]
  %v26 = vld [vmem:[%s1 + $0x8] sm:$0xf]
  %v27 = vld [vmem:[%s1 + $0xc] sm:$0xf]
  %v28 = vld [vmem:[%s1 + $0x10] sm:$0xf]
  %v29 = vld [vmem:[%s1 + $0x14] sm:$0xf]
  %v30 = vld [vmem:[%s1 + $0x18] sm:$0xf]
  %v31 = vld [vmem:[%s1 + $0x1c] sm:$0xf]
  %v32 = vld [vmem:[%s1 + $0x20] sm:$0xf]
  %v33 = vld [vmem:[%s1 + $0x24] sm:$0xf]
  %v34 = vld [vmem:[%s1 + $0x28] sm:$0xf]
  %v35 = vld [vmem:[%s1 + $0x2c] sm:$0xf]
  %v36 = vld [vmem:[%s1 + $0x30] sm:$0xf]
  %v37 = vld [vmem:[%s1 + $0x34] sm:$0xf]
  %v38 = vld [vmem:[%s1 + $0x38] sm:$0xf]
  %v39 = vld [vmem:[%s1 + $0x3c] sm:$0xf]
  %v44 = vunpack.c.l.b16 %v20
  %v45 = vunpack.c.l.b16 %v21
  %v46 = vunpack.c.l.b16 %v22
  %v47 = vunpack.c.l.b16 %v23
  %v48 = vpack.c.b16 %v45, %v44
  %v49 = vpack.c.b16 %v47, %v46
  %v68 = vunpack.c.l.b16 %v24
  %v69 = vunpack.c.l.b16 %v25
  %v70 = vunpack.c.l.b16 %v26
  %v71 = vunpack.c.l.b16 %v27
  %v72 = vunpack.c.l.b16 %v28
  %v73 = vunpack.c.l.b16 %v29
  %v74 = vunpack.c.l.b16 %v30
  %v75 = vunpack.c.l.b16 %v31
  %v76 = vunpack.c.l.b16 %v32
  %v77 = vunpack.c.l.b16 %v33
  %v78 = vunpack.c.l.b16 %v34
  %v79 = vunpack.c.l.b16 %v35
  %v80 = vunpack.c.l.b16 %v36
  %v81 = vunpack.c.l.b16 %v37
  %v82 = vunpack.c.l.b16 %v38
  %v83 = vunpack.c.l.b16 %v39
  %v84 = vpack.c.b16 %v69, %v68
  %v85 = vpack.c.b16 %v71, %v70
  %v86 = vpack.c.b16 %v73, %v72
  %v87 = vpack.c.b16 %v75, %v74
  %v88 = vpack.c.b16 %v77, %v76
  %v89 = vpack.c.b16 %v79, %v78
  %v90 = vpack.c.b16 %v81, %v80
  %v91 = vpack.c.b16 %v83, %v82
  %100 = vmatpush.bf16.msra.mxu0 %v91
  %101 = vmatpush.bf16.msra.mxu0 %v90
  %102 = vmatpush.bf16.msra.mxu0 %v89
  %103 = vmatpush.bf16.msra.mxu0 %v88
  %104 = vmatpush.bf16.msra.mxu0 %v87
  %105 = vmatpush.bf16.msra.mxu0 %v86
  %106 = vmatpush.bf16.msra.mxu0 %v85
  %107 = vmatpush.bf16.msra.mxu0 %v84
  %108 = vmatmul.bf16.gmra.mxu0 %v48
  %v109 = vpop.f32.mrf.mxu0
  %v110 = vadd.f32 0.0, %v109
  %v111 = vpop.f32.mrf.mxu0
  %v112 = vadd.f32 0.0, %v111
  %113 = vmatmul.bf16.gmra.mxu0 %v49
  %v114 = vpop.f32.mrf.mxu0
  %v115 = vadd.f32 0.0, %v114
  %v116 = vpop.f32.mrf.mxu0
  %v117 = vadd.f32 0.0, %v116
  %118 = vdwg.mxu0
  %v119 = vadd.f32 %v110, %v112
  %v120 = vadd.f32 %v119, %v115
  %v121 = vadd.f32 %v120, %v117
  %v122 = vrot.slane %v121, 4
  %v123 = vadd.f32 %v121, %v122
  %v124 = vrot.slane %v123, 2
  %v125 = vadd.f32 %v123, %v124
  %v126 = vrot.slane %v125, 1
  %v127 = vadd.f32 %v125, %v126
  %v128 = vmul.f32 %v110, %v110
  %v129 = vmul.f32 %v112, %v112
  %v130 = vmul.f32 %v115, %v115
  %v131 = vmul.f32 %v117, %v117
  %v132 = vadd.f32 %v128, %v129
  %v133 = vadd.f32 %v132, %v130
  %v134 = vadd.f32 %v133, %v131
  %v135 = vrot.slane %v134, 4
  %v136 = vadd.f32 %v134, %v135
  %v137 = vrot.slane %v136, 2
  %v138 = vadd.f32 %v136, %v137
  %v139 = vrot.slane %v138, 1
  %v140 = vadd.f32 %v138, %v139
  %v141 = vld [vmem:[%s2] sm:$0x1]
  %v142 = vld [vmem:[%s2 + $0x1] sm:$0x1]
  %v143 = vmul.f32 %v127, 0.03125
  %v144 = vmul.f32 %v140, 0.03125
  %v145 = vmul.f32 %v143, %v143
  %v146 = vsub.f32 %v144, %v145
  %v147 = vmax.f32 %v146, 0.0
  %v148 = vadd.f32 %v147, 1e-05
  %v149 = vrsqrt.pop %v148
  %v150 = vmul.f32 %v149, %v148
  %v151 = vmul.f32 %v150, %v149
  %v152 = vmul.f32 0.5, %v151
  %v153 = vsub.f32 1.5, %v152
  %v154 = vmul.f32 %v149, %v153
  %vm155 = vweird.f32 %v148
  %vm156 = vweird.f32 %v149
  %vm157 = vmor %vm155, %vm156
  %v158 = vsel %vm157, %v149, %v154
  %v159 = vmul.f32 %v141, %v158
  %v160 = vmul.f32 %v143, %v159
  %v161 = vsub.f32 %v142, %v160
  %v162 = vperm.slane %v159, 0
  %v163 = vmul.f32 %v110, %v162
  %v164 = vmul.f32 %v112, %v162
  %v165 = vmul.f32 %v115, %v162
  %v166 = vmul.f32 %v117, %v162
  %v167 = vperm.slane %v161, 0
  %v168 = vadd.f32 %v163, %v167
  %v169 = vadd.f32 %v164, %v167
  %v170 = vadd.f32 %v165, %v167
  %v171 = vadd.f32 %v166, %v167
  %v172 = vmax.f32 %v168, 0.0
  %v173 = vmax.f32 %v169, 0.0
  %v174 = vmax.f32 %v170, 0.0
  %v175 = vmax.f32 %v171, 0.0
  %v176 = vpack.c.bf16 %v173, %v172
  %v177 = vpack.c.bf16 %v175, %v174
  %v178 = vld [vmem:[%s3] sm:$0xf]
  %v179 = vld [vmem:[%s3 + $0x4] sm:$0xf]
  %v180 = vld [vmem:[%s3 + $0x8] sm:$0xf]
  %v181 = vld [vmem:[%s3 + $0xc] sm:$0xf]
  %v182 = vld [vmem:[%s3 + $0x10] sm:$0xf]
  %v183 = vld [vmem:[%s3 + $0x14] sm:$0xf]
  %v184 = vld [vmem:[%s3 + $0x18] sm:$0xf]
  %v185 = vld [vmem:[%s3 + $0x1c] sm:$0xf]
  %v186 = vld [vmem:[%s3 + $0x20] sm:$0xf]
  %v187 = vld [vmem:[%s3 + $0x24] sm:$0xf]
  %v188 = vld [vmem:[%s3 + $0x28] sm:$0xf]
  %v189 = vld [vmem:[%s3 + $0x2c] sm:$0xf]
  %v190 = vld [vmem:[%s3 + $0x30] sm:$0xf]
  %v191 = vld [vmem:[%s3 + $0x34] sm:$0xf]
  %v192 = vld [vmem:[%s3 + $0x38] sm:$0xf]
  %v193 = vld [vmem:[%s3 + $0x3c] sm:$0xf]
  %v210 = vunpack.c.l.b16 %v178
  %v211 = vunpack.c.l.b16 %v179
  %v212 = vunpack.c.l.b16 %v180
  %v213 = vunpack.c.l.b16 %v181
  %v214 = vunpack.c.l.b16 %v182
  %v215 = vunpack.c.l.b16 %v183
  %v216 = vunpack.c.l.b16 %v184
  %v217 = vunpack.c.l.b16 %v185
  %v218 = vunpack.c.l.b16 %v186
  %v219 = vunpack.c.l.b16 %v187
  %v220 = vunpack.c.l.b16 %v188
  %v221 = vunpack.c.l.b16 %v189
  %v222 = vunpack.c.l.b16 %v190
  %v223 = vunpack.c.l.b16 %v191
  %v224 = vunpack.c.l.b16 %v192
  %v225 = vunpack.c.l.b16 %v193
  %v226 = vpack.c.b16 %v211, %v210
  %v227 = vpack.c.b16 %v213, %v212
  %v228 = vpack.c.b16 %v215, %v214
  %v229 = vpack.c.b16 %v217, %v216
  %v230 = vpack.c.b16 %v219, %v218
  %v231 = vpack.c.b16 %v221, %v220
  %v232 = vpack.c.b16 %v223, %v222
  %v233 = vpack.c.b16 %v225, %v224
  %242 = vmatpush.bf16.msra.mxu0 %v233
  %243 = vmatpush.bf16.msra.mxu0 %v232
  %244 = vmatpush.bf16.msra.mxu0 %v231
  %245 = vmatpush.bf16.msra.mxu0 %v230
  %246 = vmatpush.bf16.msra.mxu0 %v229
  %247 = vmatpush.bf16.msra.mxu0 %v228
  %248 = vmatpush.bf16.msra.mxu0 %v227
  %249 = vmatpush.bf16.msra.mxu0 %v226
  %250 = vmatmul.bf16.gmra.mxu0 %v176
  %v251 = vpop.f32.mrf.mxu0
  %v252 = vadd.f32 0.0, %v251
  %v253 = vpop.f32.mrf.mxu0
  %v254 = vadd.f32 0.0, %v253
  %255 = vmatmul.bf16.gmra.mxu0 %v177
  %v256 = vpop.f32.mrf.mxu0
  %v257 = vadd.f32 0.0, %v256
  %v258 = vpop.f32.mrf.mxu0
  %v259 = vadd.f32 0.0, %v258
  %260 = vdwg.mxu0
  %v261 = vadd.f32 %v252, %v254
  %v262 = vadd.f32 %v261, %v257
  %v263 = vadd.f32 %v262, %v259
  %v264 = vrot.slane %v263, 4
  %v265 = vadd.f32 %v263, %v264
  %v266 = vrot.slane %v265, 2
  %v267 = vadd.f32 %v265, %v266
  %v268 = vrot.slane %v267, 1
  %v269 = vadd.f32 %v267, %v268
  %v270 = vmul.f32 %v252, %v252
  %v271 = vmul.f32 %v254, %v254
  %v272 = vmul.f32 %v257, %v257
  %v273 = vmul.f32 %v259, %v259
  %v274 = vadd.f32 %v270, %v271
  %v275 = vadd.f32 %v274, %v272
  %v276 = vadd.f32 %v275, %v273
  %v277 = vrot.slane %v276, 4
  %v278 = vadd.f32 %v276, %v277
  %v279 = vrot.slane %v278, 2
  %v280 = vadd.f32 %v278, %v279
  %v281 = vrot.slane %v280, 1
  %v282 = vadd.f32 %v280, %v281
  %v283 = vld [vmem:[%s4] sm:$0x1]
  %v284 = vld [vmem:[%s4 + $0x1] sm:$0x1]
  %v285 = vmul.f32 %v269, 0.03125
  %v286 = vmul.f32 %v282, 0.03125
  %v287 = vmul.f32 %v285, %v285
  %v288 = vsub.f32 %v286, %v287
  %v289 = vmax.f32 %v288, 0.0
  %v290 = vadd.f32 %v289, 1e-05
  %v291 = vrsqrt.pop %v290
  %v292 = vmul.f32 %v291, %v290
  %v293 = vmul.f32 %v292, %v291
  %v294 = vmul.f32 0.5, %v293
  %v295 = vsub.f32 1.5, %v294
  %v296 = vmul.f32 %v291, %v295
  %vm297 = vweird.f32 %v290
  %vm298 = vweird.f32 %v291
  %vm299 = vmor %vm297, %vm298
  %v300 = vsel %vm299, %v291, %v296
  %v301 = vmul.f32 %v283, %v300
  %v302 = vmul.f32 %v285, %v301
  %v303 = vsub.f32 %v284, %v302
  %v304 = vperm.slane %v301, 0
  %v305 = vmul.f32 %v252, %v304
  %v306 = vmul.f32 %v254, %v304
  %v307 = vmul.f32 %v257, %v304
  %v308 = vmul.f32 %v259, %v304
  %v309 = vperm.slane %v303, 0
  %v310 = vadd.f32 %v305, %v309
  %v311 = vadd.f32 %v306, %v309
  %v312 = vadd.f32 %v307, %v309
  %v313 = vadd.f32 %v308, %v309
  %v314 = vunpack.c.l.bf16 %v20
  %v315 = vunpack.c.l.bf16 %v21
  %v316 = vunpack.c.l.bf16 %v22
  %v317 = vunpack.c.l.bf16 %v23
  %v318 = vadd.f32 %v310, %v314
  %v319 = vadd.f32 %v311, %v315
  %v320 = vadd.f32 %v312, %v316
  %v321 = vadd.f32 %v313, %v317
  %v322 = vmax.f32 %v318, 0.0
  %v323 = vmax.f32 %v319, 0.0
  %v324 = vmax.f32 %v320, 0.0
  %v325 = vmax.f32 %v321, 0.0
  %v326 = vpack.c.bf16 %v322, %v322
  %v327 = vpack.c.bf16 %v323, %v323
  %v328 = vpack.c.bf16 %v324, %v324
  %v329 = vpack.c.bf16 %v325, %v325
  %330 = vst [vmem:[%s5] sm:$0xf] %v326
  %331 = vst [vmem:[%s5 + $0x4] sm:$0xf] %v327
  %332 = vst [vmem:[%s5 + $0x8] sm:$0xf] %v328
  %333 = vst [vmem:[%s5 + $0xc] sm:$0xf] %v329
  // Predicated region
  $region22: #{encp_forward.13} parent=0 // pred_check
    _
  $region23: #{encp_forward.13} parent=0 // pred_check_branch
    %335 = sbr.rel (0) target = $region25
  $region24: #{encp_forward.13} parent=0 // pred_region
    _
  $region25: #{encp_forward.13} parent=0 // pred_fallthru
    _
  // Predicated region
  $region26: #{encp_forward.13} parent=0 // pred_check
    _
  $region27: #{encp_forward.13} parent=0 // pred_check_branch
    %337 = sbr.rel (0) target = $region29
  $region28: #{encp_forward.13} parent=0 // pred_region
    _
  $region29: #{encp_forward.13} parent=0 // pred_fallthru
    _

// kernel: encp_forward.12
$region0: #{encp_forward.12}
  #allocation0 [shape = 'u32[]', space=smem, size = 0x4, offset = 0x4, fixed_abs, tag = 'smem constant byte address 0x4 - core index']
  #allocation1 [shape = 'u32[72,128]{1,0:T(1,128)}', space=vmem, size = 0x9000, scoped, tag = 'internal scratch']
  %s0 = inlined_call_operand.vmem [shape: bf16[32,128], index: 0, kind: input, shape index: {}]
  %s1 = inlined_call_operand.vmem [shape: bf16[32,128], index: 1, kind: input, shape index: {}]
  %s2 = inlined_call_operand.vmem [shape: f32[32,8], index: 2, kind: input, shape index: {}]
  %s3 = inlined_call_operand.vmem [shape: bf16[128,128], index: 3, kind: input, shape index: {}]
  %s4 = inlined_call_operand.vmem [shape: bf16[128,128], index: 4, kind: input, shape index: {}]
  %s5 = inlined_call_operand.vmem [shape: f32[2,128], index: 5, kind: input, shape index: {}]
  %s6 = inlined_call_operand.vmem [shape: f32[8,128], index: 6, kind: input, shape index: {}]
  %s7 = inlined_call_operand.vmem [shape: f32[1,128], index: 7, kind: input, shape index: {}]
  %s8 = inlined_call_operand.vmem [shape: bf16[32,128], index: 8, kind: output, shape index: {}]
  %s9 = sld [smem:[#allocation0]]
  $region42: #{encp_forward.12} parent=0
    _
  %s11 = ssub.s32 1, %s9
  %s12 = scalar_select 0, %s11, %s9
  // Predicated region
  $region2: #{encp_forward.12} parent=0 // pred_check
    _
  $region3: #{encp_forward.12} parent=0 // pred_check_branch
    %14 = sbr.rel (0) target = $region5
  $region4: #{encp_forward.12} parent=0 // pred_region
    _
  $region5: #{encp_forward.12} parent=0 // pred_fallthru
    _
  // Predicated region
  $region6: #{encp_forward.12} parent=0 // pred_check
    _
  $region7: #{encp_forward.12} parent=0 // pred_check_branch
    %16 = sbr.rel (0) target = $region9
  $region8: #{encp_forward.12} parent=0 // pred_region
    _
  $region9: #{encp_forward.12} parent=0 // pred_fallthru
    _
  // Predicated region
  $region10: #{encp_forward.12} parent=0 // pred_check
    _
  $region11: #{encp_forward.12} parent=0 // pred_check_branch
    %18 = sbr.rel (0) target = $region13
  $region12: #{encp_forward.12} parent=0 // pred_region
    _
  $region13: #{encp_forward.12} parent=0 // pred_fallthru
    _
  // Predicated region
  $region14: #{encp_forward.12} parent=0 // pred_check
    _
  $region15: #{encp_forward.12} parent=0 // pred_check_branch
    %20 = sbr.rel (0) target = $region17
  $region16: #{encp_forward.12} parent=0 // pred_region
    _
  $region17: #{encp_forward.12} parent=0 // pred_fallthru
    _
  // Predicated region
  $region18: #{encp_forward.12} parent=0 // pred_check
    _
  $region19: #{encp_forward.12} parent=0 // pred_check_branch
    %22 = sbr.rel (0) target = $region21
  $region20: #{encp_forward.12} parent=0 // pred_region
    _
  $region21: #{encp_forward.12} parent=0 // pred_fallthru
    _
  // Predicated region
  $region22: #{encp_forward.12} parent=0 // pred_check
    _
  $region23: #{encp_forward.12} parent=0 // pred_check_branch
    %24 = sbr.rel (0) target = $region25
  $region24: #{encp_forward.12} parent=0 // pred_region
    _
  $region25: #{encp_forward.12} parent=0 // pred_fallthru
    _
  // Predicated region
  $region26: #{encp_forward.12} parent=0 // pred_check
    _
  $region27: #{encp_forward.12} parent=0 // pred_check_branch
    %26 = sbr.rel (0) target = $region29
  $region28: #{encp_forward.12} parent=0 // pred_region
    _
  $region29: #{encp_forward.12} parent=0 // pred_fallthru
    _
  // Predicated region
  $region30: #{encp_forward.12} parent=0 // pred_check
    _
  $region31: #{encp_forward.12} parent=0 // pred_check_branch
    %28 = sbr.rel (0) target = $region33
  $region32: #{encp_forward.12} parent=0 // pred_region
    _
  $region33: #{encp_forward.12} parent=0 // pred_fallthru
    _
  %v29 = vld [vmem:[%s0] sm:$0xf]
  %v30 = vld [vmem:[%s0 + $0x4] sm:$0xf]
  %v31 = vld [vmem:[%s0 + $0x8] sm:$0xf]
  %v32 = vld [vmem:[%s0 + $0xc] sm:$0xf]
  %v33 = vld [vmem:[%s3] sm:$0xf]
  %v34 = vld [vmem:[%s3 + $0x4] sm:$0xf]
  %v35 = vld [vmem:[%s3 + $0x8] sm:$0xf]
  %v36 = vld [vmem:[%s3 + $0xc] sm:$0xf]
  %v37 = vld [vmem:[%s3 + $0x10] sm:$0xf]
  %v38 = vld [vmem:[%s3 + $0x14] sm:$0xf]
  %v39 = vld [vmem:[%s3 + $0x18] sm:$0xf]
  %v40 = vld [vmem:[%s3 + $0x1c] sm:$0xf]
  %v41 = vld [vmem:[%s3 + $0x20] sm:$0xf]
  %v42 = vld [vmem:[%s3 + $0x24] sm:$0xf]
  %v43 = vld [vmem:[%s3 + $0x28] sm:$0xf]
  %v44 = vld [vmem:[%s3 + $0x2c] sm:$0xf]
  %v45 = vld [vmem:[%s3 + $0x30] sm:$0xf]
  %v46 = vld [vmem:[%s3 + $0x34] sm:$0xf]
  %v47 = vld [vmem:[%s3 + $0x38] sm:$0xf]
  %v48 = vld [vmem:[%s3 + $0x3c] sm:$0xf]
  %v49 = vld [vmem:[%s1] sm:$0xf]
  %v50 = vld [vmem:[%s1 + $0x4] sm:$0xf]
  %v51 = vld [vmem:[%s1 + $0x8] sm:$0xf]
  %v52 = vld [vmem:[%s1 + $0xc] sm:$0xf]
  %v53 = vld [vmem:[%s4] sm:$0xf]
  %v54 = vld [vmem:[%s4 + $0x4] sm:$0xf]
  %v55 = vld [vmem:[%s4 + $0x8] sm:$0xf]
  %v56 = vld [vmem:[%s4 + $0xc] sm:$0xf]
  %v57 = vld [vmem:[%s4 + $0x10] sm:$0xf]
  %v58 = vld [vmem:[%s4 + $0x14] sm:$0xf]
  %v59 = vld [vmem:[%s4 + $0x18] sm:$0xf]
  %v60 = vld [vmem:[%s4 + $0x1c] sm:$0xf]
  %v61 = vld [vmem:[%s4 + $0x20] sm:$0xf]
  %v62 = vld [vmem:[%s4 + $0x24] sm:$0xf]
  %v63 = vld [vmem:[%s4 + $0x28] sm:$0xf]
  %v64 = vld [vmem:[%s4 + $0x2c] sm:$0xf]
  %v65 = vld [vmem:[%s4 + $0x30] sm:$0xf]
  %v66 = vld [vmem:[%s4 + $0x34] sm:$0xf]
  %v67 = vld [vmem:[%s4 + $0x38] sm:$0xf]
  %v68 = vld [vmem:[%s4 + $0x3c] sm:$0xf]
  %v73 = vunpack.c.l.b16 %v49
  %v74 = vunpack.c.l.b16 %v50
  %v75 = vunpack.c.l.b16 %v51
  %v76 = vunpack.c.l.b16 %v52
  %v77 = vpack.c.b16 %v74, %v73
  %v78 = vpack.c.b16 %v76, %v75
  %v97 = vunpack.c.l.b16 %v53
  %v98 = vunpack.c.l.b16 %v54
  %v99 = vunpack.c.l.b16 %v55
  %v100 = vunpack.c.l.b16 %v56
  %v101 = vunpack.c.l.b16 %v57
  %v102 = vunpack.c.l.b16 %v58
  %v103 = vunpack.c.l.b16 %v59
  %v104 = vunpack.c.l.b16 %v60
  %v105 = vunpack.c.l.b16 %v61
  %v106 = vunpack.c.l.b16 %v62
  %v107 = vunpack.c.l.b16 %v63
  %v108 = vunpack.c.l.b16 %v64
  %v109 = vunpack.c.l.b16 %v65
  %v110 = vunpack.c.l.b16 %v66
  %v111 = vunpack.c.l.b16 %v67
  %v112 = vunpack.c.l.b16 %v68
  %v113 = vpack.c.b16 %v98, %v97
  %v114 = vpack.c.b16 %v100, %v99
  %v115 = vpack.c.b16 %v102, %v101
  %v116 = vpack.c.b16 %v104, %v103
  %v117 = vpack.c.b16 %v106, %v105
  %v118 = vpack.c.b16 %v108, %v107
  %v119 = vpack.c.b16 %v110, %v109
  %v120 = vpack.c.b16 %v112, %v111
  %129 = vmatpush.bf16.msra.mxu0 %v120
  %130 = vmatpush.bf16.msra.mxu0 %v119
  %131 = vmatpush.bf16.msra.mxu0 %v118
  %132 = vmatpush.bf16.msra.mxu0 %v117
  %133 = vmatpush.bf16.msra.mxu0 %v116
  %134 = vmatpush.bf16.msra.mxu0 %v115
  %135 = vmatpush.bf16.msra.mxu0 %v114
  %136 = vmatpush.bf16.msra.mxu0 %v113
  %137 = vmatmul.bf16.gmra.mxu0 %v77
  %v138 = vpop.f32.mrf.mxu0
  %v139 = vadd.f32 0.0, %v138
  %v140 = vpop.f32.mrf.mxu0
  %v141 = vadd.f32 0.0, %v140
  %142 = vmatmul.bf16.gmra.mxu0 %v78
  %v143 = vpop.f32.mrf.mxu0
  %v144 = vadd.f32 0.0, %v143
  %v145 = vpop.f32.mrf.mxu0
  %v146 = vadd.f32 0.0, %v145
  %147 = vdwg.mxu0
  %v152 = vunpack.c.l.b16 %v29
  %v153 = vunpack.c.l.b16 %v30
  %v154 = vunpack.c.l.b16 %v31
  %v155 = vunpack.c.l.b16 %v32
  %v156 = vpack.c.b16 %v153, %v152
  %v157 = vpack.c.b16 %v155, %v154
  %v176 = vunpack.c.l.b16 %v33
  %v177 = vunpack.c.l.b16 %v34
  %v178 = vunpack.c.l.b16 %v35
  %v179 = vunpack.c.l.b16 %v36
  %v180 = vunpack.c.l.b16 %v37
  %v181 = vunpack.c.l.b16 %v38
  %v182 = vunpack.c.l.b16 %v39
  %v183 = vunpack.c.l.b16 %v40
  %v184 = vunpack.c.l.b16 %v41
  %v185 = vunpack.c.l.b16 %v42
  %v186 = vunpack.c.l.b16 %v43
  %v187 = vunpack.c.l.b16 %v44
  %v188 = vunpack.c.l.b16 %v45
  %v189 = vunpack.c.l.b16 %v46
  %v190 = vunpack.c.l.b16 %v47
  %v191 = vunpack.c.l.b16 %v48
  %v192 = vpack.c.b16 %v177, %v176
  %v193 = vpack.c.b16 %v179, %v178
  %v194 = vpack.c.b16 %v181, %v180
  %v195 = vpack.c.b16 %v183, %v182
  %v196 = vpack.c.b16 %v185, %v184
  %v197 = vpack.c.b16 %v187, %v186
  %v198 = vpack.c.b16 %v189, %v188
  %v199 = vpack.c.b16 %v191, %v190
  %208 = vmatpush.bf16.msra.mxu0 %v199
  %209 = vmatpush.bf16.msra.mxu0 %v198
  %210 = vmatpush.bf16.msra.mxu0 %v197
  %211 = vmatpush.bf16.msra.mxu0 %v196
  %212 = vmatpush.bf16.msra.mxu0 %v195
  %213 = vmatpush.bf16.msra.mxu0 %v194
  %214 = vmatpush.bf16.msra.mxu0 %v193
  %215 = vmatpush.bf16.msra.mxu0 %v192
  %216 = vmatmul.bf16.gmra.mxu0 %v156
  %v217 = vpop.f32.mrf.mxu0
  %v218 = vadd.f32 %v139, %v217
  %v219 = vpop.f32.mrf.mxu0
  %v220 = vadd.f32 %v141, %v219
  %221 = vmatmul.bf16.gmra.mxu0 %v157
  %v222 = vpop.f32.mrf.mxu0
  %v223 = vadd.f32 %v144, %v222
  %v224 = vpop.f32.mrf.mxu0
  %v225 = vadd.f32 %v146, %v224
  %226 = vdwg.mxu0
  %v227 = vadd.f32 %v218, %v220
  %v228 = vadd.f32 %v227, %v223
  %v229 = vadd.f32 %v228, %v225
  %v230 = vrot.slane %v229, 4
  %v231 = vadd.f32 %v229, %v230
  %v232 = vrot.slane %v231, 2
  %v233 = vadd.f32 %v231, %v232
  %v234 = vrot.slane %v233, 1
  %v235 = vadd.f32 %v233, %v234
  %v236 = vmul.f32 %v218, %v218
  %v237 = vmul.f32 %v220, %v220
  %v238 = vmul.f32 %v223, %v223
  %v239 = vmul.f32 %v225, %v225
  %v240 = vadd.f32 %v236, %v237
  %v241 = vadd.f32 %v240, %v238
  %v242 = vadd.f32 %v241, %v239
  %v243 = vrot.slane %v242, 4
  %v244 = vadd.f32 %v242, %v243
  %v245 = vrot.slane %v244, 2
  %v246 = vadd.f32 %v244, %v245
  %v247 = vrot.slane %v246, 1
  %v248 = vadd.f32 %v246, %v247
  %v249 = vld [vmem:[%s5] sm:$0x1]
  %v250 = vld [vmem:[%s5 + $0x1] sm:$0x1]
  %v251 = vmul.f32 %v235, 0.03125
  %v252 = vmul.f32 %v248, 0.03125
  %v253 = vmul.f32 %v251, %v251
  %v254 = vsub.f32 %v252, %v253
  %v255 = vmax.f32 %v254, 0.0
  %v256 = vadd.f32 %v255, 1e-05
  %v257 = vrsqrt.pop %v256
  %v258 = vmul.f32 %v257, %v256
  %v259 = vmul.f32 %v258, %v257
  %v260 = vmul.f32 0.5, %v259
  %v261 = vsub.f32 1.5, %v260
  %v262 = vmul.f32 %v257, %v261
  %vm263 = vweird.f32 %v256
  %vm264 = vweird.f32 %v257
  %vm265 = vmor %vm263, %vm264
  %v266 = vsel %vm265, %v257, %v262
  %v267 = vmul.f32 %v249, %v266
  %v268 = vmul.f32 %v251, %v267
  %v269 = vsub.f32 %v250, %v268
  %v270 = vperm.slane %v267, 0
  %v271 = vmul.f32 %v218, %v270
  %v272 = vmul.f32 %v220, %v270
  %v273 = vmul.f32 %v223, %v270
  %v274 = vmul.f32 %v225, %v270
  %v275 = vperm.slane %v269, 0
  %v276 = vadd.f32 %v271, %v275
  %v277 = vadd.f32 %v272, %v275
  %v278 = vadd.f32 %v273, %v275
  %v279 = vadd.f32 %v274, %v275
  %v280 = vmax.f32 %v276, 0.0
  %v281 = vmax.f32 %v277, 0.0
  %v282 = vmax.f32 %v278, 0.0
  %v283 = vmax.f32 %v279, 0.0
  %v284 = vld [vmem:[%s2] sm:$0xff]
  %v285 = vld [vmem:[%s2 + $0x8] sm:$0xff]
  %v286 = vld [vmem:[%s2 + $0x10] sm:$0xff]
  %v287 = vld [vmem:[%s2 + $0x18] sm:$0xff]
  %v288 = vld [vmem:[%s6] sm:$0xff]
  %v289 = vld [vmem:[%s7] sm:$0x1]
  %v291 = vperm.slane %v289, 0
  %vm293 = vcmask 64512
  %v295 = vsel %vm293, %v284, 0
  %v298 = vsel %vm293, %v285, 0
  %v301 = vsel %vm293, %v286, 0
  %v304 = vsel %vm293, %v287, 0
  %306 = vmatpush.msra.mxu0 0.0
  %307 = vmatpush.msra.mxu0 0.0
  %308 = vmatpush.msra.mxu0 0.0
  %309 = vmatpush.msra.mxu0 0.0
  %310 = vmatpush.msra.mxu0 0.0
  %311 = vmatpush.msra.mxu0 0.0
  %312 = vmatpush.msra.mxu0 0.0
  %313 = vmatpush.msra.mxu0 0.0
  %314 = vmatpush.msra.mxu0 0.0
  %315 = vmatpush.msra.mxu0 0.0
  %316 = vmatpush.msra.mxu0 0.0
  %317 = vmatpush.msra.mxu0 0.0
  %318 = vmatpush.msra.mxu0 0.0
  %319 = vmatpush.msra.mxu0 0.0
  %320 = vmatpush.msra.mxu0 0.0
  %321 = vmatpush.msra.mxu0 %v288
  %322 = vmatmul.f32.gmra.mxu0 %v295
  %v323 = vpop.f32.mrf.mxu0
  %v324 = vadd.f32 %v291, %v323
  %325 = vmatmul.f32.gmra.mxu0 %v298
  %v326 = vpop.f32.mrf.mxu0
  %v327 = vadd.f32 %v291, %v326
  %328 = vmatmul.f32.gmra.mxu0 %v301
  %v329 = vpop.f32.mrf.mxu0
  %v330 = vadd.f32 %v291, %v329
  %331 = vmatmul.f32.gmra.mxu0 %v304
  %v332 = vpop.f32.mrf.mxu0
  %v333 = vadd.f32 %v291, %v332
  %334 = vdwg.mxu0
  %v335 = vand.u32 2147483647, %v324
  %vm336 = vcmp.le.f32.partialorder %v335, 0.7853982
  %vm337 = vcmp.lt.s32.totalorder %v324, 0
  %v338 = vand.u32 %v324, 2139095040
  %v339 = vshrl.u32 %v338, 23
  %v340 = vsub.s32 %v339, 127
  %v341 = vand.u32 2147483647, %v324
  %v342 = vand.u32 %v341, 8388607
  %v343 = vor.u32 %v342, 8388608
  %v344 = vsub.s32 0, %v343
  %v345 = vadd.s32 %v340, 1
  %vm346 = vcmp.gt.s32.totalorder %v345, 0
  %v347 = vsel %vm346, %v345, 0
  %v348 = vshrl.u32 %v347, 5
  %v349 = vand.u32 %v347, 31
  %v350 = vsub.s32 32, %v349
  %v351 = vshrl.u32 683565275, %v350
  %v352 = vshll.u32 683565275, %v349
  %v353 = vshrl.u32 2475754826, %v350
  %v354 = vor.u32 %v352, %v353
  %v355 = vshll.u32 2475754826, %v349
  %v356 = vshrl.u32 2131351028, %v350
  %v357 = vor.u32 %v355, %v356
  %v358 = vshll.u32 2131351028, %v349
  %v359 = vshrl.u32 2102212464, %v350
  %v360 = vor.u32 %v358, %v359
  %v361 = vshll.u32 2102212464, %v349
  %v362 = vshrl.u32 920167782, %v350
  %v363 = vor.u32 %v361, %v362
  %v364 = vshll.u32 920167782, %v349
  %v365 = vshrl.u32 1326507024, %v350
  %v366 = vor.u32 %v364, %v365
  %vm367 = vcmp.lt.s32.totalorder %v348, 1
  %vm368 = vcmp.lt.s32.totalorder %v348, 2
  %vm369 = vcmp.lt.s32.totalorder %v348, 3
  %vm370 = vcmp.lt.s32.totalorder %v348, 4
  %v371 = vsel %vm367, %v351, %v354
  %v372 = vsel %vm370, %v360, 2102212464
  %v373 = vsel %vm369, %v357, %v372
  %v374 = vsel %vm368, %v371, %v373
  %v375 = vsel %vm367, %v354, %v357
  %v376 = vsel %vm370, %v363, 920167782
  %v377 = vsel %vm369, %v360, %v376
  %v378 = vsel %vm368, %v375, %v377
  %v379 = vsel %vm367, %v357, %v360
  %v380 = vsel %vm370, %v366, 1326507024
  %v381 = vsel %vm369, %v363, %v380
  %v382 = vsel %vm368, %v379, %v381
  %v383 = vshll.u32 %v343, 8
  %v384 = vand.u32 %v383, 65535
  %v385 = vshrl.u32 %v383, 16
  %v386 = vand.u32 %v382, 65535
  %v387 = vshrl.u32 %v382, 16
  %v388 = vmul.u32 %v384, %v386
  %v389 = vmul.u32 %v384, %v387
  %v390 = vmul.u32 %v385, %v386
  %v391 = vmul.u32 %v385, %v387
  %v392 = vshll.u32 %v389, 16
  %v393 = vshrl.u32 %v389, 16
  %v394 = vshll.u32 %v390, 16
  %v395 = vshrl.u32 %v390, 16
  %vm396 = vc.u32 %v388, %v392
  %v397 = vsel %vm396, 1, 0
  %v398 = vadd.s32 %v388, %v392
  %v399 = vadd.s32 %v391, %v397
  %vm400 = vc.u32 %v398, %v394
  %v401 = vsel %vm400, 1, 0
  %v402 = vadd.s32 %v398, %v394
  %v403 = vadd.s32 %v399, %v401
  %v404 = vadd.s32 %v403, %v393
  %v405 = vadd.s32 %v404, %v395
  %v406 = vand.u32 %v383, 65535
  %v407 = vshrl.u32 %v383, 16
  %v408 = vand.u32 %v378, 65535
  %v409 = vshrl.u32 %v378, 16
  %v410 = vmul.u32 %v406, %v408
  %v411 = vmul.u32 %v406, %v409
  %v412 = vmul.u32 %v407, %v408
  %v413 = vmul.u32 %v407, %v409
  %v414 = vshll.u32 %v411, 16
  %v415 = vshrl.u32 %v411, 16
  %v416 = vshll.u32 %v412, 16
  %v417 = vshrl.u32 %v412, 16
  %vm418 = vc.u32 %v410, %v414
  %v419 = vsel %vm418, 1, 0
  %v420 = vadd.s32 %v410, %v414
  %v421 = vadd.s32 %v413, %v419
  %vm422 = vc.u32 %v420, %v416
  %v423 = vsel %vm422, 1, 0
  %v424 = vadd.s32 %v420, %v416
  %v425 = vadd.s32 %v421, %v423
  %v426 = vadd.s32 %v425, %v415
  %v427 = vadd.s32 %v426, %v417
  %v428 = vmul.u32 %v383, %v374
  %v429 = vadd.s32 %v405, %v424
  %vm430 = vc.u32 %v405, %v424
  %v431 = vadd.s32 %v427, 1
  %v432 = vsel %vm430, %v431, %v427
  %v433 = vadd.s32 %v428, %v432
  %v434 = vadd.s32 %v433, 536870912
  %v435 = vshrl.u32 %v434, 30
  %v436 = vshll.u32 %v435, 30
  %v437 = vsub.s32 %v433, %v436
  %vm438 = vcmp.lt.s32.totalorder %v437, 0
  %v439 = vsub.s32 0, %v437
  %v440 = vsel %vm438, %v439, %v437
  %v441 = vclz %v440
  %v442 = vsub.s32 %v441, 2
  %vm443 = vcmp.gt.s32.totalorder 0, %v442
  %v444 = vsel %vm443, 0, %v442
  %v445 = vsub.s32 32, %v444
  %v446 = vshll.u32 %v437, %v444
  %v447 = vshrl.u32 %v429, %v445
  %v448 = vor.u32 %v446, %v447
  %v449 = vsub.s32 4294967266, %v444
  %v450 = vadd.s32 %v449, 127
  %v451 = vshll.u32 %v450, 23
  %v452 = vor.u32 4788187, %v451
  %v453 = vand.u32 2147483647, %v452
  %v455 = vcvt.s32.f32 %v448
  %v456 = vmul.f32 %v455, %v453
  %v457 = vxor.u32 %v456, 2147483648
  %v458 = vsel %vm337, %v457, %v456
  %v459 = vsub.s32 4, %v435
  %v460 = vsel %vm337, %v459, %v435
  %v461 = vsel %vm336, %v324, %v458
  %v462 = vsel %vm336, 0, %v460
  %v463 = vmul.f32 %v461, %v461
  %v464 = vmul.f32 %v463, -0.001358992
  %v465 = vadd.f32 %v464, 0.041655596
  %v466 = vmul.f32 %v463, %v465
  %v467 = vadd.f32 %v466, -0.4999988
  %v468 = vmul.f32 %v463, %v467
  %v469 = vadd.f32 1.0, %v468
  %v470 = vmul.f32 %v461, %v461
  %v471 = vmul.f32 %v470, -0.00019511016
  %v472 = vadd.f32 %v471, 0.008332121
  %v473 = vmul.f32 %v470, %v472
  %v474 = vadd.f32 %v473, -0.16666654
  %v475 = vmul.f32 %v470, %v474
  %v476 = vadd.f32 %v475, 1.0
  %v477 = vmul.f32 %v476, %v461
  %vm478 = vweird.f32 %v324
  %v479 = vadd.s32 %v462, 3
  %v480 = vand.u32 %v479, 3
  %vm481 = vcmp.lt.s32.totalorder %v480, 2
  %vm482 = vcmp.eq.s32.totalorder %v480, 0
  %v483 = vxor.u32 %v477, 2147483648
  %v484 = vsel %vm482, %v469, %v483
  %vm485 = vcmp.eq.s32.totalorder %v480, 2
  %v486 = vxor.u32 %v469, 2147483648
  %v487 = vsel %vm485, %v486, %v477
  %v488 = vsel %vm481, %v484, %v487
  %v489 = vsel %vm478, nan, %v488
  %v490 = vand.u32 2147483647, %v327
  %vm491 = vcmp.le.f32.partialorder %v490, 0.7853982
  %vm492 = vcmp.lt.s32.totalorder %v327, 0
  %v493 = vand.u32 %v327, 2139095040
  %v494 = vshrl.u32 %v493, 23
  %v495 = vsub.s32 %v494, 127
  %v496 = vand.u32 2147483647, %v327
  %v497 = vand.u32 %v496, 8388607
  %v498 = vor.u32 %v497, 8388608
  %v499 = vsub.s32 0, %v498
  %v500 = vadd.s32 %v495, 1
  %vm501 = vcmp.gt.s32.totalorder %v500, 0
  %v502 = vsel %vm501, %v500, 0
  %v503 = vshrl.u32 %v502, 5
  %v504 = vand.u32 %v502, 31
  %v505 = vsub.s32 32, %v504
  %v506 = vshrl.u32 683565275, %v505
  %v507 = vshll.u32 683565275, %v504
  %v508 = vshrl.u32 2475754826, %v505
  %v509 = vor.u32 %v507, %v508
  %v510 = vshll.u32 2475754826, %v504
  %v511 = vshrl.u32 2131351028, %v505
  %v512 = vor.u32 %v510, %v511
  %v513 = vshll.u32 2131351028, %v504
  %v514 = vshrl.u32 2102212464, %v505
  %v515 = vor.u32 %v513, %v514
  %v516 = vshll.u32 2102212464, %v504
  %v517 = vshrl.u32 920167782, %v505
  %v518 = vor.u32 %v516, %v517
  %v519 = vshll.u32 920167782, %v504
  %v520 = vshrl.u32 1326507024, %v505
  %v521 = vor.u32 %v519, %v520
  %vm522 = vcmp.lt.s32.totalorder %v503, 1
  %vm523 = vcmp.lt.s32.totalorder %v503, 2
  %vm524 = vcmp.lt.s32.totalorder %v503, 3
  %vm525 = vcmp.lt.s32.totalorder %v503, 4
  %v526 = vsel %vm522, %v506, %v509
  %v527 = vsel %vm525, %v515, 2102212464
  %v528 = vsel %vm524, %v512, %v527
  %v529 = vsel %vm523, %v526, %v528
  %v530 = vsel %vm522, %v509, %v512
  %v531 = vsel %vm525, %v518, 920167782
  %v532 = vsel %vm524, %v515, %v531
  %v533 = vsel %vm523, %v530, %v532
  %v534 = vsel %vm522, %v512, %v515
  %v535 = vsel %vm525, %v521, 1326507024
  %v536 = vsel %vm524, %v518, %v535
  %v537 = vsel %vm523, %v534, %v536
  %v538 = vshll.u32 %v498, 8
  %v539 = vand.u32 %v538, 65535
  %v540 = vshrl.u32 %v538, 16
  %v541 = vand.u32 %v537, 65535
  %v542 = vshrl.u32 %v537, 16
  %v543 = vmul.u32 %v539, %v541
  %v544 = vmul.u32 %v539, %v542
  %v545 = vmul.u32 %v540, %v541
  %v546 = vmul.u32 %v540, %v542
  %v547 = vshll.u32 %v544, 16
  %v548 = vshrl.u32 %v544, 16
  %v549 = vshll.u32 %v545, 16
  %v550 = vshrl.u32 %v545, 16
  %vm551 = vc.u32 %v543, %v547
  %v552 = vsel %vm551, 1, 0
  %v553 = vadd.s32 %v543, %v547
  %v554 = vadd.s32 %v546, %v552
  %vm555 = vc.u32 %v553, %v549
  %v556 = vsel %vm555, 1, 0
  %v557 = vadd.s32 %v553, %v549
  %v558 = vadd.s32 %v554, %v556
  %v559 = vadd.s32 %v558, %v548
  %v560 = vadd.s32 %v559, %v550
  %v561 = vand.u32 %v538, 65535
  %v562 = vshrl.u32 %v538, 16
  %v563 = vand.u32 %v533, 65535
  %v564 = vshrl.u32 %v533, 16
  %v565 = vmul.u32 %v561, %v563
  %v566 = vmul.u32 %v561, %v564
  %v567 = vmul.u32 %v562, %v563
  %v568 = vmul.u32 %v562, %v564
  %v569 = vshll.u32 %v566, 16
  %v570 = vshrl.u32 %v566, 16
  %v571 = vshll.u32 %v567, 16
  %v572 = vshrl.u32 %v567, 16
  %vm573 = vc.u32 %v565, %v569
  %v574 = vsel %vm573, 1, 0
  %v575 = vadd.s32 %v565, %v569
  %v576 = vadd.s32 %v568, %v574
  %vm577 = vc.u32 %v575, %v571
  %v578 = vsel %vm577, 1, 0
  %v579 = vadd.s32 %v575, %v571
  %v580 = vadd.s32 %v576, %v578
  %v581 = vadd.s32 %v580, %v570
  %v582 = vadd.s32 %v581, %v572
  %v583 = vmul.u32 %v538, %v529
  %v584 = vadd.s32 %v560, %v579
  %vm585 = vc.u32 %v560, %v579
  %v586 = vadd.s32 %v582, 1
  %v587 = vsel %vm585, %v586, %v582
  %v588 = vadd.s32 %v583, %v587
  %v589 = vadd.s32 %v588, 536870912
  %v590 = vshrl.u32 %v589, 30
  %v591 = vshll.u32 %v590, 30
  %v592 = vsub.s32 %v588, %v591
  %vm593 = vcmp.lt.s32.totalorder %v592, 0
  %v594 = vsub.s32 0, %v592
  %v595 = vsel %vm593, %v594, %v592
  %v596 = vclz %v595
  %v597 = vsub.s32 %v596, 2
  %vm598 = vcmp.gt.s32.totalorder 0, %v597
  %v599 = vsel %vm598, 0, %v597
  %v600 = vsub.s32 32, %v599
  %v601 = vshll.u32 %v592, %v599
  %v602 = vshrl.u32 %v584, %v600
  %v603 = vor.u32 %v601, %v602
  %v604 = vsub.s32 4294967266, %v599
  %v605 = vadd.s32 %v604, 127
  %v606 = vshll.u32 %v605, 23
  %v607 = vor.u32 4788187, %v606
  %v608 = vand.u32 2147483647, %v607
  %v610 = vcvt.s32.f32 %v603
  %v611 = vmul.f32 %v610, %v608
  %v612 = vxor.u32 %v611, 2147483648
  %v613 = vsel %vm492, %v612, %v611
  %v614 = vsub.s32 4, %v590
  %v615 = vsel %vm492, %v614, %v590
  %v616 = vsel %vm491, %v327, %v613
  %v617 = vsel %vm491, 0, %v615
  %v618 = vmul.f32 %v616, %v616
  %v619 = vmul.f32 %v618, -0.001358992
  %v620 = vadd.f32 %v619, 0.041655596
  %v621 = vmul.f32 %v618, %v620
  %v622 = vadd.f32 %v621, -0.4999988
  %v623 = vmul.f32 %v618, %v622
  %v624 = vadd.f32 1.0, %v623
  %v625 = vmul.f32 %v616, %v616
  %v626 = vmul.f32 %v625, -0.00019511016
  %v627 = vadd.f32 %v626, 0.008332121
  %v628 = vmul.f32 %v625, %v627
  %v629 = vadd.f32 %v628, -0.16666654
  %v630 = vmul.f32 %v625, %v629
  %v631 = vadd.f32 %v630, 1.0
  %v632 = vmul.f32 %v631, %v616
  %vm633 = vweird.f32 %v327
  %v634 = vadd.s32 %v617, 3
  %v635 = vand.u32 %v634, 3
  %vm636 = vcmp.lt.s32.totalorder %v635, 2
  %vm637 = vcmp.eq.s32.totalorder %v635, 0
  %v638 = vxor.u32 %v632, 2147483648
  %v639 = vsel %vm637, %v624, %v638
  %vm640 = vcmp.eq.s32.totalorder %v635, 2
  %v641 = vxor.u32 %v624, 2147483648
  %v642 = vsel %vm640, %v641, %v632
  %v643 = vsel %vm636, %v639, %v642
  %v644 = vsel %vm633, nan, %v643
  %v645 = vand.u32 2147483647, %v330
  %vm646 = vcmp.le.f32.partialorder %v645, 0.7853982
  %vm647 = vcmp.lt.s32.totalorder %v330, 0
  %v648 = vand.u32 %v330, 2139095040
  %v649 = vshrl.u32 %v648, 23
  %v650 = vsub.s32 %v649, 127
  %v651 = vand.u32 2147483647, %v330
  %v652 = vand.u32 %v651, 8388607
  %v653 = vor.u32 %v652, 8388608
  %v654 = vsub.s32 0, %v653
  %v655 = vadd.s32 %v650, 1
  %vm656 = vcmp.gt.s32.totalorder %v655, 0
  %v657 = vsel %vm656, %v655, 0
  %v658 = vshrl.u32 %v657, 5
  %v659 = vand.u32 %v657, 31
  %v660 = vsub.s32 32, %v659
  %v661 = vshrl.u32 683565275, %v660
  %v662 = vshll.u32 683565275, %v659
  %v663 = vshrl.u32 2475754826, %v660
  %v664 = vor.u32 %v662, %v663
  %v665 = vshll.u32 2475754826, %v659
  %v666 = vshrl.u32 2131351028, %v660
  %v667 = vor.u32 %v665, %v666
  %v668 = vshll.u32 2131351028, %v659
  %v669 = vshrl.u32 2102212464, %v660
  %v670 = vor.u32 %v668, %v669
  %v671 = vshll.u32 2102212464, %v659
  %v672 = vshrl.u32 920167782, %v660
  %v673 = vor.u32 %v671, %v672
  %v674 = vshll.u32 920167782, %v659
  %v675 = vshrl.u32 1326507024, %v660
  %v676 = vor.u32 %v674, %v675
  %vm677 = vcmp.lt.s32.totalorder %v658, 1
  %vm678 = vcmp.lt.s32.totalorder %v658, 2
  %vm679 = vcmp.lt.s32.totalorder %v658, 3
  %vm680 = vcmp.lt.s32.totalorder %v658, 4
  %v681 = vsel %vm677, %v661, %v664
  %v682 = vsel %vm680, %v670, 2102212464
  %v683 = vsel %vm679, %v667, %v682
  %v684 = vsel %vm678, %v681, %v683
  %v685 = vsel %vm677, %v664, %v667
  %v686 = vsel %vm680, %v673, 920167782
  %v687 = vsel %vm679, %v670, %v686
  %v688 = vsel %vm678, %v685, %v687
  %v689 = vsel %vm677, %v667, %v670
  %v690 = vsel %vm680, %v676, 1326507024
  %v691 = vsel %vm679, %v673, %v690
  %v692 = vsel %vm678, %v689, %v691
  %v693 = vshll.u32 %v653, 8
  %v694 = vand.u32 %v693, 65535
  %v695 = vshrl.u32 %v693, 16
  %v696 = vand.u32 %v692, 65535
  %v697 = vshrl.u32 %v692, 16
  %v698 = vmul.u32 %v694, %v696
  %v699 = vmul.u32 %v694, %v697
  %v700 = vmul.u32 %v695, %v696
  %v701 = vmul.u32 %v695, %v697
  %v702 = vshll.u32 %v699, 16
  %v703 = vshrl.u32 %v699, 16
  %v704 = vshll.u32 %v700, 16
  %v705 = vshrl.u32 %v700, 16
  %vm706 = vc.u32 %v698, %v702
  %v707 = vsel %vm706, 1, 0
  %v708 = vadd.s32 %v698, %v702
  %v709 = vadd.s32 %v701, %v707
  %vm710 = vc.u32 %v708, %v704
  %v711 = vsel %vm710, 1, 0
  %v712 = vadd.s32 %v708, %v704
  %v713 = vadd.s32 %v709, %v711
  %v714 = vadd.s32 %v713, %v703
  %v715 = vadd.s32 %v714, %v705
  %v716 = vand.u32 %v693, 65535
  %v717 = vshrl.u32 %v693, 16
  %v718 = vand.u32 %v688, 65535
  %v719 = vshrl.u32 %v688, 16
  %v720 = vmul.u32 %v716, %v718
  %v721 = vmul.u32 %v716, %v719
  %v722 = vmul.u32 %v717, %v718
  %v723 = vmul.u32 %v717, %v719
  %v724 = vshll.u32 %v721, 16
  %v725 = vshrl.u32 %v721, 16
  %v726 = vshll.u32 %v722, 16
  %v727 = vshrl.u32 %v722, 16
  %vm728 = vc.u32 %v720, %v724
  %v729 = vsel %vm728, 1, 0
  %v730 = vadd.s32 %v720, %v724
  %v731 = vadd.s32 %v723, %v729
  %vm732 = vc.u32 %v730, %v726
  %v733 = vsel %vm732, 1, 0
  %v734 = vadd.s32 %v730, %v726
  %v735 = vadd.s32 %v731, %v733
  %v736 = vadd.s32 %v735, %v725
  %v737 = vadd.s32 %v736, %v727
  %v738 = vmul.u32 %v693, %v684
  %v739 = vadd.s32 %v715, %v734
  %vm740 = vc.u32 %v715, %v734
  %v741 = vadd.s32 %v737, 1
  %v742 = vsel %vm740, %v741, %v737
  %v743 = vadd.s32 %v738, %v742
  %v744 = vadd.s32 %v743, 536870912
  %v745 = vshrl.u32 %v744, 30
  %v746 = vshll.u32 %v745, 30
  %v747 = vsub.s32 %v743, %v746
  %vm748 = vcmp.lt.s32.totalorder %v747, 0
  %v749 = vsub.s32 0, %v747
  %v750 = vsel %vm748, %v749, %v747
  %v751 = vclz %v750
  %v752 = vsub.s32 %v751, 2
  %vm753 = vcmp.gt.s32.totalorder 0, %v752
  %v754 = vsel %vm753, 0, %v752
  %v755 = vsub.s32 32, %v754
  %v756 = vshll.u32 %v747, %v754
  %v757 = vshrl.u32 %v739, %v755
  %v758 = vor.u32 %v756, %v757
  %v759 = vsub.s32 4294967266, %v754
  %v760 = vadd.s32 %v759, 127
  %v761 = vshll.u32 %v760, 23
  %v762 = vor.u32 4788187, %v761
  %v763 = vand.u32 2147483647, %v762
  %v765 = vcvt.s32.f32 %v758
  %v766 = vmul.f32 %v765, %v763
  %v767 = vxor.u32 %v766, 2147483648
  %v768 = vsel %vm647, %v767, %v766
  %v769 = vsub.s32 4, %v745
  %v770 = vsel %vm647, %v769, %v745
  %v771 = vsel %vm646, %v330, %v768
  %v772 = vsel %vm646, 0, %v770
  %v773 = vmul.f32 %v771, %v771
  %v774 = vmul.f32 %v773, -0.001358992
  %v775 = vadd.f32 %v774, 0.041655596
  %v776 = vmul.f32 %v773, %v775
  %v777 = vadd.f32 %v776, -0.4999988
  %v778 = vmul.f32 %v773, %v777
  %v779 = vadd.f32 1.0, %v778
  %v780 = vmul.f32 %v771, %v771
  %v781 = vmul.f32 %v780, -0.00019511016
  %v782 = vadd.f32 %v781, 0.008332121
  %v783 = vmul.f32 %v780, %v782
  %v784 = vadd.f32 %v783, -0.16666654
  %v785 = vmul.f32 %v780, %v784
  %v786 = vadd.f32 %v785, 1.0
  %v787 = vmul.f32 %v786, %v771
  %vm788 = vweird.f32 %v330
  %v789 = vadd.s32 %v772, 3
  %v790 = vand.u32 %v789, 3
  %vm791 = vcmp.lt.s32.totalorder %v790, 2
  %vm792 = vcmp.eq.s32.totalorder %v790, 0
  %v793 = vxor.u32 %v787, 2147483648
  %v794 = vsel %vm792, %v779, %v793
  %vm795 = vcmp.eq.s32.totalorder %v790, 2
  %v796 = vxor.u32 %v779, 2147483648
  %v797 = vsel %vm795, %v796, %v787
  %v798 = vsel %vm791, %v794, %v797
  %v799 = vsel %vm788, nan, %v798
  %v800 = vand.u32 2147483647, %v333
  %vm801 = vcmp.le.f32.partialorder %v800, 0.7853982
  %vm802 = vcmp.lt.s32.totalorder %v333, 0
  %v803 = vand.u32 %v333, 2139095040
  %v804 = vshrl.u32 %v803, 23
  %v805 = vsub.s32 %v804, 127
  %v806 = vand.u32 2147483647, %v333
  %v807 = vand.u32 %v806, 8388607
  %v808 = vor.u32 %v807, 8388608
  %v809 = vsub.s32 0, %v808
  %v810 = vadd.s32 %v805, 1
  %vm811 = vcmp.gt.s32.totalorder %v810, 0
  %v812 = vsel %vm811, %v810, 0
  %v813 = vshrl.u32 %v812, 5
  %v814 = vand.u32 %v812, 31
  %v815 = vsub.s32 32, %v814
  %v816 = vshrl.u32 683565275, %v815
  %v817 = vshll.u32 683565275, %v814
  %v818 = vshrl.u32 2475754826, %v815
  %v819 = vor.u32 %v817, %v818
  %v820 = vshll.u32 2475754826, %v814
  %v821 = vshrl.u32 2131351028, %v815
  %v822 = vor.u32 %v820, %v821
  %v823 = vshll.u32 2131351028, %v814
  %v824 = vshrl.u32 2102212464, %v815
  %v825 = vor.u32 %v823, %v824
  %v826 = vshll.u32 2102212464, %v814
  %v827 = vshrl.u32 920167782, %v815
  %v828 = vor.u32 %v826, %v827
  %v829 = vshll.u32 920167782, %v814
  %v830 = vshrl.u32 1326507024, %v815
  %v831 = vor.u32 %v829, %v830
  %vm832 = vcmp.lt.s32.totalorder %v813, 1
  %vm833 = vcmp.lt.s32.totalorder %v813, 2
  %vm834 = vcmp.lt.s32.totalorder %v813, 3
  %vm835 = vcmp.lt.s32.totalorder %v813, 4
  %v836 = vsel %vm832, %v816, %v819
  %v837 = vsel %vm835, %v825, 2102212464
  %v838 = vsel %vm834, %v822, %v837
  %v839 = vsel %vm833, %v836, %v838
  %v840 = vsel %vm832, %v819, %v822
  %v841 = vsel %vm835, %v828, 920167782
  %v842 = vsel %vm834, %v825, %v841
  %v843 = vsel %vm833, %v840, %v842
  %v844 = vsel %vm832, %v822, %v825
  %v845 = vsel %vm835, %v831, 1326507024
  %v846 = vsel %vm834, %v828, %v845
  %v847 = vsel %vm833, %v844, %v846
  %v848 = vshll.u32 %v808, 8
  %v849 = vand.u32 %v848, 65535
  %v850 = vshrl.u32 %v848, 16
  %v851 = vand.u32 %v847, 65535
  %v852 = vshrl.u32 %v847, 16
  %v853 = vmul.u32 %v849, %v851
  %v854 = vmul.u32 %v849, %v852
  %v855 = vmul.u32 %v850, %v851
  %v856 = vmul.u32 %v850, %v852
  %v857 = vshll.u32 %v854, 16
  %v858 = vshrl.u32 %v854, 16
  %v859 = vshll.u32 %v855, 16
  %v860 = vshrl.u32 %v855, 16
  %vm861 = vc.u32 %v853, %v857
  %v862 = vsel %vm861, 1, 0
  %v863 = vadd.s32 %v853, %v857
  %v864 = vadd.s32 %v856, %v862
  %vm865 = vc.u32 %v863, %v859
  %v866 = vsel %vm865, 1, 0
  %v867 = vadd.s32 %v863, %v859
  %v868 = vadd.s32 %v864, %v866
  %v869 = vadd.s32 %v868, %v858
  %v870 = vadd.s32 %v869, %v860
  %v871 = vand.u32 %v848, 65535
  %v872 = vshrl.u32 %v848, 16
  %v873 = vand.u32 %v843, 65535
  %v874 = vshrl.u32 %v843, 16
  %v875 = vmul.u32 %v871, %v873
  %v876 = vmul.u32 %v871, %v874
  %v877 = vmul.u32 %v872, %v873
  %v878 = vmul.u32 %v872, %v874
  %v879 = vshll.u32 %v876, 16
  %v880 = vshrl.u32 %v876, 16
  %v881 = vshll.u32 %v877, 16
  %v882 = vshrl.u32 %v877, 16
  %vm883 = vc.u32 %v875, %v879
  %v884 = vsel %vm883, 1, 0
  %v885 = vadd.s32 %v875, %v879
  %v886 = vadd.s32 %v878, %v884
  %vm887 = vc.u32 %v885, %v881
  %v888 = vsel %vm887, 1, 0
  %v889 = vadd.s32 %v885, %v881
  %v890 = vadd.s32 %v886, %v888
  %v891 = vadd.s32 %v890, %v880
  %v892 = vadd.s32 %v891, %v882
  %v893 = vmul.u32 %v848, %v839
  %v894 = vadd.s32 %v870, %v889
  %vm895 = vc.u32 %v870, %v889
  %v896 = vadd.s32 %v892, 1
  %v897 = vsel %vm895, %v896, %v892
  %v898 = vadd.s32 %v893, %v897
  %v899 = vadd.s32 %v898, 536870912
  %v900 = vshrl.u32 %v899, 30
  %v901 = vshll.u32 %v900, 30
  %v902 = vsub.s32 %v898, %v901
  %vm903 = vcmp.lt.s32.totalorder %v902, 0
  %v904 = vsub.s32 0, %v902
  %v905 = vsel %vm903, %v904, %v902
  %v906 = vclz %v905
  %v907 = vsub.s32 %v906, 2
  %vm908 = vcmp.gt.s32.totalorder 0, %v907
  %v909 = vsel %vm908, 0, %v907
  %v910 = vsub.s32 32, %v909
  %v911 = vshll.u32 %v902, %v909
  %v912 = vshrl.u32 %v894, %v910
  %v913 = vor.u32 %v911, %v912
  %v914 = vsub.s32 4294967266, %v909
  %v915 = vadd.s32 %v914, 127
  %v916 = vshll.u32 %v915, 23
  %v917 = vor.u32 4788187, %v916
  %v918 = vand.u32 2147483647, %v917
  %v920 = vcvt.s32.f32 %v913
  %v921 = vmul.f32 %v920, %v918
  %v922 = vxor.u32 %v921, 2147483648
  %v923 = vsel %vm802, %v922, %v921
  %v924 = vsub.s32 4, %v900
  %v925 = vsel %vm802, %v924, %v900
  %v926 = vsel %vm801, %v333, %v923
  %v927 = vsel %vm801, 0, %v925
  %v928 = vmul.f32 %v926, %v926
  %v929 = vmul.f32 %v928, -0.001358992
  %v930 = vadd.f32 %v929, 0.041655596
  %v931 = vmul.f32 %v928, %v930
  %v932 = vadd.f32 %v931, -0.4999988
  %v933 = vmul.f32 %v928, %v932
  %v934 = vadd.f32 1.0, %v933
  %v935 = vmul.f32 %v926, %v926
  %v936 = vmul.f32 %v935, -0.00019511016
  %v937 = vadd.f32 %v936, 0.008332121
  %v938 = vmul.f32 %v935, %v937
  %v939 = vadd.f32 %v938, -0.16666654
  %v940 = vmul.f32 %v935, %v939
  %v941 = vadd.f32 %v940, 1.0
  %v942 = vmul.f32 %v941, %v926
  %vm943 = vweird.f32 %v333
  %v944 = vadd.s32 %v927, 3
  %v945 = vand.u32 %v944, 3
  %vm946 = vcmp.lt.s32.totalorder %v945, 2
  %vm947 = vcmp.eq.s32.totalorder %v945, 0
  %v948 = vxor.u32 %v942, 2147483648
  %v949 = vsel %vm947, %v934, %v948
  %vm950 = vcmp.eq.s32.totalorder %v945, 2
  %v951 = vxor.u32 %v934, 2147483648
  %v952 = vsel %vm950, %v951, %v942
  %v953 = vsel %vm946, %v949, %v952
  %v954 = vsel %vm943, nan, %v953
  %v955 = vadd.f32 %v280, %v489
  %v956 = vadd.f32 %v281, %v644
  %v957 = vadd.f32 %v282, %v799
  %v958 = vadd.f32 %v283, %v954
  %v959 = vmul.f32 %v955, %v489
  %v960 = vmul.f32 %v956, %v644
  %v961 = vmul.f32 %v957, %v799
  %v962 = vmul.f32 %v958, %v954
  %v963 = vpack.c.bf16 %v959, %v959
  %v964 = vpack.c.bf16 %v960, %v960
  %v965 = vpack.c.bf16 %v961, %v961
  %v966 = vpack.c.bf16 %v962, %v962
  %967 = vst [vmem:[%s8] sm:$0xf] %v963
  %968 = vst [vmem:[%s8 + $0x4] sm:$0xf] %v964
  %969 = vst [vmem:[%s8 + $0x8] sm:$0xf] %v965
  %970 = vst [vmem:[%s8 + $0xc] sm:$0xf] %v966
  // Predicated region
  $region34: #{encp_forward.12} parent=0 // pred_check
    _
  $region35: #{encp_forward.12} parent=0 // pred_check_branch
    %972 = sbr.rel (0) target = $region37
  $region36: #{encp_forward.12} parent=0 // pred_region
    _
  $region37: #{encp_forward.12} parent=0 // pred_fallthru
    _
  // Predicated region
  $region38: #{encp_forward.12} parent=0 // pred_check
    _
  $region39: #{encp_forward.12} parent=0 // pred_check_branch
    %974 = sbr.rel (0) target = $region41
  $region40: #{encp_forward.12} parent=0 // pred_region
    _
  $region41: #{encp_forward.12} parent=0 // pred_fallthru
    _

</llo_original>
